<compile_context>
chip_gen: v7x
topology: tpu7x:2x2x1
jax: 0.10.0
libtpu: 0.0.40
codegen_flags: <defaults>
</compile_context>

<pallas_src>
import numpy as np
import jax
import jax.numpy as jnp
from jax import lax
from jax.experimental import pallas as pl
from jax.experimental.pallas import tpu as pltpu

EMB = 768    # self.embedding_size
VIS = 2048   # visual feature dim of dic_z


def _round_up(x, m):
    return (x + m - 1) // m * m


def causal_v_kernel(y_ref, wy_wt_ref, wy_b_ref, zwz_ref, bias_ref, dicp_ref, out_ref):
    # Wy(y): weights pre-transposed to [in, out] -> feeds the MXU directly.
    ywy = (jnp.dot(y_ref[...], wy_wt_ref[...],
                   preferred_element_type=jnp.float32)
           + wy_b_ref[...])                                            # [TM, 768]

    # Attention logits: zwz already contains the 1/sqrt(768) scale.
    # Contract on dim 1 of both operands (no materialized transpose).
    att = lax.dot_general(ywy, zwz_ref[...],
                          dimension_numbers=(((1,), (1,)), ((), ())),
                          preferred_element_type=jnp.float32)          # [TM, K_pad]
    att = att + bias_ref[...]                                          # mask padded lanes

    att = att - jnp.max(att, axis=-1, keepdims=True)
    att = jnp.exp(att)
    denom = jnp.sum(att, axis=-1, keepdims=True)
    att = att * pl.reciprocal(denom, approx=False)

    # z = softmax(att) @ (prior[:, None] * dic_z)   (prior folded in the wrapper)
    out_ref[...] = jnp.dot(att, dicp_ref[...],
                           preferred_element_type=jnp.float32).astype(out_ref.dtype)


def causal_v(y, wy_w, wy_b, wz_w, wz_b, dic_z, prior, *, tile_m=256):
    B, N, _ = y.shape
    K = dic_z.shape[0]

    # ---- one-time (batch-invariant) precompute in plain JAX -----------------
    # zwz = Wz(dic_z) with the 1/sqrt(768) attention scale folded in.
    zwz = (jnp.dot(dic_z, wz_w.T) + wz_b) / (EMB ** 0.5)               # [K, 768]
    # prior folded into the value dictionary.
    dic_z_prior = prior.reshape(K, 1) * dic_z                          # [K, 2048]
    # Wy weight pre-transposed to [in, out].
    wy_wt = wy_w.T                                                     # [768, 768]

    # ---- lane-align K (pad dictionary, mask padded logits) ------------------
    K_pad = max(128, _round_up(K, 128))
    zwz_p = jnp.pad(zwz, ((0, K_pad - K), (0, 0)))
    dicp_p = jnp.pad(dic_z_prior, ((0, K_pad - K), (0, 0)))
    logit_bias = jnp.concatenate(
        [jnp.zeros((1, K), jnp.float32),
         jnp.full((1, K_pad - K), -1e30, jnp.float32)], axis=1)        # [1, K_pad]

    # ---- flatten batch*boxes into the matmul M dimension --------------------
    M = B * N
    tm = max(8, min(tile_m, _round_up(M, 8)))
    M_pad = _round_up(M, tm)
    y2 = jnp.pad(y.reshape(M, EMB).astype(jnp.float32), ((0, M_pad - M), (0, 0)))

    out = pl.pallas_call(
        causal_v_kernel,
        out_shape=jax.ShapeDtypeStruct((M_pad, VIS), jnp.float32),
        grid_spec=pltpu.PrefetchScalarGridSpec(
            num_scalar_prefetch=0,
            grid=(M_pad // tm,),
            in_specs=[
                pl.BlockSpec((tm, EMB), lambda i: (i, 0)),       # y rows (tile)
                pl.BlockSpec((EMB, EMB), lambda i: (0, 0)),      # Wy.weight^T  [in, out]
                pl.BlockSpec((1, EMB), lambda i: (0, 0)),        # Wy.bias
                pl.BlockSpec((K_pad, EMB), lambda i: (0, 0)),    # zwz (scaled, padded)
                pl.BlockSpec((1, K_pad), lambda i: (0, 0)),      # logit mask
                pl.BlockSpec((K_pad, VIS), lambda i: (0, 0)),    # prior * dic_z (padded)
            ],
            out_specs=pl.BlockSpec((tm, VIS), lambda i: (i, 0)),
        ),
        compiler_params=pltpu.CompilerParams(
            dimension_semantics=("parallel",),   # no scratch / no cross-step deps
            vmem_limit_bytes=48 << 20,           # fits v7x's 64 MiB per core
        ),
    )(y2, wy_wt, wy_b, zwz_p, logit_bias, dicp_p)

    return out[:M].reshape(B, N, VIS)


def causal_v_reference(y, wy_w, wy_b, wz_w, wz_b, dic_z, prior):
    ywy = jnp.einsum('bnd,ed->bne', y, wy_w) + wy_b            # [B, N, 768]
    zwz = jnp.einsum('kv,ev->ke', dic_z, wz_w) + wz_b          # [K, 768]
    att = jnp.einsum('bne,ke->bnk', ywy, zwz) / (EMB ** 0.5)   # [B, N, K]
    att = jax.nn.softmax(att, axis=-1)
    z = jnp.einsum('bnk,k,kv->bnv', att, prior[0], dic_z)      # [B, N, 2048]
    return z


if __name__ == "__main__":
    B, N, K = 2, 8, 16   # batch, boxes per image, confounder dictionary size (small synthetic)

    key = jax.random.PRNGKey(0)
    k_y, k_wy, k_wz, k_dic, k_prior = jax.random.split(key, 5)

    # Module parameters (shapes from __init__), deterministic synthetic init.
    wy_w = 0.02 * jax.random.normal(k_wy, (EMB, EMB), dtype=jnp.float32)   # Wy.weight [out,in]
    wy_b = jnp.zeros((1, EMB), dtype=jnp.float32)                          # Wy.bias
    wz_w = 0.02 * jax.random.normal(k_wz, (EMB, VIS), dtype=jnp.float32)   # Wz.weight [out,in]
    wz_b = jnp.zeros((1, EMB), dtype=jnp.float32)                          # Wz.bias
    dic_z = jax.random.normal(k_dic, (K, VIS), dtype=jnp.float32)          # dic_v.npy stand-in
    prior_raw = jax.random.uniform(k_prior, (K,), dtype=jnp.float32)
    prior = (prior_raw / jnp.sum(prior_raw)).reshape(1, K)                 # prior_v.npy stand-in

    y = jax.random.normal(k_y, (B, N, EMB), dtype=jnp.float32)

    out = causal_v(y, wy_w, wy_b, wz_w, wz_b, dic_z, prior)
    out = jax.block_until_ready(out)

    ref = jax.block_until_ready(
        causal_v_reference(y, wy_w, wy_b, wz_w, wz_b, dic_z, prior))

    assert out.shape == (B, N, VIS), out.shape
    np.testing.assert_allclose(np.asarray(out), np.asarray(ref), rtol=1e-4, atol=1e-4)
    print("KERNEL_OK")
</pallas_src>

<mosaic_0001>
module attributes {stable_mosaic.version = 11 : i64} {
  func.func @causal_v_kernel(%arg0: i32, %arg1: memref<16x768xf32, #tpu.memory_space<vmem>>, %arg2: memref<768x768xf32, #tpu.memory_space<vmem>>, %arg3: memref<1x768xf32, #tpu.memory_space<vmem>>, %arg4: memref<128x768xf32, #tpu.memory_space<vmem>>, %arg5: memref<1x128xf32, #tpu.memory_space<vmem>>, %arg6: memref<128x2048xf32, #tpu.memory_space<vmem>>, %arg7: memref<16x2048xf32, #tpu.memory_space<vmem>>) attributes {dimension_semantics = [#tpu.dimension_semantics<parallel>], iteration_bounds = array<i64: 1>, scalar_prefetch = 0 : i64, scratch_operands = 0 : i64, tpu.core_type = #tpu.core_type<tc>, window_params = [{transform_indices = @transform_0, window_bounds = array<i64: 16, 768>}, {pipeline_mode = #tpu.pipeline_mode<synchronous>, transform_indices = @transform_1, window_bounds = array<i64: 768, 768>}, {pipeline_mode = #tpu.pipeline_mode<synchronous>, transform_indices = @transform_2, window_bounds = array<i64: 1, 768>}, {pipeline_mode = #tpu.pipeline_mode<synchronous>, transform_indices = @transform_3, window_bounds = array<i64: 128, 768>}, {pipeline_mode = #tpu.pipeline_mode<synchronous>, transform_indices = @transform_4, window_bounds = array<i64: 1, 128>}, {pipeline_mode = #tpu.pipeline_mode<synchronous>, transform_indices = @transform_5, window_bounds = array<i64: 128, 2048>}, {transform_indices = @transform_6, window_bounds = array<i64: 16, 2048>}]} {
    %c0 = arith.constant 0 : index
    %c0_0 = arith.constant 0 : index
    %0 = vector.load %arg1[%c0, %c0_0] : memref<16x768xf32, #tpu.memory_space<vmem>>, vector<16x768xf32>
    %c0_1 = arith.constant 0 : index
    %c0_2 = arith.constant 0 : index
    %1 = vector.load %arg2[%c0_1, %c0_2] : memref<768x768xf32, #tpu.memory_space<vmem>>, vector<768x768xf32>
    %cst = arith.constant dense<0.000000e+00> : vector<16x768xf32>
    %2 = tpu.matmul %0, %1, %cst {dimension_numbers = #tpu.dot_dimension_numbers<[1], [0], [0], [1], [0, 0, 1, 1], [], []>} : vector<16x768xf32>, vector<768x768xf32>, vector<16x768xf32> -> vector<16x768xf32>
    %c0_3 = arith.constant 0 : index
    %c0_4 = arith.constant 0 : index
    %3 = vector.load %arg3[%c0_3, %c0_4] : memref<1x768xf32, #tpu.memory_space<vmem>>, vector<1x768xf32>
    %4 = vector.broadcast %3 : vector<1x768xf32> to vector<16x768xf32>
    %5 = arith.addf %2, %4 : vector<16x768xf32>
    %c0_5 = arith.constant 0 : index
    %c0_6 = arith.constant 0 : index
    %6 = vector.load %arg4[%c0_5, %c0_6] : memref<128x768xf32, #tpu.memory_space<vmem>>, vector<128x768xf32>
    %cst_7 = arith.constant dense<0.000000e+00> : vector<16x128xf32>
    %7 = tpu.matmul %5, %6, %cst_7 {dimension_numbers = #tpu.dot_dimension_numbers<[1], [1], [0], [0], [0, 0, 1, 0], [], []>} : vector<16x768xf32>, vector<128x768xf32>, vector<16x128xf32> -> vector<16x128xf32>
    %c0_8 = arith.constant 0 : index
    %c0_9 = arith.constant 0 : index
    %8 = vector.load %arg5[%c0_8, %c0_9] : memref<1x128xf32, #tpu.memory_space<vmem>>, vector<1x128xf32>
    %9 = vector.broadcast %8 : vector<1x128xf32> to vector<16x128xf32>
    %10 = arith.addf %7, %9 : vector<16x128xf32>
    %cst_10 = arith.constant dense<0xFF800000> : vector<16xf32>
    %11 = vector.multi_reduction <maximumf>, %10, %cst_10 [1] : vector<16x128xf32> to vector<16xf32>
    %12 = vector.shape_cast %11 : vector<16xf32> to vector<16x1xf32>
    %13 = vector.broadcast %12 : vector<16x1xf32> to vector<16x128xf32>
    %14 = arith.subf %10, %13 : vector<16x128xf32>
    %15 = math.exp %14 : vector<16x128xf32>
    %cst_11 = arith.constant dense<0.000000e+00> : vector<16xf32>
    %16 = vector.multi_reduction <add>, %15, %cst_11 [1] : vector<16x128xf32> to vector<16xf32>
    %17 = vector.shape_cast %16 : vector<16xf32> to vector<16x1xf32>
    %18 = tpu.reciprocal %17 : vector<16x1xf32> -> vector<16x1xf32>
    %19 = vector.broadcast %18 : vector<16x1xf32> to vector<16x128xf32>
    %20 = arith.mulf %15, %19 : vector<16x128xf32>
    %c0_12 = arith.constant 0 : index
    %c0_13 = arith.constant 0 : index
    %21 = vector.load %arg6[%c0_12, %c0_13] : memref<128x2048xf32, #tpu.memory_space<vmem>>, vector<128x2048xf32>
    %cst_14 = arith.constant dense<0.000000e+00> : vector<16x2048xf32>
    %22 = tpu.matmul %20, %21, %cst_14 {dimension_numbers = #tpu.dot_dimension_numbers<[1], [0], [0], [1], [0, 0, 1, 1], [], []>} : vector<16x128xf32>, vector<128x2048xf32>, vector<16x2048xf32> -> vector<16x2048xf32>
    %c0_15 = arith.constant 0 : index
    %c0_16 = arith.constant 0 : index
    %23 = vector.load %arg7[%c0_15, %c0_16] : memref<16x2048xf32, #tpu.memory_space<vmem>>, vector<16x2048xf32>
    tpu.vector_store %arg7[%c0_15, %c0_16], %22 {strides = array<i32>} : memref<16x2048xf32, #tpu.memory_space<vmem>>, vector<16x2048xf32>,
    return
  }
  func.func @transform_0(%arg0: i32) -> (i32, i32) {
    %c0_i32 = arith.constant 0 : i32
    %c0_i32_0 = arith.constant 0 : i32
    return %arg0, %c0_i32 : i32, i32
  }
  func.func @transform_1(%arg0: i32) -> (i32, i32) {
    %c0_i32 = arith.constant 0 : i32
    %c0_i32_0 = arith.constant 0 : i32
    %c0_i32_1 = arith.constant 0 : i32
    return %c0_i32, %c0_i32_0 : i32, i32
  }
  func.func @transform_2(%arg0: i32) -> (i32, i32) {
    %c0_i32 = arith.constant 0 : i32
    %c0_i32_0 = arith.constant 0 : i32
    %c0_i32_1 = arith.constant 0 : i32
    return %c0_i32, %c0_i32_0 : i32, i32
  }
  func.func @transform_3(%arg0: i32) -> (i32, i32) {
    %c0_i32 = arith.constant 0 : i32
    %c0_i32_0 = arith.constant 0 : i32
    %c0_i32_1 = arith.constant 0 : i32
    return %c0_i32, %c0_i32_0 : i32, i32
  }
  func.func @transform_4(%arg0: i32) -> (i32, i32) {
    %c0_i32 = arith.constant 0 : i32
    %c0_i32_0 = arith.constant 0 : i32
    %c0_i32_1 = arith.constant 0 : i32
    return %c0_i32, %c0_i32_0 : i32, i32
  }
  func.func @transform_5(%arg0: i32) -> (i32, i32) {
    %c0_i32 = arith.constant 0 : i32
    %c0_i32_0 = arith.constant 0 : i32
    %c0_i32_1 = arith.constant 0 : i32
    return %c0_i32, %c0_i32_0 : i32, i32
  }
  func.func @transform_6(%arg0: i32) -> (i32, i32) {
    %c0_i32 = arith.constant 0 : i32
    %c0_i32_0 = arith.constant 0 : i32
    return %arg0, %c0_i32 : i32, i32
  }
}

</mosaic_0001>

<llo_original>
// kernel: tpu_custom_call.1
$region0: #{tpu_custom_call.1}
  #allocation0 [shape = 'u32[]', space=smem, size = 0x4, offset = 0x4, fixed_abs, tag = 'smem constant byte address 0x4 - core index']
  #allocation1 [shape = 'u32[144,128]{1,0:T(1,128)}', space=vmem, size = 0x12000, scoped, tag = 'internal scratch']
  %s0 = inlined_call_operand.hbm [shape: f32[16,768], index: 0, kind: input, shape index: {}]
  %s1 = inlined_call_operand.hbm [shape: f32[768,768], index: 1, kind: input, shape index: {}]
  %s2 = inlined_call_operand.hbm [shape: f32[1,768], index: 2, kind: input, shape index: {}]
  %s3 = inlined_call_operand.hbm [shape: f32[128,768], index: 3, kind: input, shape index: {}]
  %s4 = inlined_call_operand.hbm [shape: f32[1,128], index: 4, kind: input, shape index: {}]
  %s5 = inlined_call_operand.hbm [shape: f32[128,2048], index: 5, kind: input, shape index: {}]
  %s6 = inlined_call_operand.hbm [shape: f32[16,2048], index: 6, kind: output, shape index: {}]
  %s7 = sld [smem:[#allocation0]]
  $region58: #{tpu_custom_call.1} parent=0
    _
  %s9 = ssub.s32 1, %s7
  %s10 = scalar_select 0, %s9, %s7
  $region1: #{tpu_custom_call.1} parent=0
    #allocation2 [shape = 'u8[49152]{0}', space=vmem, size = 0xc000, scoped, tag = 'input window, operand 0, single buffered']
    #allocation3 [shape = 's32[1]{0}', space=sflag, size = 0x4, scoped, tag = 'scoped memory for tpu_custom_call.1']
    #allocation4 [shape = 's32[1]{0}', space=sflag, size = 0x4, scoped, tag = 'scoped memory for tpu_custom_call.1']
    #allocation5 [shape = 'u8[2359296]{0}', space=vmem, size = 0x240000, scoped, tag = 'input window, operand 1, single buffered']
    #allocation6 [shape = 's32[1]{0}', space=sflag, size = 0x4, scoped, tag = 'scoped memory for tpu_custom_call.1']
    #allocation7 [shape = 'u8[3072]{0}', space=vmem, size = 0xc00, scoped, tag = 'input window, operand 2, single buffered']
    #allocation8 [shape = 'u8[393216]{0}', space=vmem, size = 0x60000, scoped, tag = 'input window, operand 3, single buffered']
    #allocation9 [shape = 's32[1]{0}', space=sflag, size = 0x4, scoped, tag = 'scoped memory for tpu_custom_call.1']
    #allocation10 [shape = 'u8[512]{0}', space=vmem, size = 0x400, scoped, tag = 'input window, operand 4, single buffered']
    #allocation11 [shape = 'u8[1048576]{0}', space=vmem, size = 0x100000, scoped, tag = 'input window, operand 5, single buffered']
    #allocation12 [shape = 's32[1]{0}', space=sflag, size = 0x4, scoped, tag = 'scoped memory for tpu_custom_call.1']
    #allocation13 [shape = 'u8[131072]{0}', space=vmem, size = 0x20000, scoped, tag = 'output window, operand 0, single buffered']
    %11 = vsyncpa [#allocation3], 0
    %12 = vsyncpa [#allocation6], 0
    %13 = vsyncpa [#allocation9], 0
    %14 = vsyncpa [#allocation12], 0
    %15 = vsyncpa [#allocation4], 0
    // Predicated region
    $region2: #{tpu_custom_call.1} parent=1 // pred_check
      _
    $region3: #{tpu_custom_call.1} parent=1 // pred_check_branch
      %17 = sbr.rel (0) target = $region5
    $region4: #{tpu_custom_call.1} parent=1 // pred_region
      %s19 = ssub.s32 1536, 1536
      %20 = vsyncadd [#allocation3], %s19
      %s21 = sshll.u32 [#allocation2], 4
      %s22 = int_to_ptr.vmem [resolvable:$true] %s21
      %27 = dma.hbm_to_vmem [thread:$0]  %s0, 1536, %s22, [#allocation3], 768, 768, 48
    $region5: #{tpu_custom_call.1} parent=1 // pred_fallthru
      _
    // Predicated region
    $region6: #{tpu_custom_call.1} parent=1 // pred_check
      _
    $region7: #{tpu_custom_call.1} parent=1 // pred_check_branch
      %29 = sbr.rel (0) target = $region9
    $region8: #{tpu_custom_call.1} parent=1 // pred_region
      %s31 = ssub.s32 73728, 73728
      %32 = vsyncadd [#allocation6], %s31
      %s33 = sshll.u32 [#allocation5], 4
      %s34 = int_to_ptr.vmem [resolvable:$true] %s33
      %39 = dma.hbm_to_vmem [thread:$0]  %s1, 73728, %s34, [#allocation6], 768, 768, 48
    $region9: #{tpu_custom_call.1} parent=1 // pred_fallthru
      _
    // Predicated region
    $region10: #{tpu_custom_call.1} parent=1 // pred_check
      _
    $region11: #{tpu_custom_call.1} parent=1 // pred_check_branch
      %41 = sbr.rel (0) target = $region13
    $region12: #{tpu_custom_call.1} parent=1 // pred_region
      %s43 = ssub.s32 96, 96
      %44 = vsyncadd [#allocation6], %s43
      %s46 = sshll.u32 [#allocation7], 4
      %s47 = int_to_ptr.vmem [resolvable:$true] %s46
      %49 = dma.hbm_to_vmem [thread:$0]  %s2, 96, %s47, [#allocation6]
    $region13: #{tpu_custom_call.1} parent=1 // pred_fallthru
      _
    // Predicated region
    $region14: #{tpu_custom_call.1} parent=1 // pred_check
      _
    $region15: #{tpu_custom_call.1} parent=1 // pred_check_branch
      %51 = sbr.rel (0) target = $region17
    $region16: #{tpu_custom_call.1} parent=1 // pred_region
      %s53 = ssub.s32 12288, 12288
      %54 = vsyncadd [#allocation9], %s53
      %s55 = sshll.u32 [#allocation8], 4
      %s56 = int_to_ptr.vmem [resolvable:$true] %s55
      %61 = dma.hbm_to_vmem [thread:$0]  %s3, 12288, %s56, [#allocation9], 768, 768, 48
    $region17: #{tpu_custom_call.1} parent=1 // pred_fallthru
      _
    // Predicated region
    $region18: #{tpu_custom_call.1} parent=1 // pred_check
      _
    $region19: #{tpu_custom_call.1} parent=1 // pred_check_branch
      %63 = sbr.rel (0) target = $region21
    $region20: #{tpu_custom_call.1} parent=1 // pred_region
      %s65 = ssub.s32 16, 16
      %66 = vsyncadd [#allocation9], %s65
      %s68 = sshll.u32 [#allocation10], 4
      %s69 = int_to_ptr.vmem [resolvable:$true] %s68
      %71 = dma.hbm_to_vmem [thread:$0]  %s4, 16, %s69, [#allocation9]
    $region21: #{tpu_custom_call.1} parent=1 // pred_fallthru
      _
    // Predicated region
    $region22: #{tpu_custom_call.1} parent=1 // pred_check
      _
    $region23: #{tpu_custom_call.1} parent=1 // pred_check_branch
      %73 = sbr.rel (0) target = $region25
    $region24: #{tpu_custom_call.1} parent=1 // pred_region
      %s75 = ssub.s32 32768, 32768
      %76 = vsyncadd [#allocation12], %s75
      %s77 = sshll.u32 [#allocation11], 4
      %s78 = int_to_ptr.vmem [resolvable:$true] %s77
      %83 = dma.hbm_to_vmem [thread:$0]  %s5, 32768, %s78, [#allocation12], 2048, 2048, 128
    $region25: #{tpu_custom_call.1} parent=1 // pred_fallthru
      _
    // Predicated region
    $region26: #{tpu_custom_call.1} parent=1 // pred_check
      _
    $region27: #{tpu_custom_call.1} parent=1 // pred_check_branch
      %85 = sbr.rel (0) target = $region29
    $region28: #{tpu_custom_call.1} parent=1 // pred_region
      %86 = dma.done [#allocation3], 1536
    $region29: #{tpu_custom_call.1} parent=1 // pred_fallthru
      _
    // Predicated region
    $region30: #{tpu_custom_call.1} parent=1 // pred_check
      _
    $region31: #{tpu_custom_call.1} parent=1 // pred_check_branch
      %88 = sbr.rel (0) target = $region33
    $region32: #{tpu_custom_call.1} parent=1 // pred_region
      %89 = dma.done [#allocation6], 73728
    $region33: #{tpu_custom_call.1} parent=1 // pred_fallthru
      _
    // Predicated region
    $region34: #{tpu_custom_call.1} parent=1 // pred_check
      _
    $region35: #{tpu_custom_call.1} parent=1 // pred_check_branch
      %91 = sbr.rel (0) target = $region37
    $region36: #{tpu_custom_call.1} parent=1 // pred_region
      %92 = dma.done [#allocation6], 96
    $region37: #{tpu_custom_call.1} parent=1 // pred_fallthru
      _
    // Predicated region
    $region38: #{tpu_custom_call.1} parent=1 // pred_check
      _
    $region39: #{tpu_custom_call.1} parent=1 // pred_check_branch
      %94 = sbr.rel (0) target = $region41
    $region40: #{tpu_custom_call.1} parent=1 // pred_region
      %95 = dma.done [#allocation9], 12288
    $region41: #{tpu_custom_call.1} parent=1 // pred_fallthru
      _
    // Predicated region
    $region42: #{tpu_custom_call.1} parent=1 // pred_check
      _
    $region43: #{tpu_custom_call.1} parent=1 // pred_check_branch
      %97 = sbr.rel (0) target = $region45
    $region44: #{tpu_custom_call.1} parent=1 // pred_region
      %98 = dma.done [#allocation9], 16
    $region45: #{tpu_custom_call.1} parent=1 // pred_fallthru
      _
    // Predicated region
    $region46: #{tpu_custom_call.1} parent=1 // pred_check
      _
    $region47: #{tpu_custom_call.1} parent=1 // pred_check_branch
      %100 = sbr.rel (0) target = $region49
    $region48: #{tpu_custom_call.1} parent=1 // pred_region
      %101 = dma.done [#allocation12], 32768
    $region49: #{tpu_custom_call.1} parent=1 // pred_fallthru
      _
    %v102 = vld [vmem:[#allocation2] sm:$0xff]
    %v103 = vld [vmem:[#allocation2 + $0x8] sm:$0xff]
    %v104 = vld [vmem:[#allocation2 + $0x10] sm:$0xff]
    %v105 = vld [vmem:[#allocation2 + $0x18] sm:$0xff]
    %v106 = vld [vmem:[#allocation2 + $0x20] sm:$0xff]
    %v107 = vld [vmem:[#allocation2 + $0x28] sm:$0xff]
    %v108 = vld [vmem:[#allocation2 + $0x30] sm:$0xff]
    %v109 = vld [vmem:[#allocation2 + $0x38] sm:$0xff]
    %v110 = vld [vmem:[#allocation2 + $0x40] sm:$0xff]
    %v111 = vld [vmem:[#allocation2 + $0x48] sm:$0xff]
    %v112 = vld [vmem:[#allocation2 + $0x50] sm:$0xff]
    %v113 = vld [vmem:[#allocation2 + $0x58] sm:$0xff]
    %v114 = vld [vmem:[#allocation5] sm:$0xff]
    %v115 = vld [vmem:[#allocation5 + $0x8] sm:$0xff]
    %v116 = vld [vmem:[#allocation5 + $0x10] sm:$0xff]
    %v117 = vld [vmem:[#allocation5 + $0x18] sm:$0xff]
    %v118 = vld [vmem:[#allocation5 + $0x20] sm:$0xff]
    %v119 = vld [vmem:[#allocation5 + $0x28] sm:$0xff]
    %v120 = vld [vmem:[#allocation5 + $0x30] sm:$0xff]
    %v121 = vld [vmem:[#allocation5 + $0x38] sm:$0xff]
    %v122 = vld [vmem:[#allocation5 + $0x40] sm:$0xff]
    %v123 = vld [vmem:[#allocation5 + $0x48] sm:$0xff]
    %v124 = vld [vmem:[#allocation5 + $0x50] sm:$0xff]
    %v125 = vld [vmem:[#allocation5 + $0x58] sm:$0xff]
    %v126 = vld [vmem:[#allocation5 + $0x60] sm:$0xff]
    %v127 = vld [vmem:[#allocation5 + $0x68] sm:$0xff]
    %v128 = vld [vmem:[#allocation5 + $0x70] sm:$0xff]
    %v129 = vld [vmem:[#allocation5 + $0x78] sm:$0xff]
    %v130 = vld [vmem:[#allocation5 + $0x80] sm:$0xff]
    %v131 = vld [vmem:[#allocation5 + $0x88] sm:$0xff]
    %v132 = vld [vmem:[#allocation5 + $0x90] sm:$0xff]
    %v133 = vld [vmem:[#allocation5 + $0x98] sm:$0xff]
    %v134 = vld [vmem:[#allocation5 + $0xa0] sm:$0xff]
    %v135 = vld [vmem:[#allocation5 + $0xa8] sm:$0xff]
    %v136 = vld [vmem:[#allocation5 + $0xb0] sm:$0xff]
    %v137 = vld [vmem:[#allocation5 + $0xb8] sm:$0xff]
    %v138 = vld [vmem:[#allocation5 + $0xc0] sm:$0xff]
    %v139 = vld [vmem:[#allocation5 + $0xc8] sm:$0xff]
    %v140 = vld [vmem:[#allocation5 + $0xd0] sm:$0xff]
    %v141 = vld [vmem:[#allocation5 + $0xd8] sm:$0xff]
    %v142 = vld [vmem:[#allocation5 + $0xe0] sm:$0xff]
    %v143 = vld [vmem:[#allocation5 + $0xe8] sm:$0xff]
    %v144 = vld [vmem:[#allocation5 + $0xf0] sm:$0xff]
    %v145 = vld [vmem:[#allocation5 + $0xf8] sm:$0xff]
    %v146 = vld [vmem:[#allocation5 + $0x100] sm:$0xff]
    %v147 = vld [vmem:[#allocation5 + $0x108] sm:$0xff]
    %v148 = vld [vmem:[#allocation5 + $0x110] sm:$0xff]
    %v149 = vld [vmem:[#allocation5 + $0x118] sm:$0xff]
    %v150 = vld [vmem:[#allocation5 + $0x120] sm:$0xff]
    %v151 = vld [vmem:[#allocation5 + $0x128] sm:$0xff]
    %v152 = vld [vmem:[#allocation5 + $0x130] sm:$0xff]
    %v153 = vld [vmem:[#allocation5 + $0x138] sm:$0xff]
    %v154 = vld [vmem:[#allocation5 + $0x140] sm:$0xff]
    %v155 = vld [vmem:[#allocation5 + $0x148] sm:$0xff]
    %v156 = vld [vmem:[#allocation5 + $0x150] sm:$0xff]
    %v157 = vld [vmem:[#allocation5 + $0x158] sm:$0xff]
    %v158 = vld [vmem:[#allocation5 + $0x160] sm:$0xff]
    %v159 = vld [vmem:[#allocation5 + $0x168] sm:$0xff]
    %v160 = vld [vmem:[#allocation5 + $0x170] sm:$0xff]
    %v161 = vld [vmem:[#allocation5 + $0x178] sm:$0xff]
    %v162 = vld [vmem:[#allocation5 + $0x180] sm:$0xff]
    %v163 = vld [vmem:[#allocation5 + $0x188] sm:$0xff]
    %v164 = vld [vmem:[#allocation5 + $0x190] sm:$0xff]
    %v165 = vld [vmem:[#allocation5 + $0x198] sm:$0xff]
    %v166 = vld [vmem:[#allocation5 + $0x1a0] sm:$0xff]
    %v167 = vld [vmem:[#allocation5 + $0x1a8] sm:$0xff]
    %v168 = vld [vmem:[#allocation5 + $0x1b0] sm:$0xff]
    %v169 = vld [vmem:[#allocation5 + $0x1b8] sm:$0xff]
    %v170 = vld [vmem:[#allocation5 + $0x1c0] sm:$0xff]
    %v171 = vld [vmem:[#allocation5 + $0x1c8] sm:$0xff]
    %v172 = vld [vmem:[#allocation5 + $0x1d0] sm:$0xff]
    %v173 = vld [vmem:[#allocation5 + $0x1d8] sm:$0xff]
    %v174 = vld [vmem:[#allocation5 + $0x1e0] sm:$0xff]
    %v175 = vld [vmem:[#allocation5 + $0x1e8] sm:$0xff]
    %v176 = vld [vmem:[#allocation5 + $0x1f0] sm:$0xff]
    %v177 = vld [vmem:[#allocation5 + $0x1f8] sm:$0xff]
    %v178 = vld [vmem:[#allocation5 + $0x200] sm:$0xff]
    %v179 = vld [vmem:[#allocation5 + $0x208] sm:$0xff]
    %v180 = vld [vmem:[#allocation5 + $0x210] sm:$0xff]
    %v181 = vld [vmem:[#allocation5 + $0x218] sm:$0xff]
    %v182 = vld [vmem:[#allocation5 + $0x220] sm:$0xff]
    %v183 = vld [vmem:[#allocation5 + $0x228] sm:$0xff]
    %v184 = vld [vmem:[#allocation5 + $0x230] sm:$0xff]
    %v185 = vld [vmem:[#allocation5 + $0x238] sm:$0xff]
    %v186 = vld [vmem:[#allocation5 + $0x240] sm:$0xff]
    %v187 = vld [vmem:[#allocation5 + $0x248] sm:$0xff]
    %v188 = vld [vmem:[#allocation5 + $0x250] sm:$0xff]
    %v189 = vld [vmem:[#allocation5 + $0x258] sm:$0xff]
    %v190 = vld [vmem:[#allocation5 + $0x260] sm:$0xff]
    %v191 = vld [vmem:[#allocation5 + $0x268] sm:$0xff]
    %v192 = vld [vmem:[#allocation5 + $0x270] sm:$0xff]
    %v193 = vld [vmem:[#allocation5 + $0x278] sm:$0xff]
    %v194 = vld [vmem:[#allocation5 + $0x280] sm:$0xff]
    %v195 = vld [vmem:[#allocation5 + $0x288] sm:$0xff]
    %v196 = vld [vmem:[#allocation5 + $0x290] sm:$0xff]
    %v197 = vld [vmem:[#allocation5 + $0x298] sm:$0xff]
    %v198 = vld [vmem:[#allocation5 + $0x2a0] sm:$0xff]
    %v199 = vld [vmem:[#allocation5 + $0x2a8] sm:$0xff]
    %v200 = vld [vmem:[#allocation5 + $0x2b0] sm:$0xff]
    %v201 = vld [vmem:[#allocation5 + $0x2b8] sm:$0xff]
    %v202 = vld [vmem:[#allocation5 + $0x2c0] sm:$0xff]
    %v203 = vld [vmem:[#allocation5 + $0x2c8] sm:$0xff]
    %v204 = vld [vmem:[#allocation5 + $0x2d0] sm:$0xff]
    %v205 = vld [vmem:[#allocation5 + $0x2d8] sm:$0xff]
    %v206 = vld [vmem:[#allocation5 + $0x2e0] sm:$0xff]
    %v207 = vld [vmem:[#allocation5 + $0x2e8] sm:$0xff]
    %v208 = vld [vmem:[#allocation5 + $0x2f0] sm:$0xff]
    %v209 = vld [vmem:[#allocation5 + $0x2f8] sm:$0xff]
    %v210 = vld [vmem:[#allocation5 + $0x300] sm:$0xff]
    %v211 = vld [vmem:[#allocation5 + $0x308] sm:$0xff]
    %v212 = vld [vmem:[#allocation5 + $0x310] sm:$0xff]
    %v213 = vld [vmem:[#allocation5 + $0x318] sm:$0xff]
    %v214 = vld [vmem:[#allocation5 + $0x320] sm:$0xff]
    %v215 = vld [vmem:[#allocation5 + $0x328] sm:$0xff]
    %v216 = vld [vmem:[#allocation5 + $0x330] sm:$0xff]
    %v217 = vld [vmem:[#allocation5 + $0x338] sm:$0xff]
    %v218 = vld [vmem:[#allocation5 + $0x340] sm:$0xff]
    %v219 = vld [vmem:[#allocation5 + $0x348] sm:$0xff]
    %v220 = vld [vmem:[#allocation5 + $0x350] sm:$0xff]
    %v221 = vld [vmem:[#allocation5 + $0x358] sm:$0xff]
    %v222 = vld [vmem:[#allocation5 + $0x360] sm:$0xff]
    %v223 = vld [vmem:[#allocation5 + $0x368] sm:$0xff]
    %v224 = vld [vmem:[#allocation5 + $0x370] sm:$0xff]
    %v225 = vld [vmem:[#allocation5 + $0x378] sm:$0xff]
    %v226 = vld [vmem:[#allocation5 + $0x380] sm:$0xff]
    %v227 = vld [vmem:[#allocation5 + $0x388] sm:$0xff]
    %v228 = vld [vmem:[#allocation5 + $0x390] sm:$0xff]
    %v229 = vld [vmem:[#allocation5 + $0x398] sm:$0xff]
    %v230 = vld [vmem:[#allocation5 + $0x3a0] sm:$0xff]
    %v231 = vld [vmem:[#allocation5 + $0x3a8] sm:$0xff]
    %v232 = vld [vmem:[#allocation5 + $0x3b0] sm:$0xff]
    %v233 = vld [vmem:[#allocation5 + $0x3b8] sm:$0xff]
    %v234 = vld [vmem:[#allocation5 + $0x3c0] sm:$0xff]
    %v235 = vld [vmem:[#allocation5 + $0x3c8] sm:$0xff]
    %v236 = vld [vmem:[#allocation5 + $0x3d0] sm:$0xff]
    %v237 = vld [vmem:[#allocation5 + $0x3d8] sm:$0xff]
    %v238 = vld [vmem:[#allocation5 + $0x3e0] sm:$0xff]
    %v239 = vld [vmem:[#allocation5 + $0x3e8] sm:$0xff]
    %v240 = vld [vmem:[#allocation5 + $0x3f0] sm:$0xff]
    %v241 = vld [vmem:[#allocation5 + $0x3f8] sm:$0xff]
    %v242 = vld [vmem:[#allocation5 + $0x400] sm:$0xff]
    %v243 = vld [vmem:[#allocation5 + $0x408] sm:$0xff]
    %v244 = vld [vmem:[#allocation5 + $0x410] sm:$0xff]
    %v245 = vld [vmem:[#allocation5 + $0x418] sm:$0xff]
    %v246 = vld [vmem:[#allocation5 + $0x420] sm:$0xff]
    %v247 = vld [vmem:[#allocation5 + $0x428] sm:$0xff]
    %v248 = vld [vmem:[#allocation5 + $0x430] sm:$0xff]
    %v249 = vld [vmem:[#allocation5 + $0x438] sm:$0xff]
    %v250 = vld [vmem:[#allocation5 + $0x440] sm:$0xff]
    %v251 = vld [vmem:[#allocation5 + $0x448] sm:$0xff]
    %v252 = vld [vmem:[#allocation5 + $0x450] sm:$0xff]
    %v253 = vld [vmem:[#allocation5 + $0x458] sm:$0xff]
    %v254 = vld [vmem:[#allocation5 + $0x460] sm:$0xff]
    %v255 = vld [vmem:[#allocation5 + $0x468] sm:$0xff]
    %v256 = vld [vmem:[#allocation5 + $0x470] sm:$0xff]
    %v257 = vld [vmem:[#allocation5 + $0x478] sm:$0xff]
    %v258 = vld [vmem:[#allocation5 + $0x480] sm:$0xff]
    %v259 = vld [vmem:[#allocation5 + $0x488] sm:$0xff]
    %v260 = vld [vmem:[#allocation5 + $0x490] sm:$0xff]
    %v261 = vld [vmem:[#allocation5 + $0x498] sm:$0xff]
    %v262 = vld [vmem:[#allocation5 + $0x4a0] sm:$0xff]
    %v263 = vld [vmem:[#allocation5 + $0x4a8] sm:$0xff]
    %v264 = vld [vmem:[#allocation5 + $0x4b0] sm:$0xff]
    %v265 = vld [vmem:[#allocation5 + $0x4b8] sm:$0xff]
    %v266 = vld [vmem:[#allocation5 + $0x4c0] sm:$0xff]
    %v267 = vld [vmem:[#allocation5 + $0x4c8] sm:$0xff]
    %v268 = vld [vmem:[#allocation5 + $0x4d0] sm:$0xff]
    %v269 = vld [vmem:[#allocation5 + $0x4d8] sm:$0xff]
    %v270 = vld [vmem:[#allocation5 + $0x4e0] sm:$0xff]
    %v271 = vld [vmem:[#allocation5 + $0x4e8] sm:$0xff]
    %v272 = vld [vmem:[#allocation5 + $0x4f0] sm:$0xff]
    %v273 = vld [vmem:[#allocation5 + $0x4f8] sm:$0xff]
    %v274 = vld [vmem:[#allocation5 + $0x500] sm:$0xff]
    %v275 = vld [vmem:[#allocation5 + $0x508] sm:$0xff]
    %v276 = vld [vmem:[#allocation5 + $0x510] sm:$0xff]
    %v277 = vld [vmem:[#allocation5 + $0x518] sm:$0xff]
    %v278 = vld [vmem:[#allocation5 + $0x520] sm:$0xff]
    %v279 = vld [vmem:[#allocation5 + $0x528] sm:$0xff]
    %v280 = vld [vmem:[#allocation5 + $0x530] sm:$0xff]
    %v281 = vld [vmem:[#allocation5 + $0x538] sm:$0xff]
    %v282 = vld [vmem:[#allocation5 + $0x540] sm:$0xff]
    %v283 = vld [vmem:[#allocation5 + $0x548] sm:$0xff]
    %v284 = vld [vmem:[#allocation5 + $0x550] sm:$0xff]
    %v285 = vld [vmem:[#allocation5 + $0x558] sm:$0xff]
    %v286 = vld [vmem:[#allocation5 + $0x560] sm:$0xff]
    %v287 = vld [vmem:[#allocation5 + $0x568] sm:$0xff]
    %v288 = vld [vmem:[#allocation5 + $0x570] sm:$0xff]
    %v289 = vld [vmem:[#allocation5 + $0x578] sm:$0xff]
    %v290 = vld [vmem:[#allocation5 + $0x580] sm:$0xff]
    %v291 = vld [vmem:[#allocation5 + $0x588] sm:$0xff]
    %v292 = vld [vmem:[#allocation5 + $0x590] sm:$0xff]
    %v293 = vld [vmem:[#allocation5 + $0x598] sm:$0xff]
    %v294 = vld [vmem:[#allocation5 + $0x5a0] sm:$0xff]
    %v295 = vld [vmem:[#allocation5 + $0x5a8] sm:$0xff]
    %v296 = vld [vmem:[#allocation5 + $0x5b0] sm:$0xff]
    %v297 = vld [vmem:[#allocation5 + $0x5b8] sm:$0xff]
    %v298 = vld [vmem:[#allocation5 + $0x5c0] sm:$0xff]
    %v299 = vld [vmem:[#allocation5 + $0x5c8] sm:$0xff]
    %v300 = vld [vmem:[#allocation5 + $0x5d0] sm:$0xff]
    %v301 = vld [vmem:[#allocation5 + $0x5d8] sm:$0xff]
    %v302 = vld [vmem:[#allocation5 + $0x5e0] sm:$0xff]
    %v303 = vld [vmem:[#allocation5 + $0x5e8] sm:$0xff]
    %v304 = vld [vmem:[#allocation5 + $0x5f0] sm:$0xff]
    %v305 = vld [vmem:[#allocation5 + $0x5f8] sm:$0xff]
    %v306 = vld [vmem:[#allocation5 + $0x600] sm:$0xff]
    %v307 = vld [vmem:[#allocation5 + $0x608] sm:$0xff]
    %v308 = vld [vmem:[#allocation5 + $0x610] sm:$0xff]
    %v309 = vld [vmem:[#allocation5 + $0x618] sm:$0xff]
    %v310 = vld [vmem:[#allocation5 + $0x620] sm:$0xff]
    %v311 = vld [vmem:[#allocation5 + $0x628] sm:$0xff]
    %v312 = vld [vmem:[#allocation5 + $0x630] sm:$0xff]
    %v313 = vld [vmem:[#allocation5 + $0x638] sm:$0xff]
    %v314 = vld [vmem:[#allocation5 + $0x640] sm:$0xff]
    %v315 = vld [vmem:[#allocation5 + $0x648] sm:$0xff]
    %v316 = vld [vmem:[#allocation5 + $0x650] sm:$0xff]
    %v317 = vld [vmem:[#allocation5 + $0x658] sm:$0xff]
    %v318 = vld [vmem:[#allocation5 + $0x660] sm:$0xff]
    %v319 = vld [vmem:[#allocation5 + $0x668] sm:$0xff]
    %v320 = vld [vmem:[#allocation5 + $0x670] sm:$0xff]
    %v321 = vld [vmem:[#allocation5 + $0x678] sm:$0xff]
    %v322 = vld [vmem:[#allocation5 + $0x680] sm:$0xff]
    %v323 = vld [vmem:[#allocation5 + $0x688] sm:$0xff]
    %v324 = vld [vmem:[#allocation5 + $0x690] sm:$0xff]
    %v325 = vld [vmem:[#allocation5 + $0x698] sm:$0xff]
    %v326 = vld [vmem:[#allocation5 + $0x6a0] sm:$0xff]
    %v327 = vld [vmem:[#allocation5 + $0x6a8] sm:$0xff]
    %v328 = vld [vmem:[#allocation5 + $0x6b0] sm:$0xff]
    %v329 = vld [vmem:[#allocation5 + $0x6b8] sm:$0xff]
    %v330 = vld [vmem:[#allocation5 + $0x6c0] sm:$0xff]
    %v331 = vld [vmem:[#allocation5 + $0x6c8] sm:$0xff]
    %v332 = vld [vmem:[#allocation5 + $0x6d0] sm:$0xff]
    %v333 = vld [vmem:[#allocation5 + $0x6d8] sm:$0xff]
    %v334 = vld [vmem:[#allocation5 + $0x6e0] sm:$0xff]
    %v335 = vld [vmem:[#allocation5 + $0x6e8] sm:$0xff]
    %v336 = vld [vmem:[#allocation5 + $0x6f0] sm:$0xff]
    %v337 = vld [vmem:[#allocation5 + $0x6f8] sm:$0xff]
    %v338 = vld [vmem:[#allocation5 + $0x700] sm:$0xff]
    %v339 = vld [vmem:[#allocation5 + $0x708] sm:$0xff]
    %v340 = vld [vmem:[#allocation5 + $0x710] sm:$0xff]
    %v341 = vld [vmem:[#allocation5 + $0x718] sm:$0xff]
    %v342 = vld [vmem:[#allocation5 + $0x720] sm:$0xff]
    %v343 = vld [vmem:[#allocation5 + $0x728] sm:$0xff]
    %v344 = vld [vmem:[#allocation5 + $0x730] sm:$0xff]
    %v345 = vld [vmem:[#allocation5 + $0x738] sm:$0xff]
    %v346 = vld [vmem:[#allocation5 + $0x740] sm:$0xff]
    %v347 = vld [vmem:[#allocation5 + $0x748] sm:$0xff]
    %v348 = vld [vmem:[#allocation5 + $0x750] sm:$0xff]
    %v349 = vld [vmem:[#allocation5 + $0x758] sm:$0xff]
    %v350 = vld [vmem:[#allocation5 + $0x760] sm:$0xff]
    %v351 = vld [vmem:[#allocation5 + $0x768] sm:$0xff]
    %v352 = vld [vmem:[#allocation5 + $0x770] sm:$0xff]
    %v353 = vld [vmem:[#allocation5 + $0x778] sm:$0xff]
    %v354 = vld [vmem:[#allocation5 + $0x780] sm:$0xff]
    %v355 = vld [vmem:[#allocation5 + $0x788] sm:$0xff]
    %v356 = vld [vmem:[#allocation5 + $0x790] sm:$0xff]
    %v357 = vld [vmem:[#allocation5 + $0x798] sm:$0xff]
    %v358 = vld [vmem:[#allocation5 + $0x7a0] sm:$0xff]
    %v359 = vld [vmem:[#allocation5 + $0x7a8] sm:$0xff]
    %v360 = vld [vmem:[#allocation5 + $0x7b0] sm:$0xff]
    %v361 = vld [vmem:[#allocation5 + $0x7b8] sm:$0xff]
    %v362 = vld [vmem:[#allocation5 + $0x7c0] sm:$0xff]
    %v363 = vld [vmem:[#allocation5 + $0x7c8] sm:$0xff]
    %v364 = vld [vmem:[#allocation5 + $0x7d0] sm:$0xff]
    %v365 = vld [vmem:[#allocation5 + $0x7d8] sm:$0xff]
    %v366 = vld [vmem:[#allocation5 + $0x7e0] sm:$0xff]
    %v367 = vld [vmem:[#allocation5 + $0x7e8] sm:$0xff]
    %v368 = vld [vmem:[#allocation5 + $0x7f0] sm:$0xff]
    %v369 = vld [vmem:[#allocation5 + $0x7f8] sm:$0xff]
    %v370 = vld [vmem:[#allocation5 + $0x800] sm:$0xff]
    %v371 = vld [vmem:[#allocation5 + $0x808] sm:$0xff]
    %v372 = vld [vmem:[#allocation5 + $0x810] sm:$0xff]
    %v373 = vld [vmem:[#allocation5 + $0x818] sm:$0xff]
    %v374 = vld [vmem:[#allocation5 + $0x820] sm:$0xff]
    %v375 = vld [vmem:[#allocation5 + $0x828] sm:$0xff]
    %v376 = vld [vmem:[#allocation5 + $0x830] sm:$0xff]
    %v377 = vld [vmem:[#allocation5 + $0x838] sm:$0xff]
    %v378 = vld [vmem:[#allocation5 + $0x840] sm:$0xff]
    %v379 = vld [vmem:[#allocation5 + $0x848] sm:$0xff]
    %v380 = vld [vmem:[#allocation5 + $0x850] sm:$0xff]
    %v381 = vld [vmem:[#allocation5 + $0x858] sm:$0xff]
    %v382 = vld [vmem:[#allocation5 + $0x860] sm:$0xff]
    %v383 = vld [vmem:[#allocation5 + $0x868] sm:$0xff]
    %v384 = vld [vmem:[#allocation5 + $0x870] sm:$0xff]
    %v385 = vld [vmem:[#allocation5 + $0x878] sm:$0xff]
    %v386 = vld [vmem:[#allocation5 + $0x880] sm:$0xff]
    %v387 = vld [vmem:[#allocation5 + $0x888] sm:$0xff]
    %v388 = vld [vmem:[#allocation5 + $0x890] sm:$0xff]
    %v389 = vld [vmem:[#allocation5 + $0x898] sm:$0xff]
    %v390 = vld [vmem:[#allocation5 + $0x8a0] sm:$0xff]
    %v391 = vld [vmem:[#allocation5 + $0x8a8] sm:$0xff]
    %v392 = vld [vmem:[#allocation5 + $0x8b0] sm:$0xff]
    %v393 = vld [vmem:[#allocation5 + $0x8b8] sm:$0xff]
    %v394 = vld [vmem:[#allocation5 + $0x8c0] sm:$0xff]
    %v395 = vld [vmem:[#allocation5 + $0x8c8] sm:$0xff]
    %v396 = vld [vmem:[#allocation5 + $0x8d0] sm:$0xff]
    %v397 = vld [vmem:[#allocation5 + $0x8d8] sm:$0xff]
    %v398 = vld [vmem:[#allocation5 + $0x8e0] sm:$0xff]
    %v399 = vld [vmem:[#allocation5 + $0x8e8] sm:$0xff]
    %v400 = vld [vmem:[#allocation5 + $0x8f0] sm:$0xff]
    %v401 = vld [vmem:[#allocation5 + $0x8f8] sm:$0xff]
    %v402 = vld [vmem:[#allocation5 + $0x900] sm:$0xff]
    %v403 = vld [vmem:[#allocation5 + $0x908] sm:$0xff]
    %v404 = vld [vmem:[#allocation5 + $0x910] sm:$0xff]
    %v405 = vld [vmem:[#allocation5 + $0x918] sm:$0xff]
    %v406 = vld [vmem:[#allocation5 + $0x920] sm:$0xff]
    %v407 = vld [vmem:[#allocation5 + $0x928] sm:$0xff]
    %v408 = vld [vmem:[#allocation5 + $0x930] sm:$0xff]
    %v409 = vld [vmem:[#allocation5 + $0x938] sm:$0xff]
    %v410 = vld [vmem:[#allocation5 + $0x940] sm:$0xff]
    %v411 = vld [vmem:[#allocation5 + $0x948] sm:$0xff]
    %v412 = vld [vmem:[#allocation5 + $0x950] sm:$0xff]
    %v413 = vld [vmem:[#allocation5 + $0x958] sm:$0xff]
    %v414 = vld [vmem:[#allocation5 + $0x960] sm:$0xff]
    %v415 = vld [vmem:[#allocation5 + $0x968] sm:$0xff]
    %v416 = vld [vmem:[#allocation5 + $0x970] sm:$0xff]
    %v417 = vld [vmem:[#allocation5 + $0x978] sm:$0xff]
    %v418 = vld [vmem:[#allocation5 + $0x980] sm:$0xff]
    %v419 = vld [vmem:[#allocation5 + $0x988] sm:$0xff]
    %v420 = vld [vmem:[#allocation5 + $0x990] sm:$0xff]
    %v421 = vld [vmem:[#allocation5 + $0x998] sm:$0xff]
    %v422 = vld [vmem:[#allocation5 + $0x9a0] sm:$0xff]
    %v423 = vld [vmem:[#allocation5 + $0x9a8] sm:$0xff]
    %v424 = vld [vmem:[#allocation5 + $0x9b0] sm:$0xff]
    %v425 = vld [vmem:[#allocation5 + $0x9b8] sm:$0xff]
    %v426 = vld [vmem:[#allocation5 + $0x9c0] sm:$0xff]
    %v427 = vld [vmem:[#allocation5 + $0x9c8] sm:$0xff]
    %v428 = vld [vmem:[#allocation5 + $0x9d0] sm:$0xff]
    %v429 = vld [vmem:[#allocation5 + $0x9d8] sm:$0xff]
    %v430 = vld [vmem:[#allocation5 + $0x9e0] sm:$0xff]
    %v431 = vld [vmem:[#allocation5 + $0x9e8] sm:$0xff]
    %v432 = vld [vmem:[#allocation5 + $0x9f0] sm:$0xff]
    %v433 = vld [vmem:[#allocation5 + $0x9f8] sm:$0xff]
    %v434 = vld [vmem:[#allocation5 + $0xa00] sm:$0xff]
    %v435 = vld [vmem:[#allocation5 + $0xa08] sm:$0xff]
    %v436 = vld [vmem:[#allocation5 + $0xa10] sm:$0xff]
    %v437 = vld [vmem:[#allocation5 + $0xa18] sm:$0xff]
    %v438 = vld [vmem:[#allocation5 + $0xa20] sm:$0xff]
    %v439 = vld [vmem:[#allocation5 + $0xa28] sm:$0xff]
    %v440 = vld [vmem:[#allocation5 + $0xa30] sm:$0xff]
    %v441 = vld [vmem:[#allocation5 + $0xa38] sm:$0xff]
    %v442 = vld [vmem:[#allocation5 + $0xa40] sm:$0xff]
    %v443 = vld [vmem:[#allocation5 + $0xa48] sm:$0xff]
    %v444 = vld [vmem:[#allocation5 + $0xa50] sm:$0xff]
    %v445 = vld [vmem:[#allocation5 + $0xa58] sm:$0xff]
    %v446 = vld [vmem:[#allocation5 + $0xa60] sm:$0xff]
    %v447 = vld [vmem:[#allocation5 + $0xa68] sm:$0xff]
    %v448 = vld [vmem:[#allocation5 + $0xa70] sm:$0xff]
    %v449 = vld [vmem:[#allocation5 + $0xa78] sm:$0xff]
    %v450 = vld [vmem:[#allocation5 + $0xa80] sm:$0xff]
    %v451 = vld [vmem:[#allocation5 + $0xa88] sm:$0xff]
    %v452 = vld [vmem:[#allocation5 + $0xa90] sm:$0xff]
    %v453 = vld [vmem:[#allocation5 + $0xa98] sm:$0xff]
    %v454 = vld [vmem:[#allocation5 + $0xaa0] sm:$0xff]
    %v455 = vld [vmem:[#allocation5 + $0xaa8] sm:$0xff]
    %v456 = vld [vmem:[#allocation5 + $0xab0] sm:$0xff]
    %v457 = vld [vmem:[#allocation5 + $0xab8] sm:$0xff]
    %v458 = vld [vmem:[#allocation5 + $0xac0] sm:$0xff]
    %v459 = vld [vmem:[#allocation5 + $0xac8] sm:$0xff]
    %v460 = vld [vmem:[#allocation5 + $0xad0] sm:$0xff]
    %v461 = vld [vmem:[#allocation5 + $0xad8] sm:$0xff]
    %v462 = vld [vmem:[#allocation5 + $0xae0] sm:$0xff]
    %v463 = vld [vmem:[#allocation5 + $0xae8] sm:$0xff]
    %v464 = vld [vmem:[#allocation5 + $0xaf0] sm:$0xff]
    %v465 = vld [vmem:[#allocation5 + $0xaf8] sm:$0xff]
    %v466 = vld [vmem:[#allocation5 + $0xb00] sm:$0xff]
    %v467 = vld [vmem:[#allocation5 + $0xb08] sm:$0xff]
    %v468 = vld [vmem:[#allocation5 + $0xb10] sm:$0xff]
    %v469 = vld [vmem:[#allocation5 + $0xb18] sm:$0xff]
    %v470 = vld [vmem:[#allocation5 + $0xb20] sm:$0xff]
    %v471 = vld [vmem:[#allocation5 + $0xb28] sm:$0xff]
    %v472 = vld [vmem:[#allocation5 + $0xb30] sm:$0xff]
    %v473 = vld [vmem:[#allocation5 + $0xb38] sm:$0xff]
    %v474 = vld [vmem:[#allocation5 + $0xb40] sm:$0xff]
    %v475 = vld [vmem:[#allocation5 + $0xb48] sm:$0xff]
    %v476 = vld [vmem:[#allocation5 + $0xb50] sm:$0xff]
    %v477 = vld [vmem:[#allocation5 + $0xb58] sm:$0xff]
    %v478 = vld [vmem:[#allocation5 + $0xb60] sm:$0xff]
    %v479 = vld [vmem:[#allocation5 + $0xb68] sm:$0xff]
    %v480 = vld [vmem:[#allocation5 + $0xb70] sm:$0xff]
    %v481 = vld [vmem:[#allocation5 + $0xb78] sm:$0xff]
    %v482 = vld [vmem:[#allocation5 + $0xb80] sm:$0xff]
    %v483 = vld [vmem:[#allocation5 + $0xb88] sm:$0xff]
    %v484 = vld [vmem:[#allocation5 + $0xb90] sm:$0xff]
    %v485 = vld [vmem:[#allocation5 + $0xb98] sm:$0xff]
    %v486 = vld [vmem:[#allocation5 + $0xba0] sm:$0xff]
    %v487 = vld [vmem:[#allocation5 + $0xba8] sm:$0xff]
    %v488 = vld [vmem:[#allocation5 + $0xbb0] sm:$0xff]
    %v489 = vld [vmem:[#allocation5 + $0xbb8] sm:$0xff]
    %v490 = vld [vmem:[#allocation5 + $0xbc0] sm:$0xff]
    %v491 = vld [vmem:[#allocation5 + $0xbc8] sm:$0xff]
    %v492 = vld [vmem:[#allocation5 + $0xbd0] sm:$0xff]
    %v493 = vld [vmem:[#allocation5 + $0xbd8] sm:$0xff]
    %v494 = vld [vmem:[#allocation5 + $0xbe0] sm:$0xff]
    %v495 = vld [vmem:[#allocation5 + $0xbe8] sm:$0xff]
    %v496 = vld [vmem:[#allocation5 + $0xbf0] sm:$0xff]
    %v497 = vld [vmem:[#allocation5 + $0xbf8] sm:$0xff]
    %v498 = vld [vmem:[#allocation5 + $0xc00] sm:$0xff]
    %v499 = vld [vmem:[#allocation5 + $0xc08] sm:$0xff]
    %v500 = vld [vmem:[#allocation5 + $0xc10] sm:$0xff]
    %v501 = vld [vmem:[#allocation5 + $0xc18] sm:$0xff]
    %v502 = vld [vmem:[#allocation5 + $0xc20] sm:$0xff]
    %v503 = vld [vmem:[#allocation5 + $0xc28] sm:$0xff]
    %v504 = vld [vmem:[#allocation5 + $0xc30] sm:$0xff]
    %v505 = vld [vmem:[#allocation5 + $0xc38] sm:$0xff]
    %v506 = vld [vmem:[#allocation5 + $0xc40] sm:$0xff]
    %v507 = vld [vmem:[#allocation5 + $0xc48] sm:$0xff]
    %v508 = vld [vmem:[#allocation5 + $0xc50] sm:$0xff]
    %v509 = vld [vmem:[#allocation5 + $0xc58] sm:$0xff]
    %v510 = vld [vmem:[#allocation5 + $0xc60] sm:$0xff]
    %v511 = vld [vmem:[#allocation5 + $0xc68] sm:$0xff]
    %v512 = vld [vmem:[#allocation5 + $0xc70] sm:$0xff]
    %v513 = vld [vmem:[#allocation5 + $0xc78] sm:$0xff]
    %v514 = vld [vmem:[#allocation5 + $0xc80] sm:$0xff]
    %v515 = vld [vmem:[#allocation5 + $0xc88] sm:$0xff]
    %v516 = vld [vmem:[#allocation5 + $0xc90] sm:$0xff]
    %v517 = vld [vmem:[#allocation5 + $0xc98] sm:$0xff]
    %v518 = vld [vmem:[#allocation5 + $0xca0] sm:$0xff]
    %v519 = vld [vmem:[#allocation5 + $0xca8] sm:$0xff]
    %v520 = vld [vmem:[#allocation5 + $0xcb0] sm:$0xff]
    %v521 = vld [vmem:[#allocation5 + $0xcb8] sm:$0xff]
    %v522 = vld [vmem:[#allocation5 + $0xcc0] sm:$0xff]
    %v523 = vld [vmem:[#allocation5 + $0xcc8] sm:$0xff]
    %v524 = vld [vmem:[#allocation5 + $0xcd0] sm:$0xff]
    %v525 = vld [vmem:[#allocation5 + $0xcd8] sm:$0xff]
    %v526 = vld [vmem:[#allocation5 + $0xce0] sm:$0xff]
    %v527 = vld [vmem:[#allocation5 + $0xce8] sm:$0xff]
    %v528 = vld [vmem:[#allocation5 + $0xcf0] sm:$0xff]
    %v529 = vld [vmem:[#allocation5 + $0xcf8] sm:$0xff]
    %v530 = vld [vmem:[#allocation5 + $0xd00] sm:$0xff]
    %v531 = vld [vmem:[#allocation5 + $0xd08] sm:$0xff]
    %v532 = vld [vmem:[#allocation5 + $0xd10] sm:$0xff]
    %v533 = vld [vmem:[#allocation5 + $0xd18] sm:$0xff]
    %v534 = vld [vmem:[#allocation5 + $0xd20] sm:$0xff]
    %v535 = vld [vmem:[#allocation5 + $0xd28] sm:$0xff]
    %v536 = vld [vmem:[#allocation5 + $0xd30] sm:$0xff]
    %v537 = vld [vmem:[#allocation5 + $0xd38] sm:$0xff]
    %v538 = vld [vmem:[#allocation5 + $0xd40] sm:$0xff]
    %v539 = vld [vmem:[#allocation5 + $0xd48] sm:$0xff]
    %v540 = vld [vmem:[#allocation5 + $0xd50] sm:$0xff]
    %v541 = vld [vmem:[#allocation5 + $0xd58] sm:$0xff]
    %v542 = vld [vmem:[#allocation5 + $0xd60] sm:$0xff]
    %v543 = vld [vmem:[#allocation5 + $0xd68] sm:$0xff]
    %v544 = vld [vmem:[#allocation5 + $0xd70] sm:$0xff]
    %v545 = vld [vmem:[#allocation5 + $0xd78] sm:$0xff]
    %v546 = vld [vmem:[#allocation5 + $0xd80] sm:$0xff]
    %v547 = vld [vmem:[#allocation5 + $0xd88] sm:$0xff]
    %v548 = vld [vmem:[#allocation5 + $0xd90] sm:$0xff]
    %v549 = vld [vmem:[#allocation5 + $0xd98] sm:$0xff]
    %v550 = vld [vmem:[#allocation5 + $0xda0] sm:$0xff]
    %v551 = vld [vmem:[#allocation5 + $0xda8] sm:$0xff]
    %v552 = vld [vmem:[#allocation5 + $0xdb0] sm:$0xff]
    %v553 = vld [vmem:[#allocation5 + $0xdb8] sm:$0xff]
    %v554 = vld [vmem:[#allocation5 + $0xdc0] sm:$0xff]
    %v555 = vld [vmem:[#allocation5 + $0xdc8] sm:$0xff]
    %v556 = vld [vmem:[#allocation5 + $0xdd0] sm:$0xff]
    %v557 = vld [vmem:[#allocation5 + $0xdd8] sm:$0xff]
    %v558 = vld [vmem:[#allocation5 + $0xde0] sm:$0xff]
    %v559 = vld [vmem:[#allocation5 + $0xde8] sm:$0xff]
    %v560 = vld [vmem:[#allocation5 + $0xdf0] sm:$0xff]
    %v561 = vld [vmem:[#allocation5 + $0xdf8] sm:$0xff]
    %v562 = vld [vmem:[#allocation5 + $0xe00] sm:$0xff]
    %v563 = vld [vmem:[#allocation5 + $0xe08] sm:$0xff]
    %v564 = vld [vmem:[#allocation5 + $0xe10] sm:$0xff]
    %v565 = vld [vmem:[#allocation5 + $0xe18] sm:$0xff]
    %v566 = vld [vmem:[#allocation5 + $0xe20] sm:$0xff]
    %v567 = vld [vmem:[#allocation5 + $0xe28] sm:$0xff]
    %v568 = vld [vmem:[#allocation5 + $0xe30] sm:$0xff]
    %v569 = vld [vmem:[#allocation5 + $0xe38] sm:$0xff]
    %v570 = vld [vmem:[#allocation5 + $0xe40] sm:$0xff]
    %v571 = vld [vmem:[#allocation5 + $0xe48] sm:$0xff]
    %v572 = vld [vmem:[#allocation5 + $0xe50] sm:$0xff]
    %v573 = vld [vmem:[#allocation5 + $0xe58] sm:$0xff]
    %v574 = vld [vmem:[#allocation5 + $0xe60] sm:$0xff]
    %v575 = vld [vmem:[#allocation5 + $0xe68] sm:$0xff]
    %v576 = vld [vmem:[#allocation5 + $0xe70] sm:$0xff]
    %v577 = vld [vmem:[#allocation5 + $0xe78] sm:$0xff]
    %v578 = vld [vmem:[#allocation5 + $0xe80] sm:$0xff]
    %v579 = vld [vmem:[#allocation5 + $0xe88] sm:$0xff]
    %v580 = vld [vmem:[#allocation5 + $0xe90] sm:$0xff]
    %v581 = vld [vmem:[#allocation5 + $0xe98] sm:$0xff]
    %v582 = vld [vmem:[#allocation5 + $0xea0] sm:$0xff]
    %v583 = vld [vmem:[#allocation5 + $0xea8] sm:$0xff]
    %v584 = vld [vmem:[#allocation5 + $0xeb0] sm:$0xff]
    %v585 = vld [vmem:[#allocation5 + $0xeb8] sm:$0xff]
    %v586 = vld [vmem:[#allocation5 + $0xec0] sm:$0xff]
    %v587 = vld [vmem:[#allocation5 + $0xec8] sm:$0xff]
    %v588 = vld [vmem:[#allocation5 + $0xed0] sm:$0xff]
    %v589 = vld [vmem:[#allocation5 + $0xed8] sm:$0xff]
    %v590 = vld [vmem:[#allocation5 + $0xee0] sm:$0xff]
    %v591 = vld [vmem:[#allocation5 + $0xee8] sm:$0xff]
    %v592 = vld [vmem:[#allocation5 + $0xef0] sm:$0xff]
    %v593 = vld [vmem:[#allocation5 + $0xef8] sm:$0xff]
    %v594 = vld [vmem:[#allocation5 + $0xf00] sm:$0xff]
    %v595 = vld [vmem:[#allocation5 + $0xf08] sm:$0xff]
    %v596 = vld [vmem:[#allocation5 + $0xf10] sm:$0xff]
    %v597 = vld [vmem:[#allocation5 + $0xf18] sm:$0xff]
    %v598 = vld [vmem:[#allocation5 + $0xf20] sm:$0xff]
    %v599 = vld [vmem:[#allocation5 + $0xf28] sm:$0xff]
    %v600 = vld [vmem:[#allocation5 + $0xf30] sm:$0xff]
    %v601 = vld [vmem:[#allocation5 + $0xf38] sm:$0xff]
    %v602 = vld [vmem:[#allocation5 + $0xf40] sm:$0xff]
    %v603 = vld [vmem:[#allocation5 + $0xf48] sm:$0xff]
    %v604 = vld [vmem:[#allocation5 + $0xf50] sm:$0xff]
    %v605 = vld [vmem:[#allocation5 + $0xf58] sm:$0xff]
    %v606 = vld [vmem:[#allocation5 + $0xf60] sm:$0xff]
    %v607 = vld [vmem:[#allocation5 + $0xf68] sm:$0xff]
    %v608 = vld [vmem:[#allocation5 + $0xf70] sm:$0xff]
    %v609 = vld [vmem:[#allocation5 + $0xf78] sm:$0xff]
    %v610 = vld [vmem:[#allocation5 + $0xf80] sm:$0xff]
    %v611 = vld [vmem:[#allocation5 + $0xf88] sm:$0xff]
    %v612 = vld [vmem:[#allocation5 + $0xf90] sm:$0xff]
    %v613 = vld [vmem:[#allocation5 + $0xf98] sm:$0xff]
    %v614 = vld [vmem:[#allocation5 + $0xfa0] sm:$0xff]
    %v615 = vld [vmem:[#allocation5 + $0xfa8] sm:$0xff]
    %v616 = vld [vmem:[#allocation5 + $0xfb0] sm:$0xff]
    %v617 = vld [vmem:[#allocation5 + $0xfb8] sm:$0xff]
    %v618 = vld [vmem:[#allocation5 + $0xfc0] sm:$0xff]
    %v619 = vld [vmem:[#allocation5 + $0xfc8] sm:$0xff]
    %v620 = vld [vmem:[#allocation5 + $0xfd0] sm:$0xff]
    %v621 = vld [vmem:[#allocation5 + $0xfd8] sm:$0xff]
    %v622 = vld [vmem:[#allocation5 + $0xfe0] sm:$0xff]
    %v623 = vld [vmem:[#allocation5 + $0xfe8] sm:$0xff]
    %v624 = vld [vmem:[#allocation5 + $0xff0] sm:$0xff]
    %v625 = vld [vmem:[#allocation5 + $0xff8] sm:$0xff]
    %v626 = vld [vmem:[#allocation5 + $0x1000] sm:$0xff]
    %v627 = vld [vmem:[#allocation5 + $0x1008] sm:$0xff]
    %v628 = vld [vmem:[#allocation5 + $0x1010] sm:$0xff]
    %v629 = vld [vmem:[#allocation5 + $0x1018] sm:$0xff]
    %v630 = vld [vmem:[#allocation5 + $0x1020] sm:$0xff]
    %v631 = vld [vmem:[#allocation5 + $0x1028] sm:$0xff]
    %v632 = vld [vmem:[#allocation5 + $0x1030] sm:$0xff]
    %v633 = vld [vmem:[#allocation5 + $0x1038] sm:$0xff]
    %v634 = vld [vmem:[#allocation5 + $0x1040] sm:$0xff]
    %v635 = vld [vmem:[#allocation5 + $0x1048] sm:$0xff]
    %v636 = vld [vmem:[#allocation5 + $0x1050] sm:$0xff]
    %v637 = vld [vmem:[#allocation5 + $0x1058] sm:$0xff]
    %v638 = vld [vmem:[#allocation5 + $0x1060] sm:$0xff]
    %v639 = vld [vmem:[#allocation5 + $0x1068] sm:$0xff]
    %v640 = vld [vmem:[#allocation5 + $0x1070] sm:$0xff]
    %v641 = vld [vmem:[#allocation5 + $0x1078] sm:$0xff]
    %v642 = vld [vmem:[#allocation5 + $0x1080] sm:$0xff]
    %v643 = vld [vmem:[#allocation5 + $0x1088] sm:$0xff]
    %v644 = vld [vmem:[#allocation5 + $0x1090] sm:$0xff]
    %v645 = vld [vmem:[#allocation5 + $0x1098] sm:$0xff]
    %v646 = vld [vmem:[#allocation5 + $0x10a0] sm:$0xff]
    %v647 = vld [vmem:[#allocation5 + $0x10a8] sm:$0xff]
    %v648 = vld [vmem:[#allocation5 + $0x10b0] sm:$0xff]
    %v649 = vld [vmem:[#allocation5 + $0x10b8] sm:$0xff]
    %v650 = vld [vmem:[#allocation5 + $0x10c0] sm:$0xff]
    %v651 = vld [vmem:[#allocation5 + $0x10c8] sm:$0xff]
    %v652 = vld [vmem:[#allocation5 + $0x10d0] sm:$0xff]
    %v653 = vld [vmem:[#allocation5 + $0x10d8] sm:$0xff]
    %v654 = vld [vmem:[#allocation5 + $0x10e0] sm:$0xff]
    %v655 = vld [vmem:[#allocation5 + $0x10e8] sm:$0xff]
    %v656 = vld [vmem:[#allocation5 + $0x10f0] sm:$0xff]
    %v657 = vld [vmem:[#allocation5 + $0x10f8] sm:$0xff]
    %v658 = vld [vmem:[#allocation5 + $0x1100] sm:$0xff]
    %v659 = vld [vmem:[#allocation5 + $0x1108] sm:$0xff]
    %v660 = vld [vmem:[#allocation5 + $0x1110] sm:$0xff]
    %v661 = vld [vmem:[#allocation5 + $0x1118] sm:$0xff]
    %v662 = vld [vmem:[#allocation5 + $0x1120] sm:$0xff]
    %v663 = vld [vmem:[#allocation5 + $0x1128] sm:$0xff]
    %v664 = vld [vmem:[#allocation5 + $0x1130] sm:$0xff]
    %v665 = vld [vmem:[#allocation5 + $0x1138] sm:$0xff]
    %v666 = vld [vmem:[#allocation5 + $0x1140] sm:$0xff]
    %v667 = vld [vmem:[#allocation5 + $0x1148] sm:$0xff]
    %v668 = vld [vmem:[#allocation5 + $0x1150] sm:$0xff]
    %v669 = vld [vmem:[#allocation5 + $0x1158] sm:$0xff]
    %v670 = vld [vmem:[#allocation5 + $0x1160] sm:$0xff]
    %v671 = vld [vmem:[#allocation5 + $0x1168] sm:$0xff]
    %v672 = vld [vmem:[#allocation5 + $0x1170] sm:$0xff]
    %v673 = vld [vmem:[#allocation5 + $0x1178] sm:$0xff]
    %v674 = vld [vmem:[#allocation5 + $0x1180] sm:$0xff]
    %v675 = vld [vmem:[#allocation5 + $0x1188] sm:$0xff]
    %v676 = vld [vmem:[#allocation5 + $0x1190] sm:$0xff]
    %v677 = vld [vmem:[#allocation5 + $0x1198] sm:$0xff]
    %v678 = vld [vmem:[#allocation5 + $0x11a0] sm:$0xff]
    %v679 = vld [vmem:[#allocation5 + $0x11a8] sm:$0xff]
    %v680 = vld [vmem:[#allocation5 + $0x11b0] sm:$0xff]
    %v681 = vld [vmem:[#allocation5 + $0x11b8] sm:$0xff]
    %v682 = vld [vmem:[#allocation5 + $0x11c0] sm:$0xff]
    %v683 = vld [vmem:[#allocation5 + $0x11c8] sm:$0xff]
    %v684 = vld [vmem:[#allocation5 + $0x11d0] sm:$0xff]
    %v685 = vld [vmem:[#allocation5 + $0x11d8] sm:$0xff]
    %v686 = vld [vmem:[#allocation5 + $0x11e0] sm:$0xff]
    %v687 = vld [vmem:[#allocation5 + $0x11e8] sm:$0xff]
    %v688 = vld [vmem:[#allocation5 + $0x11f0] sm:$0xff]
    %v689 = vld [vmem:[#allocation5 + $0x11f8] sm:$0xff]
    %v690 = vld [vmem:[#allocation7] sm:$0x3f]
    %v692 = vlaneseq
    %v693 = vshrl.u32 %v692, 7
    %v694 = vsub.s32 0, %v693
    %v695 = vrot.slane %v690, %v694
    %v696 = vlaneseq
    %v697 = vshrl.u32 %v696, 7
    %v698 = vsub.s32 1, %v697
    %v699 = vrot.slane %v690, %v698
    %v700 = vlaneseq
    %v701 = vshrl.u32 %v700, 7
    %v702 = vsub.s32 2, %v701
    %v703 = vrot.slane %v690, %v702
    %v704 = vlaneseq
    %v705 = vshrl.u32 %v704, 7
    %v706 = vsub.s32 3, %v705
    %v707 = vrot.slane %v690, %v706
    %v708 = vlaneseq
    %v709 = vshrl.u32 %v708, 7
    %v710 = vsub.s32 4, %v709
    %v711 = vrot.slane %v690, %v710
    %v712 = vlaneseq
    %v713 = vshrl.u32 %v712, 7
    %v714 = vsub.s32 5, %v713
    %v715 = vrot.slane %v690, %v714
    %722 = vmatprep.subr.mxu0 %v115
    %723 = vmatpush1.msra.mxu0 %v114
    %724 = vmatprep.subr.mxu0 %v121
    %725 = vmatpush1.msra.mxu0 %v120
    %726 = vmatprep.subr.mxu0 %v127
    %727 = vmatpush1.msra.mxu0 %v126
    %728 = vmatprep.subr.mxu0 %v133
    %729 = vmatpush1.msra.mxu0 %v132
    %730 = vmatprep.subr.mxu0 %v139
    %731 = vmatpush1.msra.mxu0 %v138
    %732 = vmatprep.subr.mxu0 %v145
    %733 = vmatpush1.msra.mxu0 %v144
    %734 = vmatprep.subr.mxu0 %v151
    %735 = vmatpush1.msra.mxu0 %v150
    %736 = vmatprep.subr.mxu0 %v157
    %737 = vmatpush1.msra.mxu0 %v156
    %738 = vmatprep.subr.mxu0 %v163
    %739 = vmatpush1.msra.mxu0 %v162
    %740 = vmatprep.subr.mxu0 %v169
    %741 = vmatpush1.msra.mxu0 %v168
    %742 = vmatprep.subr.mxu0 %v175
    %743 = vmatpush1.msra.mxu0 %v174
    %744 = vmatprep.subr.mxu0 %v181
    %745 = vmatpush1.msra.mxu0 %v180
    %746 = vmatprep.subr.mxu0 %v187
    %747 = vmatpush1.msra.mxu0 %v186
    %748 = vmatprep.subr.mxu0 %v193
    %749 = vmatpush1.msra.mxu0 %v192
    %750 = vmatprep.subr.mxu0 %v199
    %751 = vmatpush1.msra.mxu0 %v198
    %752 = vmatprep.subr.mxu0 %v205
    %753 = vmatpush1.msra.mxu0 %v204
    %754 = vmatprep.subr.mxu0 %v211
    %755 = vmatpush1.msra.mxu0 %v210
    %756 = vmatprep.subr.mxu0 %v217
    %757 = vmatpush1.msra.mxu0 %v216
    %758 = vmatprep.subr.mxu0 %v223
    %759 = vmatpush1.msra.mxu0 %v222
    %760 = vmatprep.subr.mxu0 %v229
    %761 = vmatpush1.msra.mxu0 %v228
    %762 = vmatprep.subr.mxu0 %v235
    %763 = vmatpush1.msra.mxu0 %v234
    %764 = vmatprep.subr.mxu0 %v241
    %765 = vmatpush1.msra.mxu0 %v240
    %766 = vmatprep.subr.mxu0 %v247
    %767 = vmatpush1.msra.mxu0 %v246
    %768 = vmatprep.subr.mxu0 %v253
    %769 = vmatpush1.msra.mxu0 %v252
    %770 = vmatprep.subr.mxu0 %v259
    %771 = vmatpush1.msra.mxu0 %v258
    %772 = vmatprep.subr.mxu0 %v265
    %773 = vmatpush1.msra.mxu0 %v264
    %774 = vmatprep.subr.mxu0 %v271
    %775 = vmatpush1.msra.mxu0 %v270
    %776 = vmatprep.subr.mxu0 %v277
    %777 = vmatpush1.msra.mxu0 %v276
    %778 = vmatprep.subr.mxu0 %v283
    %779 = vmatpush1.msra.mxu0 %v282
    %780 = vmatprep.subr.mxu0 %v289
    %781 = vmatpush1.msra.mxu0 %v288
    %782 = vmatprep.subr.mxu0 %v295
    %783 = vmatpush1.msra.mxu0 %v294
    %784 = vmatprep.subr.mxu0 %v301
    %785 = vmatpush1.msra.mxu0 %v300
    %786 = vmatprep.mubr.f32.mxu0 %v103
    %787 = vmatmul.mubr.f32.gmra.mrb[0].mxu0 %v102
    %v788 = vpop.f32.mrb[0].mxu0
    %v789 = vadd.f32 %v695, %v788
    %v790 = vpop.f32.mrb[0].mxu0
    %v791 = vadd.f32 %v699, %v790
    %792 = vmatprep.mubr.f32.mxu0 %v109
    %793 = vmatmul.mubr.f32.gmra.mrb[0].mxu0 %v108
    %v794 = vpop.f32.mrb[0].mxu0
    %v795 = vadd.f32 %v695, %v794
    %v796 = vpop.f32.mrb[0].mxu0
    %v797 = vadd.f32 %v699, %v796
    %798 = vdwg.mxu0
    %799 = vmatprep.subr.mxu0 %v307
    %800 = vmatpush1.msra.mxu0 %v306
    %801 = vmatprep.subr.mxu0 %v313
    %802 = vmatpush1.msra.mxu0 %v312
    %803 = vmatprep.subr.mxu0 %v319
    %804 = vmatpush1.msra.mxu0 %v318
    %805 = vmatprep.subr.mxu0 %v325
    %806 = vmatpush1.msra.mxu0 %v324
    %807 = vmatprep.subr.mxu0 %v331
    %808 = vmatpush1.msra.mxu0 %v330
    %809 = vmatprep.subr.mxu0 %v337
    %810 = vmatpush1.msra.mxu0 %v336
    %811 = vmatprep.subr.mxu0 %v343
    %812 = vmatpush1.msra.mxu0 %v342
    %813 = vmatprep.subr.mxu0 %v349
    %814 = vmatpush1.msra.mxu0 %v348
    %815 = vmatprep.subr.mxu0 %v355
    %816 = vmatpush1.msra.mxu0 %v354
    %817 = vmatprep.subr.mxu0 %v361
    %818 = vmatpush1.msra.mxu0 %v360
    %819 = vmatprep.subr.mxu0 %v367
    %820 = vmatpush1.msra.mxu0 %v366
    %821 = vmatprep.subr.mxu0 %v373
    %822 = vmatpush1.msra.mxu0 %v372
    %823 = vmatprep.subr.mxu0 %v379
    %824 = vmatpush1.msra.mxu0 %v378
    %825 = vmatprep.subr.mxu0 %v385
    %826 = vmatpush1.msra.mxu0 %v384
    %827 = vmatprep.subr.mxu0 %v391
    %828 = vmatpush1.msra.mxu0 %v390
    %829 = vmatprep.subr.mxu0 %v397
    %830 = vmatpush1.msra.mxu0 %v396
    %831 = vmatprep.subr.mxu0 %v403
    %832 = vmatpush1.msra.mxu0 %v402
    %833 = vmatprep.subr.mxu0 %v409
    %834 = vmatpush1.msra.mxu0 %v408
    %835 = vmatprep.subr.mxu0 %v415
    %836 = vmatpush1.msra.mxu0 %v414
    %837 = vmatprep.subr.mxu0 %v421
    %838 = vmatpush1.msra.mxu0 %v420
    %839 = vmatprep.subr.mxu0 %v427
    %840 = vmatpush1.msra.mxu0 %v426
    %841 = vmatprep.subr.mxu0 %v433
    %842 = vmatpush1.msra.mxu0 %v432
    %843 = vmatprep.subr.mxu0 %v439
    %844 = vmatpush1.msra.mxu0 %v438
    %845 = vmatprep.subr.mxu0 %v445
    %846 = vmatpush1.msra.mxu0 %v444
    %847 = vmatprep.subr.mxu0 %v451
    %848 = vmatpush1.msra.mxu0 %v450
    %849 = vmatprep.subr.mxu0 %v457
    %850 = vmatpush1.msra.mxu0 %v456
    %851 = vmatprep.subr.mxu0 %v463
    %852 = vmatpush1.msra.mxu0 %v462
    %853 = vmatprep.subr.mxu0 %v469
    %854 = vmatpush1.msra.mxu0 %v468
    %855 = vmatprep.subr.mxu0 %v475
    %856 = vmatpush1.msra.mxu0 %v474
    %857 = vmatprep.subr.mxu0 %v481
    %858 = vmatpush1.msra.mxu0 %v480
    %859 = vmatprep.subr.mxu0 %v487
    %860 = vmatpush1.msra.mxu0 %v486
    %861 = vmatprep.subr.mxu0 %v493
    %862 = vmatpush1.msra.mxu0 %v492
    %863 = vmatprep.mubr.f32.mxu0 %v105
    %864 = vmatmul.mubr.f32.gmra.mrb[0].mxu0 %v104
    %v865 = vpop.f32.mrb[0].mxu0
    %v866 = vadd.f32 %v789, %v865
    %v867 = vpop.f32.mrb[0].mxu0
    %v868 = vadd.f32 %v791, %v867
    %869 = vmatprep.mubr.f32.mxu0 %v111
    %870 = vmatmul.mubr.f32.gmra.mrb[0].mxu0 %v110
    %v871 = vpop.f32.mrb[0].mxu0
    %v872 = vadd.f32 %v795, %v871
    %v873 = vpop.f32.mrb[0].mxu0
    %v874 = vadd.f32 %v797, %v873
    %875 = vdwg.mxu0
    %876 = vmatprep.subr.mxu0 %v499
    %877 = vmatpush1.msra.mxu0 %v498
    %878 = vmatprep.subr.mxu0 %v505
    %879 = vmatpush1.msra.mxu0 %v504
    %880 = vmatprep.subr.mxu0 %v511
    %881 = vmatpush1.msra.mxu0 %v510
    %882 = vmatprep.subr.mxu0 %v517
    %883 = vmatpush1.msra.mxu0 %v516
    %884 = vmatprep.subr.mxu0 %v523
    %885 = vmatpush1.msra.mxu0 %v522
    %886 = vmatprep.subr.mxu0 %v529
    %887 = vmatpush1.msra.mxu0 %v528
    %888 = vmatprep.subr.mxu0 %v535
    %889 = vmatpush1.msra.mxu0 %v534
    %890 = vmatprep.subr.mxu0 %v541
    %891 = vmatpush1.msra.mxu0 %v540
    %892 = vmatprep.subr.mxu0 %v547
    %893 = vmatpush1.msra.mxu0 %v546
    %894 = vmatprep.subr.mxu0 %v553
    %895 = vmatpush1.msra.mxu0 %v552
    %896 = vmatprep.subr.mxu0 %v559
    %897 = vmatpush1.msra.mxu0 %v558
    %898 = vmatprep.subr.mxu0 %v565
    %899 = vmatpush1.msra.mxu0 %v564
    %900 = vmatprep.subr.mxu0 %v571
    %901 = vmatpush1.msra.mxu0 %v570
    %902 = vmatprep.subr.mxu0 %v577
    %903 = vmatpush1.msra.mxu0 %v576
    %904 = vmatprep.subr.mxu0 %v583
    %905 = vmatpush1.msra.mxu0 %v582
    %906 = vmatprep.subr.mxu0 %v589
    %907 = vmatpush1.msra.mxu0 %v588
    %908 = vmatprep.subr.mxu0 %v595
    %909 = vmatpush1.msra.mxu0 %v594
    %910 = vmatprep.subr.mxu0 %v601
    %911 = vmatpush1.msra.mxu0 %v600
    %912 = vmatprep.subr.mxu0 %v607
    %913 = vmatpush1.msra.mxu0 %v606
    %914 = vmatprep.subr.mxu0 %v613
    %915 = vmatpush1.msra.mxu0 %v612
    %916 = vmatprep.subr.mxu0 %v619
    %917 = vmatpush1.msra.mxu0 %v618
    %918 = vmatprep.subr.mxu0 %v625
    %919 = vmatpush1.msra.mxu0 %v624
    %920 = vmatprep.subr.mxu0 %v631
    %921 = vmatpush1.msra.mxu0 %v630
    %922 = vmatprep.subr.mxu0 %v637
    %923 = vmatpush1.msra.mxu0 %v636
    %924 = vmatprep.subr.mxu0 %v643
    %925 = vmatpush1.msra.mxu0 %v642
    %926 = vmatprep.subr.mxu0 %v649
    %927 = vmatpush1.msra.mxu0 %v648
    %928 = vmatprep.subr.mxu0 %v655
    %929 = vmatpush1.msra.mxu0 %v654
    %930 = vmatprep.subr.mxu0 %v661
    %931 = vmatpush1.msra.mxu0 %v660
    %932 = vmatprep.subr.mxu0 %v667
    %933 = vmatpush1.msra.mxu0 %v666
    %934 = vmatprep.subr.mxu0 %v673
    %935 = vmatpush1.msra.mxu0 %v672
    %936 = vmatprep.subr.mxu0 %v679
    %937 = vmatpush1.msra.mxu0 %v678
    %938 = vmatprep.subr.mxu0 %v685
    %939 = vmatpush1.msra.mxu0 %v684
    %940 = vmatprep.mubr.f32.mxu0 %v107
    %941 = vmatmul.mubr.f32.gmra.mrb[0].mxu0 %v106
    %v942 = vpop.f32.mrb[0].mxu0
    %v943 = vadd.f32 %v866, %v942
    %v944 = vpop.f32.mrb[0].mxu0
    %v945 = vadd.f32 %v868, %v944
    %946 = vmatprep.mubr.f32.mxu0 %v113
    %947 = vmatmul.mubr.f32.gmra.mrb[0].mxu0 %v112
    %v948 = vpop.f32.mrb[0].mxu0
    %v949 = vadd.f32 %v872, %v948
    %v950 = vpop.f32.mrb[0].mxu0
    %v951 = vadd.f32 %v874, %v950
    %952 = vdwg.mxu0
    %953 = vmatprep.subr.mxu0 %v117
    %954 = vmatpush1.msra.mxu0 %v116
    %955 = vmatprep.subr.mxu0 %v123
    %956 = vmatpush1.msra.mxu0 %v122
    %957 = vmatprep.subr.mxu0 %v129
    %958 = vmatpush1.msra.mxu0 %v128
    %959 = vmatprep.subr.mxu0 %v135
    %960 = vmatpush1.msra.mxu0 %v134
    %961 = vmatprep.subr.mxu0 %v141
    %962 = vmatpush1.msra.mxu0 %v140
    %963 = vmatprep.subr.mxu0 %v147
    %964 = vmatpush1.msra.mxu0 %v146
    %965 = vmatprep.subr.mxu0 %v153
    %966 = vmatpush1.msra.mxu0 %v152
    %967 = vmatprep.subr.mxu0 %v159
    %968 = vmatpush1.msra.mxu0 %v158
    %969 = vmatprep.subr.mxu0 %v165
    %970 = vmatpush1.msra.mxu0 %v164
    %971 = vmatprep.subr.mxu0 %v171
    %972 = vmatpush1.msra.mxu0 %v170
    %973 = vmatprep.subr.mxu0 %v177
    %974 = vmatpush1.msra.mxu0 %v176
    %975 = vmatprep.subr.mxu0 %v183
    %976 = vmatpush1.msra.mxu0 %v182
    %977 = vmatprep.subr.mxu0 %v189
    %978 = vmatpush1.msra.mxu0 %v188
    %979 = vmatprep.subr.mxu0 %v195
    %980 = vmatpush1.msra.mxu0 %v194
    %981 = vmatprep.subr.mxu0 %v201
    %982 = vmatpush1.msra.mxu0 %v200
    %983 = vmatprep.subr.mxu0 %v207
    %984 = vmatpush1.msra.mxu0 %v206
    %985 = vmatprep.subr.mxu0 %v213
    %986 = vmatpush1.msra.mxu0 %v212
    %987 = vmatprep.subr.mxu0 %v219
    %988 = vmatpush1.msra.mxu0 %v218
    %989 = vmatprep.subr.mxu0 %v225
    %990 = vmatpush1.msra.mxu0 %v224
    %991 = vmatprep.subr.mxu0 %v231
    %992 = vmatpush1.msra.mxu0 %v230
    %993 = vmatprep.subr.mxu0 %v237
    %994 = vmatpush1.msra.mxu0 %v236
    %995 = vmatprep.subr.mxu0 %v243
    %996 = vmatpush1.msra.mxu0 %v242
    %997 = vmatprep.subr.mxu0 %v249
    %998 = vmatpush1.msra.mxu0 %v248
    %999 = vmatprep.subr.mxu0 %v255
    %1000 = vmatpush1.msra.mxu0 %v254
    %1001 = vmatprep.subr.mxu0 %v261
    %1002 = vmatpush1.msra.mxu0 %v260
    %1003 = vmatprep.subr.mxu0 %v267
    %1004 = vmatpush1.msra.mxu0 %v266
    %1005 = vmatprep.subr.mxu0 %v273
    %1006 = vmatpush1.msra.mxu0 %v272
    %1007 = vmatprep.subr.mxu0 %v279
    %1008 = vmatpush1.msra.mxu0 %v278
    %1009 = vmatprep.subr.mxu0 %v285
    %1010 = vmatpush1.msra.mxu0 %v284
    %1011 = vmatprep.subr.mxu0 %v291
    %1012 = vmatpush1.msra.mxu0 %v290
    %1013 = vmatprep.subr.mxu0 %v297
    %1014 = vmatpush1.msra.mxu0 %v296
    %1015 = vmatprep.subr.mxu0 %v303
    %1016 = vmatpush1.msra.mxu0 %v302
    %1017 = vmatprep.mubr.f32.mxu0 %v103
    %1018 = vmatmul.mubr.f32.gmra.mrb[0].mxu0 %v102
    %v1019 = vpop.f32.mrb[0].mxu0
    %v1020 = vadd.f32 %v703, %v1019
    %v1021 = vpop.f32.mrb[0].mxu0
    %v1022 = vadd.f32 %v707, %v1021
    %1023 = vmatprep.mubr.f32.mxu0 %v109
    %1024 = vmatmul.mubr.f32.gmra.mrb[0].mxu0 %v108
    %v1025 = vpop.f32.mrb[0].mxu0
    %v1026 = vadd.f32 %v703, %v1025
    %v1027 = vpop.f32.mrb[0].mxu0
    %v1028 = vadd.f32 %v707, %v1027
    %1029 = vdwg.mxu0
    %1030 = vmatprep.subr.mxu0 %v309
    %1031 = vmatpush1.msra.mxu0 %v308
    %1032 = vmatprep.subr.mxu0 %v315
    %1033 = vmatpush1.msra.mxu0 %v314
    %1034 = vmatprep.subr.mxu0 %v321
    %1035 = vmatpush1.msra.mxu0 %v320
    %1036 = vmatprep.subr.mxu0 %v327
    %1037 = vmatpush1.msra.mxu0 %v326
    %1038 = vmatprep.subr.mxu0 %v333
    %1039 = vmatpush1.msra.mxu0 %v332
    %1040 = vmatprep.subr.mxu0 %v339
    %1041 = vmatpush1.msra.mxu0 %v338
    %1042 = vmatprep.subr.mxu0 %v345
    %1043 = vmatpush1.msra.mxu0 %v344
    %1044 = vmatprep.subr.mxu0 %v351
    %1045 = vmatpush1.msra.mxu0 %v350
    %1046 = vmatprep.subr.mxu0 %v357
    %1047 = vmatpush1.msra.mxu0 %v356
    %1048 = vmatprep.subr.mxu0 %v363
    %1049 = vmatpush1.msra.mxu0 %v362
    %1050 = vmatprep.subr.mxu0 %v369
    %1051 = vmatpush1.msra.mxu0 %v368
    %1052 = vmatprep.subr.mxu0 %v375
    %1053 = vmatpush1.msra.mxu0 %v374
    %1054 = vmatprep.subr.mxu0 %v381
    %1055 = vmatpush1.msra.mxu0 %v380
    %1056 = vmatprep.subr.mxu0 %v387
    %1057 = vmatpush1.msra.mxu0 %v386
    %1058 = vmatprep.subr.mxu0 %v393
    %1059 = vmatpush1.msra.mxu0 %v392
    %1060 = vmatprep.subr.mxu0 %v399
    %1061 = vmatpush1.msra.mxu0 %v398
    %1062 = vmatprep.subr.mxu0 %v405
    %1063 = vmatpush1.msra.mxu0 %v404
    %1064 = vmatprep.subr.mxu0 %v411
    %1065 = vmatpush1.msra.mxu0 %v410
    %1066 = vmatprep.subr.mxu0 %v417
    %1067 = vmatpush1.msra.mxu0 %v416
    %1068 = vmatprep.subr.mxu0 %v423
    %1069 = vmatpush1.msra.mxu0 %v422
    %1070 = vmatprep.subr.mxu0 %v429
    %1071 = vmatpush1.msra.mxu0 %v428
    %1072 = vmatprep.subr.mxu0 %v435
    %1073 = vmatpush1.msra.mxu0 %v434
    %1074 = vmatprep.subr.mxu0 %v441
    %1075 = vmatpush1.msra.mxu0 %v440
    %1076 = vmatprep.subr.mxu0 %v447
    %1077 = vmatpush1.msra.mxu0 %v446
    %1078 = vmatprep.subr.mxu0 %v453
    %1079 = vmatpush1.msra.mxu0 %v452
    %1080 = vmatprep.subr.mxu0 %v459
    %1081 = vmatpush1.msra.mxu0 %v458
    %1082 = vmatprep.subr.mxu0 %v465
    %1083 = vmatpush1.msra.mxu0 %v464
    %1084 = vmatprep.subr.mxu0 %v471
    %1085 = vmatpush1.msra.mxu0 %v470
    %1086 = vmatprep.subr.mxu0 %v477
    %1087 = vmatpush1.msra.mxu0 %v476
    %1088 = vmatprep.subr.mxu0 %v483
    %1089 = vmatpush1.msra.mxu0 %v482
    %1090 = vmatprep.subr.mxu0 %v489
    %1091 = vmatpush1.msra.mxu0 %v488
    %1092 = vmatprep.subr.mxu0 %v495
    %1093 = vmatpush1.msra.mxu0 %v494
    %1094 = vmatprep.mubr.f32.mxu0 %v105
    %1095 = vmatmul.mubr.f32.gmra.mrb[0].mxu0 %v104
    %v1096 = vpop.f32.mrb[0].mxu0
    %v1097 = vadd.f32 %v1020, %v1096
    %v1098 = vpop.f32.mrb[0].mxu0
    %v1099 = vadd.f32 %v1022, %v1098
    %1100 = vmatprep.mubr.f32.mxu0 %v111
    %1101 = vmatmul.mubr.f32.gmra.mrb[0].mxu0 %v110
    %v1102 = vpop.f32.mrb[0].mxu0
    %v1103 = vadd.f32 %v1026, %v1102
    %v1104 = vpop.f32.mrb[0].mxu0
    %v1105 = vadd.f32 %v1028, %v1104
    %1106 = vdwg.mxu0
    %1107 = vmatprep.subr.mxu0 %v501
    %1108 = vmatpush1.msra.mxu0 %v500
    %1109 = vmatprep.subr.mxu0 %v507
    %1110 = vmatpush1.msra.mxu0 %v506
    %1111 = vmatprep.subr.mxu0 %v513
    %1112 = vmatpush1.msra.mxu0 %v512
    %1113 = vmatprep.subr.mxu0 %v519
    %1114 = vmatpush1.msra.mxu0 %v518
    %1115 = vmatprep.subr.mxu0 %v525
    %1116 = vmatpush1.msra.mxu0 %v524
    %1117 = vmatprep.subr.mxu0 %v531
    %1118 = vmatpush1.msra.mxu0 %v530
    %1119 = vmatprep.subr.mxu0 %v537
    %1120 = vmatpush1.msra.mxu0 %v536
    %1121 = vmatprep.subr.mxu0 %v543
    %1122 = vmatpush1.msra.mxu0 %v542
    %1123 = vmatprep.subr.mxu0 %v549
    %1124 = vmatpush1.msra.mxu0 %v548
    %1125 = vmatprep.subr.mxu0 %v555
    %1126 = vmatpush1.msra.mxu0 %v554
    %1127 = vmatprep.subr.mxu0 %v561
    %1128 = vmatpush1.msra.mxu0 %v560
    %1129 = vmatprep.subr.mxu0 %v567
    %1130 = vmatpush1.msra.mxu0 %v566
    %1131 = vmatprep.subr.mxu0 %v573
    %1132 = vmatpush1.msra.mxu0 %v572
    %1133 = vmatprep.subr.mxu0 %v579
    %1134 = vmatpush1.msra.mxu0 %v578
    %1135 = vmatprep.subr.mxu0 %v585
    %1136 = vmatpush1.msra.mxu0 %v584
    %1137 = vmatprep.subr.mxu0 %v591
    %1138 = vmatpush1.msra.mxu0 %v590
    %1139 = vmatprep.subr.mxu0 %v597
    %1140 = vmatpush1.msra.mxu0 %v596
    %1141 = vmatprep.subr.mxu0 %v603
    %1142 = vmatpush1.msra.mxu0 %v602
    %1143 = vmatprep.subr.mxu0 %v609
    %1144 = vmatpush1.msra.mxu0 %v608
    %1145 = vmatprep.subr.mxu0 %v615
    %1146 = vmatpush1.msra.mxu0 %v614
    %1147 = vmatprep.subr.mxu0 %v621
    %1148 = vmatpush1.msra.mxu0 %v620
    %1149 = vmatprep.subr.mxu0 %v627
    %1150 = vmatpush1.msra.mxu0 %v626
    %1151 = vmatprep.subr.mxu0 %v633
    %1152 = vmatpush1.msra.mxu0 %v632
    %1153 = vmatprep.subr.mxu0 %v639
    %1154 = vmatpush1.msra.mxu0 %v638
    %1155 = vmatprep.subr.mxu0 %v645
    %1156 = vmatpush1.msra.mxu0 %v644
    %1157 = vmatprep.subr.mxu0 %v651
    %1158 = vmatpush1.msra.mxu0 %v650
    %1159 = vmatprep.subr.mxu0 %v657
    %1160 = vmatpush1.msra.mxu0 %v656
    %1161 = vmatprep.subr.mxu0 %v663
    %1162 = vmatpush1.msra.mxu0 %v662
    %1163 = vmatprep.subr.mxu0 %v669
    %1164 = vmatpush1.msra.mxu0 %v668
    %1165 = vmatprep.subr.mxu0 %v675
    %1166 = vmatpush1.msra.mxu0 %v674
    %1167 = vmatprep.subr.mxu0 %v681
    %1168 = vmatpush1.msra.mxu0 %v680
    %1169 = vmatprep.subr.mxu0 %v687
    %1170 = vmatpush1.msra.mxu0 %v686
    %1171 = vmatprep.mubr.f32.mxu0 %v107
    %1172 = vmatmul.mubr.f32.gmra.mrb[0].mxu0 %v106
    %v1173 = vpop.f32.mrb[0].mxu0
    %v1174 = vadd.f32 %v1097, %v1173
    %v1175 = vpop.f32.mrb[0].mxu0
    %v1176 = vadd.f32 %v1099, %v1175
    %1177 = vmatprep.mubr.f32.mxu0 %v113
    %1178 = vmatmul.mubr.f32.gmra.mrb[0].mxu0 %v112
    %v1179 = vpop.f32.mrb[0].mxu0
    %v1180 = vadd.f32 %v1103, %v1179
    %v1181 = vpop.f32.mrb[0].mxu0
    %v1182 = vadd.f32 %v1105, %v1181
    %1183 = vdwg.mxu0
    %1184 = vmatprep.subr.mxu0 %v119
    %1185 = vmatpush1.msra.mxu0 %v118
    %1186 = vmatprep.subr.mxu0 %v125
    %1187 = vmatpush1.msra.mxu0 %v124
    %1188 = vmatprep.subr.mxu0 %v131
    %1189 = vmatpush1.msra.mxu0 %v130
    %1190 = vmatprep.subr.mxu0 %v137
    %1191 = vmatpush1.msra.mxu0 %v136
    %1192 = vmatprep.subr.mxu0 %v143
    %1193 = vmatpush1.msra.mxu0 %v142
    %1194 = vmatprep.subr.mxu0 %v149
    %1195 = vmatpush1.msra.mxu0 %v148
    %1196 = vmatprep.subr.mxu0 %v155
    %1197 = vmatpush1.msra.mxu0 %v154
    %1198 = vmatprep.subr.mxu0 %v161
    %1199 = vmatpush1.msra.mxu0 %v160
    %1200 = vmatprep.subr.mxu0 %v167
    %1201 = vmatpush1.msra.mxu0 %v166
    %1202 = vmatprep.subr.mxu0 %v173
    %1203 = vmatpush1.msra.mxu0 %v172
    %1204 = vmatprep.subr.mxu0 %v179
    %1205 = vmatpush1.msra.mxu0 %v178
    %1206 = vmatprep.subr.mxu0 %v185
    %1207 = vmatpush1.msra.mxu0 %v184
    %1208 = vmatprep.subr.mxu0 %v191
    %1209 = vmatpush1.msra.mxu0 %v190
    %1210 = vmatprep.subr.mxu0 %v197
    %1211 = vmatpush1.msra.mxu0 %v196
    %1212 = vmatprep.subr.mxu0 %v203
    %1213 = vmatpush1.msra.mxu0 %v202
    %1214 = vmatprep.subr.mxu0 %v209
    %1215 = vmatpush1.msra.mxu0 %v208
    %1216 = vmatprep.subr.mxu0 %v215
    %1217 = vmatpush1.msra.mxu0 %v214
    %1218 = vmatprep.subr.mxu0 %v221
    %1219 = vmatpush1.msra.mxu0 %v220
    %1220 = vmatprep.subr.mxu0 %v227
    %1221 = vmatpush1.msra.mxu0 %v226
    %1222 = vmatprep.subr.mxu0 %v233
    %1223 = vmatpush1.msra.mxu0 %v232
    %1224 = vmatprep.subr.mxu0 %v239
    %1225 = vmatpush1.msra.mxu0 %v238
    %1226 = vmatprep.subr.mxu0 %v245
    %1227 = vmatpush1.msra.mxu0 %v244
    %1228 = vmatprep.subr.mxu0 %v251
    %1229 = vmatpush1.msra.mxu0 %v250
    %1230 = vmatprep.subr.mxu0 %v257
    %1231 = vmatpush1.msra.mxu0 %v256
    %1232 = vmatprep.subr.mxu0 %v263
    %1233 = vmatpush1.msra.mxu0 %v262
    %1234 = vmatprep.subr.mxu0 %v269
    %1235 = vmatpush1.msra.mxu0 %v268
    %1236 = vmatprep.subr.mxu0 %v275
    %1237 = vmatpush1.msra.mxu0 %v274
    %1238 = vmatprep.subr.mxu0 %v281
    %1239 = vmatpush1.msra.mxu0 %v280
    %1240 = vmatprep.subr.mxu0 %v287
    %1241 = vmatpush1.msra.mxu0 %v286
    %1242 = vmatprep.subr.mxu0 %v293
    %1243 = vmatpush1.msra.mxu0 %v292
    %1244 = vmatprep.subr.mxu0 %v299
    %1245 = vmatpush1.msra.mxu0 %v298
    %1246 = vmatprep.subr.mxu0 %v305
    %1247 = vmatpush1.msra.mxu0 %v304
    %1248 = vmatprep.mubr.f32.mxu0 %v103
    %1249 = vmatmul.mubr.f32.gmra.mrb[0].mxu0 %v102
    %v1250 = vpop.f32.mrb[0].mxu0
    %v1251 = vadd.f32 %v711, %v1250
    %v1252 = vpop.f32.mrb[0].mxu0
    %v1253 = vadd.f32 %v715, %v1252
    %1254 = vmatprep.mubr.f32.mxu0 %v109
    %1255 = vmatmul.mubr.f32.gmra.mrb[0].mxu0 %v108
    %v1256 = vpop.f32.mrb[0].mxu0
    %v1257 = vadd.f32 %v711, %v1256
    %v1258 = vpop.f32.mrb[0].mxu0
    %v1259 = vadd.f32 %v715, %v1258
    %1260 = vdwg.mxu0
    %1261 = vmatprep.subr.mxu0 %v311
    %1262 = vmatpush1.msra.mxu0 %v310
    %1263 = vmatprep.subr.mxu0 %v317
    %1264 = vmatpush1.msra.mxu0 %v316
    %1265 = vmatprep.subr.mxu0 %v323
    %1266 = vmatpush1.msra.mxu0 %v322
    %1267 = vmatprep.subr.mxu0 %v329
    %1268 = vmatpush1.msra.mxu0 %v328
    %1269 = vmatprep.subr.mxu0 %v335
    %1270 = vmatpush1.msra.mxu0 %v334
    %1271 = vmatprep.subr.mxu0 %v341
    %1272 = vmatpush1.msra.mxu0 %v340
    %1273 = vmatprep.subr.mxu0 %v347
    %1274 = vmatpush1.msra.mxu0 %v346
    %1275 = vmatprep.subr.mxu0 %v353
    %1276 = vmatpush1.msra.mxu0 %v352
    %1277 = vmatprep.subr.mxu0 %v359
    %1278 = vmatpush1.msra.mxu0 %v358
    %1279 = vmatprep.subr.mxu0 %v365
    %1280 = vmatpush1.msra.mxu0 %v364
    %1281 = vmatprep.subr.mxu0 %v371
    %1282 = vmatpush1.msra.mxu0 %v370
    %1283 = vmatprep.subr.mxu0 %v377
    %1284 = vmatpush1.msra.mxu0 %v376
    %1285 = vmatprep.subr.mxu0 %v383
    %1286 = vmatpush1.msra.mxu0 %v382
    %1287 = vmatprep.subr.mxu0 %v389
    %1288 = vmatpush1.msra.mxu0 %v388
    %1289 = vmatprep.subr.mxu0 %v395
    %1290 = vmatpush1.msra.mxu0 %v394
    %1291 = vmatprep.subr.mxu0 %v401
    %1292 = vmatpush1.msra.mxu0 %v400
    %1293 = vmatprep.subr.mxu0 %v407
    %1294 = vmatpush1.msra.mxu0 %v406
    %1295 = vmatprep.subr.mxu0 %v413
    %1296 = vmatpush1.msra.mxu0 %v412
    %1297 = vmatprep.subr.mxu0 %v419
    %1298 = vmatpush1.msra.mxu0 %v418
    %1299 = vmatprep.subr.mxu0 %v425
    %1300 = vmatpush1.msra.mxu0 %v424
    %1301 = vmatprep.subr.mxu0 %v431
    %1302 = vmatpush1.msra.mxu0 %v430
    %1303 = vmatprep.subr.mxu0 %v437
    %1304 = vmatpush1.msra.mxu0 %v436
    %1305 = vmatprep.subr.mxu0 %v443
    %1306 = vmatpush1.msra.mxu0 %v442
    %1307 = vmatprep.subr.mxu0 %v449
    %1308 = vmatpush1.msra.mxu0 %v448
    %1309 = vmatprep.subr.mxu0 %v455
    %1310 = vmatpush1.msra.mxu0 %v454
    %1311 = vmatprep.subr.mxu0 %v461
    %1312 = vmatpush1.msra.mxu0 %v460
    %1313 = vmatprep.subr.mxu0 %v467
    %1314 = vmatpush1.msra.mxu0 %v466
    %1315 = vmatprep.subr.mxu0 %v473
    %1316 = vmatpush1.msra.mxu0 %v472
    %1317 = vmatprep.subr.mxu0 %v479
    %1318 = vmatpush1.msra.mxu0 %v478
    %1319 = vmatprep.subr.mxu0 %v485
    %1320 = vmatpush1.msra.mxu0 %v484
    %1321 = vmatprep.subr.mxu0 %v491
    %1322 = vmatpush1.msra.mxu0 %v490
    %1323 = vmatprep.subr.mxu0 %v497
    %1324 = vmatpush1.msra.mxu0 %v496
    %1325 = vmatprep.mubr.f32.mxu0 %v105
    %1326 = vmatmul.mubr.f32.gmra.mrb[0].mxu0 %v104
    %v1327 = vpop.f32.mrb[0].mxu0
    %v1328 = vadd.f32 %v1251, %v1327
    %v1329 = vpop.f32.mrb[0].mxu0
    %v1330 = vadd.f32 %v1253, %v1329
    %1331 = vmatprep.mubr.f32.mxu0 %v111
    %1332 = vmatmul.mubr.f32.gmra.mrb[0].mxu0 %v110
    %v1333 = vpop.f32.mrb[0].mxu0
    %v1334 = vadd.f32 %v1257, %v1333
    %v1335 = vpop.f32.mrb[0].mxu0
    %v1336 = vadd.f32 %v1259, %v1335
    %1337 = vdwg.mxu0
    %1338 = vmatprep.subr.mxu0 %v503
    %1339 = vmatpush1.msra.mxu0 %v502
    %1340 = vmatprep.subr.mxu0 %v509
    %1341 = vmatpush1.msra.mxu0 %v508
    %1342 = vmatprep.subr.mxu0 %v515
    %1343 = vmatpush1.msra.mxu0 %v514
    %1344 = vmatprep.subr.mxu0 %v521
    %1345 = vmatpush1.msra.mxu0 %v520
    %1346 = vmatprep.subr.mxu0 %v527
    %1347 = vmatpush1.msra.mxu0 %v526
    %1348 = vmatprep.subr.mxu0 %v533
    %1349 = vmatpush1.msra.mxu0 %v532
    %1350 = vmatprep.subr.mxu0 %v539
    %1351 = vmatpush1.msra.mxu0 %v538
    %1352 = vmatprep.subr.mxu0 %v545
    %1353 = vmatpush1.msra.mxu0 %v544
    %1354 = vmatprep.subr.mxu0 %v551
    %1355 = vmatpush1.msra.mxu0 %v550
    %1356 = vmatprep.subr.mxu0 %v557
    %1357 = vmatpush1.msra.mxu0 %v556
    %1358 = vmatprep.subr.mxu0 %v563
    %1359 = vmatpush1.msra.mxu0 %v562
    %1360 = vmatprep.subr.mxu0 %v569
    %1361 = vmatpush1.msra.mxu0 %v568
    %1362 = vmatprep.subr.mxu0 %v575
    %1363 = vmatpush1.msra.mxu0 %v574
    %1364 = vmatprep.subr.mxu0 %v581
    %1365 = vmatpush1.msra.mxu0 %v580
    %1366 = vmatprep.subr.mxu0 %v587
    %1367 = vmatpush1.msra.mxu0 %v586
    %1368 = vmatprep.subr.mxu0 %v593
    %1369 = vmatpush1.msra.mxu0 %v592
    %1370 = vmatprep.subr.mxu0 %v599
    %1371 = vmatpush1.msra.mxu0 %v598
    %1372 = vmatprep.subr.mxu0 %v605
    %1373 = vmatpush1.msra.mxu0 %v604
    %1374 = vmatprep.subr.mxu0 %v611
    %1375 = vmatpush1.msra.mxu0 %v610
    %1376 = vmatprep.subr.mxu0 %v617
    %1377 = vmatpush1.msra.mxu0 %v616
    %1378 = vmatprep.subr.mxu0 %v623
    %1379 = vmatpush1.msra.mxu0 %v622
    %1380 = vmatprep.subr.mxu0 %v629
    %1381 = vmatpush1.msra.mxu0 %v628
    %1382 = vmatprep.subr.mxu0 %v635
    %1383 = vmatpush1.msra.mxu0 %v634
    %1384 = vmatprep.subr.mxu0 %v641
    %1385 = vmatpush1.msra.mxu0 %v640
    %1386 = vmatprep.subr.mxu0 %v647
    %1387 = vmatpush1.msra.mxu0 %v646
    %1388 = vmatprep.subr.mxu0 %v653
    %1389 = vmatpush1.msra.mxu0 %v652
    %1390 = vmatprep.subr.mxu0 %v659
    %1391 = vmatpush1.msra.mxu0 %v658
    %1392 = vmatprep.subr.mxu0 %v665
    %1393 = vmatpush1.msra.mxu0 %v664
    %1394 = vmatprep.subr.mxu0 %v671
    %1395 = vmatpush1.msra.mxu0 %v670
    %1396 = vmatprep.subr.mxu0 %v677
    %1397 = vmatpush1.msra.mxu0 %v676
    %1398 = vmatprep.subr.mxu0 %v683
    %1399 = vmatpush1.msra.mxu0 %v682
    %1400 = vmatprep.subr.mxu0 %v689
    %1401 = vmatpush1.msra.mxu0 %v688
    %1402 = vmatprep.mubr.f32.mxu0 %v107
    %1403 = vmatmul.mubr.f32.gmra.mrb[0].mxu0 %v106
    %v1404 = vpop.f32.mrb[0].mxu0
    %v1405 = vadd.f32 %v1328, %v1404
    %v1406 = vpop.f32.mrb[0].mxu0
    %v1407 = vadd.f32 %v1330, %v1406
    %1408 = vmatprep.mubr.f32.mxu0 %v113
    %1409 = vmatmul.mubr.f32.gmra.mrb[0].mxu0 %v112
    %v1410 = vpop.f32.mrb[0].mxu0
    %v1411 = vadd.f32 %v1334, %v1410
    %v1412 = vpop.f32.mrb[0].mxu0
    %v1413 = vadd.f32 %v1336, %v1412
    %1414 = vdwg.mxu0
    %v1415 = vld [vmem:[#allocation8] sm:$0xff]
    %v1416 = vld [vmem:[#allocation8 + $0x8] sm:$0xff]
    %v1417 = vld [vmem:[#allocation8 + $0x10] sm:$0xff]
    %v1418 = vld [vmem:[#allocation8 + $0x18] sm:$0xff]
    %v1419 = vld [vmem:[#allocation8 + $0x20] sm:$0xff]
    %v1420 = vld [vmem:[#allocation8 + $0x28] sm:$0xff]
    %v1421 = vld [vmem:[#allocation8 + $0x30] sm:$0xff]
    %v1422 = vld [vmem:[#allocation8 + $0x38] sm:$0xff]
    %v1423 = vld [vmem:[#allocation8 + $0x40] sm:$0xff]
    %v1424 = vld [vmem:[#allocation8 + $0x48] sm:$0xff]
    %v1425 = vld [vmem:[#allocation8 + $0x50] sm:$0xff]
    %v1426 = vld [vmem:[#allocation8 + $0x58] sm:$0xff]
    %v1427 = vld [vmem:[#allocation8 + $0x60] sm:$0xff]
    %v1428 = vld [vmem:[#allocation8 + $0x68] sm:$0xff]
    %v1429 = vld [vmem:[#allocation8 + $0x70] sm:$0xff]
    %v1430 = vld [vmem:[#allocation8 + $0x78] sm:$0xff]
    %v1431 = vld [vmem:[#allocation8 + $0x80] sm:$0xff]
    %v1432 = vld [vmem:[#allocation8 + $0x88] sm:$0xff]
    %v1433 = vld [vmem:[#allocation8 + $0x90] sm:$0xff]
    %v1434 = vld [vmem:[#allocation8 + $0x98] sm:$0xff]
    %v1435 = vld [vmem:[#allocation8 + $0xa0] sm:$0xff]
    %v1436 = vld [vmem:[#allocation8 + $0xa8] sm:$0xff]
    %v1437 = vld [vmem:[#allocation8 + $0xb0] sm:$0xff]
    %v1438 = vld [vmem:[#allocation8 + $0xb8] sm:$0xff]
    %v1439 = vld [vmem:[#allocation8 + $0xc0] sm:$0xff]
    %v1440 = vld [vmem:[#allocation8 + $0xc8] sm:$0xff]
    %v1441 = vld [vmem:[#allocation8 + $0xd0] sm:$0xff]
    %v1442 = vld [vmem:[#allocation8 + $0xd8] sm:$0xff]
    %v1443 = vld [vmem:[#allocation8 + $0xe0] sm:$0xff]
    %v1444 = vld [vmem:[#allocation8 + $0xe8] sm:$0xff]
    %v1445 = vld [vmem:[#allocation8 + $0xf0] sm:$0xff]
    %v1446 = vld [vmem:[#allocation8 + $0xf8] sm:$0xff]
    %v1447 = vld [vmem:[#allocation8 + $0x100] sm:$0xff]
    %v1448 = vld [vmem:[#allocation8 + $0x108] sm:$0xff]
    %v1449 = vld [vmem:[#allocation8 + $0x110] sm:$0xff]
    %v1450 = vld [vmem:[#allocation8 + $0x118] sm:$0xff]
    %v1451 = vld [vmem:[#allocation8 + $0x120] sm:$0xff]
    %v1452 = vld [vmem:[#allocation8 + $0x128] sm:$0xff]
    %v1453 = vld [vmem:[#allocation8 + $0x130] sm:$0xff]
    %v1454 = vld [vmem:[#allocation8 + $0x138] sm:$0xff]
    %v1455 = vld [vmem:[#allocation8 + $0x140] sm:$0xff]
    %v1456 = vld [vmem:[#allocation8 + $0x148] sm:$0xff]
    %v1457 = vld [vmem:[#allocation8 + $0x150] sm:$0xff]
    %v1458 = vld [vmem:[#allocation8 + $0x158] sm:$0xff]
    %v1459 = vld [vmem:[#allocation8 + $0x160] sm:$0xff]
    %v1460 = vld [vmem:[#allocation8 + $0x168] sm:$0xff]
    %v1461 = vld [vmem:[#allocation8 + $0x170] sm:$0xff]
    %v1462 = vld [vmem:[#allocation8 + $0x178] sm:$0xff]
    %v1463 = vld [vmem:[#allocation8 + $0x180] sm:$0xff]
    %v1464 = vld [vmem:[#allocation8 + $0x188] sm:$0xff]
    %v1465 = vld [vmem:[#allocation8 + $0x190] sm:$0xff]
    %v1466 = vld [vmem:[#allocation8 + $0x198] sm:$0xff]
    %v1467 = vld [vmem:[#allocation8 + $0x1a0] sm:$0xff]
    %v1468 = vld [vmem:[#allocation8 + $0x1a8] sm:$0xff]
    %v1469 = vld [vmem:[#allocation8 + $0x1b0] sm:$0xff]
    %v1470 = vld [vmem:[#allocation8 + $0x1b8] sm:$0xff]
    %v1471 = vld [vmem:[#allocation8 + $0x1c0] sm:$0xff]
    %v1472 = vld [vmem:[#allocation8 + $0x1c8] sm:$0xff]
    %v1473 = vld [vmem:[#allocation8 + $0x1d0] sm:$0xff]
    %v1474 = vld [vmem:[#allocation8 + $0x1d8] sm:$0xff]
    %v1475 = vld [vmem:[#allocation8 + $0x1e0] sm:$0xff]
    %v1476 = vld [vmem:[#allocation8 + $0x1e8] sm:$0xff]
    %v1477 = vld [vmem:[#allocation8 + $0x1f0] sm:$0xff]
    %v1478 = vld [vmem:[#allocation8 + $0x1f8] sm:$0xff]
    %v1479 = vld [vmem:[#allocation8 + $0x200] sm:$0xff]
    %v1480 = vld [vmem:[#allocation8 + $0x208] sm:$0xff]
    %v1481 = vld [vmem:[#allocation8 + $0x210] sm:$0xff]
    %v1482 = vld [vmem:[#allocation8 + $0x218] sm:$0xff]
    %v1483 = vld [vmem:[#allocation8 + $0x220] sm:$0xff]
    %v1484 = vld [vmem:[#allocation8 + $0x228] sm:$0xff]
    %v1485 = vld [vmem:[#allocation8 + $0x230] sm:$0xff]
    %v1486 = vld [vmem:[#allocation8 + $0x238] sm:$0xff]
    %v1487 = vld [vmem:[#allocation8 + $0x240] sm:$0xff]
    %v1488 = vld [vmem:[#allocation8 + $0x248] sm:$0xff]
    %v1489 = vld [vmem:[#allocation8 + $0x250] sm:$0xff]
    %v1490 = vld [vmem:[#allocation8 + $0x258] sm:$0xff]
    %v1491 = vld [vmem:[#allocation8 + $0x260] sm:$0xff]
    %v1492 = vld [vmem:[#allocation8 + $0x268] sm:$0xff]
    %v1493 = vld [vmem:[#allocation8 + $0x270] sm:$0xff]
    %v1494 = vld [vmem:[#allocation8 + $0x278] sm:$0xff]
    %v1495 = vld [vmem:[#allocation8 + $0x280] sm:$0xff]
    %v1496 = vld [vmem:[#allocation8 + $0x288] sm:$0xff]
    %v1497 = vld [vmem:[#allocation8 + $0x290] sm:$0xff]
    %v1498 = vld [vmem:[#allocation8 + $0x298] sm:$0xff]
    %v1499 = vld [vmem:[#allocation8 + $0x2a0] sm:$0xff]
    %v1500 = vld [vmem:[#allocation8 + $0x2a8] sm:$0xff]
    %v1501 = vld [vmem:[#allocation8 + $0x2b0] sm:$0xff]
    %v1502 = vld [vmem:[#allocation8 + $0x2b8] sm:$0xff]
    %v1503 = vld [vmem:[#allocation8 + $0x2c0] sm:$0xff]
    %v1504 = vld [vmem:[#allocation8 + $0x2c8] sm:$0xff]
    %v1505 = vld [vmem:[#allocation8 + $0x2d0] sm:$0xff]
    %v1506 = vld [vmem:[#allocation8 + $0x2d8] sm:$0xff]
    %v1507 = vld [vmem:[#allocation8 + $0x2e0] sm:$0xff]
    %v1508 = vld [vmem:[#allocation8 + $0x2e8] sm:$0xff]
    %v1509 = vld [vmem:[#allocation8 + $0x2f0] sm:$0xff]
    %v1510 = vld [vmem:[#allocation8 + $0x2f8] sm:$0xff]
    %v1511 = vld [vmem:[#allocation10] sm:$0x1]
    %v1513 = vlaneseq
    %v1514 = vshrl.u32 %v1513, 7
    %v1515 = vsub.s32 0, %v1514
    %v1516 = vrot.slane %v1511, %v1515
    %1518 = vmatprep.subr.mxu0 %v1416
    %1519 = vmatpush1.xpose.msra.mxu0 %v1415
    %1520 = vmatprep.subr.mxu0 %v1422
    %1521 = vmatpush1.xpose.msra.mxu0 %v1421
    %1522 = vmatprep.subr.mxu0 %v1428
    %1523 = vmatpush1.xpose.msra.mxu0 %v1427
    %1524 = vmatprep.subr.mxu0 %v1434
    %1525 = vmatpush1.xpose.msra.mxu0 %v1433
    %1526 = vmatprep.subr.mxu0 %v1440
    %1527 = vmatpush1.xpose.msra.mxu0 %v1439
    %1528 = vmatprep.subr.mxu0 %v1446
    %1529 = vmatpush1.xpose.msra.mxu0 %v1445
    %1530 = vmatprep.subr.mxu0 %v1452
    %1531 = vmatpush1.xpose.msra.mxu0 %v1451
    %1532 = vmatprep.subr.mxu0 %v1458
    %1533 = vmatpush1.xpose.msra.mxu0 %v1457
    %1534 = vmatprep.subr.mxu0 %v1464
    %1535 = vmatpush1.xpose.msra.mxu0 %v1463
    %1536 = vmatprep.subr.mxu0 %v1470
    %1537 = vmatpush1.xpose.msra.mxu0 %v1469
    %1538 = vmatprep.subr.mxu0 %v1476
    %1539 = vmatpush1.xpose.msra.mxu0 %v1475
    %1540 = vmatprep.subr.mxu0 %v1482
    %1541 = vmatpush1.xpose.msra.mxu0 %v1481
    %1542 = vmatprep.subr.mxu0 %v1488
    %1543 = vmatpush1.xpose.msra.mxu0 %v1487
    %1544 = vmatprep.subr.mxu0 %v1494
    %1545 = vmatpush1.xpose.msra.mxu0 %v1493
    %1546 = vmatprep.subr.mxu0 %v1500
    %1547 = vmatpush1.xpose.msra.mxu0 %v1499
    %1548 = vmatprep.subr.mxu0 %v1506
    %1549 = vmatpush1.xpose.msra.mxu0 %v1505
    %1550 = vmatprep.subr.mxu0 0.0
    %1551 = vmatpush1.xpose.msra.mxu0 0.0
    %1552 = vmatprep.subr.mxu0 0.0
    %1553 = vmatpush1.xpose.msra.mxu0 0.0
    %1554 = vmatprep.subr.mxu0 0.0
    %1555 = vmatpush1.xpose.msra.mxu0 0.0
    %1556 = vmatprep.subr.mxu0 0.0
    %1557 = vmatpush1.xpose.msra.mxu0 0.0
    %1558 = vmatprep.subr.mxu0 0.0
    %1559 = vmatpush1.xpose.msra.mxu0 0.0
    %1560 = vmatprep.subr.mxu0 0.0
    %1561 = vmatpush1.xpose.msra.mxu0 0.0
    %1562 = vmatprep.subr.mxu0 0.0
    %1563 = vmatpush1.xpose.msra.mxu0 0.0
    %1564 = vmatprep.subr.mxu0 0.0
    %1565 = vmatpush1.xpose.msra.mxu0 0.0
    %1566 = vmatprep.subr.mxu0 0.0
    %1567 = vmatpush1.xpose.msra.mxu0 0.0
    %1568 = vmatprep.subr.mxu0 0.0
    %1569 = vmatpush1.xpose.msra.mxu0 0.0
    %1570 = vmatprep.subr.mxu0 0.0
    %1571 = vmatpush1.xpose.msra.mxu0 0.0
    %1572 = vmatprep.subr.mxu0 0.0
    %1573 = vmatpush1.xpose.msra.mxu0 0.0
    %1574 = vmatprep.subr.mxu0 0.0
    %1575 = vmatpush1.xpose.msra.mxu0 0.0
    %1576 = vmatprep.subr.mxu0 0.0
    %1577 = vmatpush1.xpose.msra.mxu0 0.0
    %1578 = vmatprep.subr.mxu0 0.0
    %1579 = vmatpush1.xpose.msra.mxu0 0.0
    %1580 = vmatprep.subr.mxu0 0.0
    %1581 = vmatpush1.xpose.msra.mxu0 0.0
    %1582 = vmatprep.mubr.f32.mxu0 %v945
    %1583 = vmatmul.mubr.f32.gmra.mrb[0].mxu0 %v943
    %v1584 = vpop.f32.mrb[0].mxu0
    %v1585 = vadd.f32 %v1516, %v1584
    %v1586 = vpop.f32.mrb[0].mxu0
    %1587 = vmatprep.mubr.f32.mxu0 %v951
    %1588 = vmatmul.mubr.f32.gmra.mrb[0].mxu0 %v949
    %v1589 = vpop.f32.mrb[0].mxu0
    %v1590 = vadd.f32 %v1516, %v1589
    %v1591 = vpop.f32.mrb[0].mxu0
    %1592 = vdwg.mxu0
    %1593 = vmatprep.subr.mxu0 %v1418
    %1594 = vmatpush1.xpose.msra.mxu0 %v1417
    %1595 = vmatprep.subr.mxu0 %v1424
    %1596 = vmatpush1.xpose.msra.mxu0 %v1423
    %1597 = vmatprep.subr.mxu0 %v1430
    %1598 = vmatpush1.xpose.msra.mxu0 %v1429
    %1599 = vmatprep.subr.mxu0 %v1436
    %1600 = vmatpush1.xpose.msra.mxu0 %v1435
    %1601 = vmatprep.subr.mxu0 %v1442
    %1602 = vmatpush1.xpose.msra.mxu0 %v1441
    %1603 = vmatprep.subr.mxu0 %v1448
    %1604 = vmatpush1.xpose.msra.mxu0 %v1447
    %1605 = vmatprep.subr.mxu0 %v1454
    %1606 = vmatpush1.xpose.msra.mxu0 %v1453
    %1607 = vmatprep.subr.mxu0 %v1460
    %1608 = vmatpush1.xpose.msra.mxu0 %v1459
    %1609 = vmatprep.subr.mxu0 %v1466
    %1610 = vmatpush1.xpose.msra.mxu0 %v1465
    %1611 = vmatprep.subr.mxu0 %v1472
    %1612 = vmatpush1.xpose.msra.mxu0 %v1471
    %1613 = vmatprep.subr.mxu0 %v1478
    %1614 = vmatpush1.xpose.msra.mxu0 %v1477
    %1615 = vmatprep.subr.mxu0 %v1484
    %1616 = vmatpush1.xpose.msra.mxu0 %v1483
    %1617 = vmatprep.subr.mxu0 %v1490
    %1618 = vmatpush1.xpose.msra.mxu0 %v1489
    %1619 = vmatprep.subr.mxu0 %v1496
    %1620 = vmatpush1.xpose.msra.mxu0 %v1495
    %1621 = vmatprep.subr.mxu0 %v1502
    %1622 = vmatpush1.xpose.msra.mxu0 %v1501
    %1623 = vmatprep.subr.mxu0 %v1508
    %1624 = vmatpush1.xpose.msra.mxu0 %v1507
    %1625 = vmatprep.subr.mxu0 0.0
    %1626 = vmatpush1.xpose.msra.mxu0 0.0
    %1627 = vmatprep.subr.mxu0 0.0
    %1628 = vmatpush1.xpose.msra.mxu0 0.0
    %1629 = vmatprep.subr.mxu0 0.0
    %1630 = vmatpush1.xpose.msra.mxu0 0.0
    %1631 = vmatprep.subr.mxu0 0.0
    %1632 = vmatpush1.xpose.msra.mxu0 0.0
    %1633 = vmatprep.subr.mxu0 0.0
    %1634 = vmatpush1.xpose.msra.mxu0 0.0
    %1635 = vmatprep.subr.mxu0 0.0
    %1636 = vmatpush1.xpose.msra.mxu0 0.0
    %1637 = vmatprep.subr.mxu0 0.0
    %1638 = vmatpush1.xpose.msra.mxu0 0.0
    %1639 = vmatprep.subr.mxu0 0.0
    %1640 = vmatpush1.xpose.msra.mxu0 0.0
    %1641 = vmatprep.subr.mxu0 0.0
    %1642 = vmatpush1.xpose.msra.mxu0 0.0
    %1643 = vmatprep.subr.mxu0 0.0
    %1644 = vmatpush1.xpose.msra.mxu0 0.0
    %1645 = vmatprep.subr.mxu0 0.0
    %1646 = vmatpush1.xpose.msra.mxu0 0.0
    %1647 = vmatprep.subr.mxu0 0.0
    %1648 = vmatpush1.xpose.msra.mxu0 0.0
    %1649 = vmatprep.subr.mxu0 0.0
    %1650 = vmatpush1.xpose.msra.mxu0 0.0
    %1651 = vmatprep.subr.mxu0 0.0
    %1652 = vmatpush1.xpose.msra.mxu0 0.0
    %1653 = vmatprep.subr.mxu0 0.0
    %1654 = vmatpush1.xpose.msra.mxu0 0.0
    %1655 = vmatprep.subr.mxu0 0.0
    %1656 = vmatpush1.xpose.msra.mxu0 0.0
    %1657 = vmatprep.mubr.f32.mxu0 %v1176
    %1658 = vmatmul.mubr.f32.gmra.mrb[0].mxu0 %v1174
    %v1659 = vpop.f32.mrb[0].mxu0
    %v1660 = vadd.f32 %v1585, %v1659
    %v1661 = vpop.f32.mrb[0].mxu0
    %1662 = vmatprep.mubr.f32.mxu0 %v1182
    %1663 = vmatmul.mubr.f32.gmra.mrb[0].mxu0 %v1180
    %v1664 = vpop.f32.mrb[0].mxu0
    %v1665 = vadd.f32 %v1590, %v1664
    %v1666 = vpop.f32.mrb[0].mxu0
    %1667 = vdwg.mxu0
    %1668 = vmatprep.subr.mxu0 %v1420
    %1669 = vmatpush1.xpose.msra.mxu0 %v1419
    %1670 = vmatprep.subr.mxu0 %v1426
    %1671 = vmatpush1.xpose.msra.mxu0 %v1425
    %1672 = vmatprep.subr.mxu0 %v1432
    %1673 = vmatpush1.xpose.msra.mxu0 %v1431
    %1674 = vmatprep.subr.mxu0 %v1438
    %1675 = vmatpush1.xpose.msra.mxu0 %v1437
    %1676 = vmatprep.subr.mxu0 %v1444
    %1677 = vmatpush1.xpose.msra.mxu0 %v1443
    %1678 = vmatprep.subr.mxu0 %v1450
    %1679 = vmatpush1.xpose.msra.mxu0 %v1449
    %1680 = vmatprep.subr.mxu0 %v1456
    %1681 = vmatpush1.xpose.msra.mxu0 %v1455
    %1682 = vmatprep.subr.mxu0 %v1462
    %1683 = vmatpush1.xpose.msra.mxu0 %v1461
    %1684 = vmatprep.subr.mxu0 %v1468
    %1685 = vmatpush1.xpose.msra.mxu0 %v1467
    %1686 = vmatprep.subr.mxu0 %v1474
    %1687 = vmatpush1.xpose.msra.mxu0 %v1473
    %1688 = vmatprep.subr.mxu0 %v1480
    %1689 = vmatpush1.xpose.msra.mxu0 %v1479
    %1690 = vmatprep.subr.mxu0 %v1486
    %1691 = vmatpush1.xpose.msra.mxu0 %v1485
    %1692 = vmatprep.subr.mxu0 %v1492
    %1693 = vmatpush1.xpose.msra.mxu0 %v1491
    %1694 = vmatprep.subr.mxu0 %v1498
    %1695 = vmatpush1.xpose.msra.mxu0 %v1497
    %1696 = vmatprep.subr.mxu0 %v1504
    %1697 = vmatpush1.xpose.msra.mxu0 %v1503
    %1698 = vmatprep.subr.mxu0 %v1510
    %1699 = vmatpush1.xpose.msra.mxu0 %v1509
    %1700 = vmatprep.subr.mxu0 0.0
    %1701 = vmatpush1.xpose.msra.mxu0 0.0
    %1702 = vmatprep.subr.mxu0 0.0
    %1703 = vmatpush1.xpose.msra.mxu0 0.0
    %1704 = vmatprep.subr.mxu0 0.0
    %1705 = vmatpush1.xpose.msra.mxu0 0.0
    %1706 = vmatprep.subr.mxu0 0.0
    %1707 = vmatpush1.xpose.msra.mxu0 0.0
    %1708 = vmatprep.subr.mxu0 0.0
    %1709 = vmatpush1.xpose.msra.mxu0 0.0
    %1710 = vmatprep.subr.mxu0 0.0
    %1711 = vmatpush1.xpose.msra.mxu0 0.0
    %1712 = vmatprep.subr.mxu0 0.0
    %1713 = vmatpush1.xpose.msra.mxu0 0.0
    %1714 = vmatprep.subr.mxu0 0.0
    %1715 = vmatpush1.xpose.msra.mxu0 0.0
    %1716 = vmatprep.subr.mxu0 0.0
    %1717 = vmatpush1.xpose.msra.mxu0 0.0
    %1718 = vmatprep.subr.mxu0 0.0
    %1719 = vmatpush1.xpose.msra.mxu0 0.0
    %1720 = vmatprep.subr.mxu0 0.0
    %1721 = vmatpush1.xpose.msra.mxu0 0.0
    %1722 = vmatprep.subr.mxu0 0.0
    %1723 = vmatpush1.xpose.msra.mxu0 0.0
    %1724 = vmatprep.subr.mxu0 0.0
    %1725 = vmatpush1.xpose.msra.mxu0 0.0
    %1726 = vmatprep.subr.mxu0 0.0
    %1727 = vmatpush1.xpose.msra.mxu0 0.0
    %1728 = vmatprep.subr.mxu0 0.0
    %1729 = vmatpush1.xpose.msra.mxu0 0.0
    %1730 = vmatprep.subr.mxu0 0.0
    %1731 = vmatpush1.xpose.msra.mxu0 0.0
    %1732 = vmatprep.mubr.f32.mxu0 %v1407
    %1733 = vmatmul.mubr.f32.gmra.mrb[0].mxu0 %v1405
    %v1734 = vpop.f32.mrb[0].mxu0
    %v1735 = vadd.f32 %v1660, %v1734
    %v1736 = vpop.f32.mrb[0].mxu0
    %1737 = vmatprep.mubr.f32.mxu0 %v1413
    %1738 = vmatmul.mubr.f32.gmra.mrb[0].mxu0 %v1411
    %v1739 = vpop.f32.mrb[0].mxu0
    %v1740 = vadd.f32 %v1665, %v1739
    %v1741 = vpop.f32.mrb[0].mxu0
    %1742 = vdwg.mxu0
    %1743 = vmax.xlane.f32.xlu0 %v1735
    %v1744 = vpop.xlane.xlu0 %1743
    %1745 = vmax.xlane.f32.xlu0 %v1740
    %v1746 = vpop.xlane.xlu0 %1745
    %v1747 = vsub.f32 %v1735, %v1744
    %v1748 = vsub.f32 %v1740, %v1746
    %v1749 = vmul.f32 %v1747, 1.442695
    %v1750 = vpow.pop %v1749
    %v1751 = vmul.f32 %v1748, 1.442695
    %v1752 = vpow.pop %v1751
    %1753 = vadd.xlane.f32.xlu0 %v1750
    %v1754 = vpop.xlane.xlu0 %1753
    %1755 = vadd.xlane.f32.xlu0 %v1752
    %v1756 = vpop.xlane.xlu0 %1755
    %v1757 = vrcp.pop %v1754
    %v1758 = vrcp.pop %v1756
    %v1759 = vmul.f32 %v1750, %v1757
    %v1760 = vmul.f32 %v1752, %v1758
    %v1761 = vld [vmem:[#allocation11] sm:$0xff]
    %v1762 = vld [vmem:[#allocation11 + $0x8] sm:$0xff]
    %v1763 = vld [vmem:[#allocation11 + $0x10] sm:$0xff]
    %v1764 = vld [vmem:[#allocation11 + $0x18] sm:$0xff]
    %v1765 = vld [vmem:[#allocation11 + $0x20] sm:$0xff]
    %v1766 = vld [vmem:[#allocation11 + $0x28] sm:$0xff]
    %v1767 = vld [vmem:[#allocation11 + $0x30] sm:$0xff]
    %v1768 = vld [vmem:[#allocation11 + $0x38] sm:$0xff]
    %v1769 = vld [vmem:[#allocation11 + $0x40] sm:$0xff]
    %v1770 = vld [vmem:[#allocation11 + $0x48] sm:$0xff]
    %v1771 = vld [vmem:[#allocation11 + $0x50] sm:$0xff]
    %v1772 = vld [vmem:[#allocation11 + $0x58] sm:$0xff]
    %v1773 = vld [vmem:[#allocation11 + $0x60] sm:$0xff]
    %v1774 = vld [vmem:[#allocation11 + $0x68] sm:$0xff]
    %v1775 = vld [vmem:[#allocation11 + $0x70] sm:$0xff]
    %v1776 = vld [vmem:[#allocation11 + $0x78] sm:$0xff]
    %v1777 = vld [vmem:[#allocation11 + $0x80] sm:$0xff]
    %v1778 = vld [vmem:[#allocation11 + $0x88] sm:$0xff]
    %v1779 = vld [vmem:[#allocation11 + $0x90] sm:$0xff]
    %v1780 = vld [vmem:[#allocation11 + $0x98] sm:$0xff]
    %v1781 = vld [vmem:[#allocation11 + $0xa0] sm:$0xff]
    %v1782 = vld [vmem:[#allocation11 + $0xa8] sm:$0xff]
    %v1783 = vld [vmem:[#allocation11 + $0xb0] sm:$0xff]
    %v1784 = vld [vmem:[#allocation11 + $0xb8] sm:$0xff]
    %v1785 = vld [vmem:[#allocation11 + $0xc0] sm:$0xff]
    %v1786 = vld [vmem:[#allocation11 + $0xc8] sm:$0xff]
    %v1787 = vld [vmem:[#allocation11 + $0xd0] sm:$0xff]
    %v1788 = vld [vmem:[#allocation11 + $0xd8] sm:$0xff]
    %v1789 = vld [vmem:[#allocation11 + $0xe0] sm:$0xff]
    %v1790 = vld [vmem:[#allocation11 + $0xe8] sm:$0xff]
    %v1791 = vld [vmem:[#allocation11 + $0xf0] sm:$0xff]
    %v1792 = vld [vmem:[#allocation11 + $0xf8] sm:$0xff]
    %v1793 = vld [vmem:[#allocation11 + $0x100] sm:$0xff]
    %v1794 = vld [vmem:[#allocation11 + $0x108] sm:$0xff]
    %v1795 = vld [vmem:[#allocation11 + $0x110] sm:$0xff]
    %v1796 = vld [vmem:[#allocation11 + $0x118] sm:$0xff]
    %v1797 = vld [vmem:[#allocation11 + $0x120] sm:$0xff]
    %v1798 = vld [vmem:[#allocation11 + $0x128] sm:$0xff]
    %v1799 = vld [vmem:[#allocation11 + $0x130] sm:$0xff]
    %v1800 = vld [vmem:[#allocation11 + $0x138] sm:$0xff]
    %v1801 = vld [vmem:[#allocation11 + $0x140] sm:$0xff]
    %v1802 = vld [vmem:[#allocation11 + $0x148] sm:$0xff]
    %v1803 = vld [vmem:[#allocation11 + $0x150] sm:$0xff]
    %v1804 = vld [vmem:[#allocation11 + $0x158] sm:$0xff]
    %v1805 = vld [vmem:[#allocation11 + $0x160] sm:$0xff]
    %v1806 = vld [vmem:[#allocation11 + $0x168] sm:$0xff]
    %v1807 = vld [vmem:[#allocation11 + $0x170] sm:$0xff]
    %v1808 = vld [vmem:[#allocation11 + $0x178] sm:$0xff]
    %v1809 = vld [vmem:[#allocation11 + $0x180] sm:$0xff]
    %v1810 = vld [vmem:[#allocation11 + $0x188] sm:$0xff]
    %v1811 = vld [vmem:[#allocation11 + $0x190] sm:$0xff]
    %v1812 = vld [vmem:[#allocation11 + $0x198] sm:$0xff]
    %v1813 = vld [vmem:[#allocation11 + $0x1a0] sm:$0xff]
    %v1814 = vld [vmem:[#allocation11 + $0x1a8] sm:$0xff]
    %v1815 = vld [vmem:[#allocation11 + $0x1b0] sm:$0xff]
    %v1816 = vld [vmem:[#allocation11 + $0x1b8] sm:$0xff]
    %v1817 = vld [vmem:[#allocation11 + $0x1c0] sm:$0xff]
    %v1818 = vld [vmem:[#allocation11 + $0x1c8] sm:$0xff]
    %v1819 = vld [vmem:[#allocation11 + $0x1d0] sm:$0xff]
    %v1820 = vld [vmem:[#allocation11 + $0x1d8] sm:$0xff]
    %v1821 = vld [vmem:[#allocation11 + $0x1e0] sm:$0xff]
    %v1822 = vld [vmem:[#allocation11 + $0x1e8] sm:$0xff]
    %v1823 = vld [vmem:[#allocation11 + $0x1f0] sm:$0xff]
    %v1824 = vld [vmem:[#allocation11 + $0x1f8] sm:$0xff]
    %v1825 = vld [vmem:[#allocation11 + $0x200] sm:$0xff]
    %v1826 = vld [vmem:[#allocation11 + $0x208] sm:$0xff]
    %v1827 = vld [vmem:[#allocation11 + $0x210] sm:$0xff]
    %v1828 = vld [vmem:[#allocation11 + $0x218] sm:$0xff]
    %v1829 = vld [vmem:[#allocation11 + $0x220] sm:$0xff]
    %v1830 = vld [vmem:[#allocation11 + $0x228] sm:$0xff]
    %v1831 = vld [vmem:[#allocation11 + $0x230] sm:$0xff]
    %v1832 = vld [vmem:[#allocation11 + $0x238] sm:$0xff]
    %v1833 = vld [vmem:[#allocation11 + $0x240] sm:$0xff]
    %v1834 = vld [vmem:[#allocation11 + $0x248] sm:$0xff]
    %v1835 = vld [vmem:[#allocation11 + $0x250] sm:$0xff]
    %v1836 = vld [vmem:[#allocation11 + $0x258] sm:$0xff]
    %v1837 = vld [vmem:[#allocation11 + $0x260] sm:$0xff]
    %v1838 = vld [vmem:[#allocation11 + $0x268] sm:$0xff]
    %v1839 = vld [vmem:[#allocation11 + $0x270] sm:$0xff]
    %v1840 = vld [vmem:[#allocation11 + $0x278] sm:$0xff]
    %v1841 = vld [vmem:[#allocation11 + $0x280] sm:$0xff]
    %v1842 = vld [vmem:[#allocation11 + $0x288] sm:$0xff]
    %v1843 = vld [vmem:[#allocation11 + $0x290] sm:$0xff]
    %v1844 = vld [vmem:[#allocation11 + $0x298] sm:$0xff]
    %v1845 = vld [vmem:[#allocation11 + $0x2a0] sm:$0xff]
    %v1846 = vld [vmem:[#allocation11 + $0x2a8] sm:$0xff]
    %v1847 = vld [vmem:[#allocation11 + $0x2b0] sm:$0xff]
    %v1848 = vld [vmem:[#allocation11 + $0x2b8] sm:$0xff]
    %v1849 = vld [vmem:[#allocation11 + $0x2c0] sm:$0xff]
    %v1850 = vld [vmem:[#allocation11 + $0x2c8] sm:$0xff]
    %v1851 = vld [vmem:[#allocation11 + $0x2d0] sm:$0xff]
    %v1852 = vld [vmem:[#allocation11 + $0x2d8] sm:$0xff]
    %v1853 = vld [vmem:[#allocation11 + $0x2e0] sm:$0xff]
    %v1854 = vld [vmem:[#allocation11 + $0x2e8] sm:$0xff]
    %v1855 = vld [vmem:[#allocation11 + $0x2f0] sm:$0xff]
    %v1856 = vld [vmem:[#allocation11 + $0x2f8] sm:$0xff]
    %v1857 = vld [vmem:[#allocation11 + $0x300] sm:$0xff]
    %v1858 = vld [vmem:[#allocation11 + $0x308] sm:$0xff]
    %v1859 = vld [vmem:[#allocation11 + $0x310] sm:$0xff]
    %v1860 = vld [vmem:[#allocation11 + $0x318] sm:$0xff]
    %v1861 = vld [vmem:[#allocation11 + $0x320] sm:$0xff]
    %v1862 = vld [vmem:[#allocation11 + $0x328] sm:$0xff]
    %v1863 = vld [vmem:[#allocation11 + $0x330] sm:$0xff]
    %v1864 = vld [vmem:[#allocation11 + $0x338] sm:$0xff]
    %v1865 = vld [vmem:[#allocation11 + $0x340] sm:$0xff]
    %v1866 = vld [vmem:[#allocation11 + $0x348] sm:$0xff]
    %v1867 = vld [vmem:[#allocation11 + $0x350] sm:$0xff]
    %v1868 = vld [vmem:[#allocation11 + $0x358] sm:$0xff]
    %v1869 = vld [vmem:[#allocation11 + $0x360] sm:$0xff]
    %v1870 = vld [vmem:[#allocation11 + $0x368] sm:$0xff]
    %v1871 = vld [vmem:[#allocation11 + $0x370] sm:$0xff]
    %v1872 = vld [vmem:[#allocation11 + $0x378] sm:$0xff]
    %v1873 = vld [vmem:[#allocation11 + $0x380] sm:$0xff]
    %v1874 = vld [vmem:[#allocation11 + $0x388] sm:$0xff]
    %v1875 = vld [vmem:[#allocation11 + $0x390] sm:$0xff]
    %v1876 = vld [vmem:[#allocation11 + $0x398] sm:$0xff]
    %v1877 = vld [vmem:[#allocation11 + $0x3a0] sm:$0xff]
    %v1878 = vld [vmem:[#allocation11 + $0x3a8] sm:$0xff]
    %v1879 = vld [vmem:[#allocation11 + $0x3b0] sm:$0xff]
    %v1880 = vld [vmem:[#allocation11 + $0x3b8] sm:$0xff]
    %v1881 = vld [vmem:[#allocation11 + $0x3c0] sm:$0xff]
    %v1882 = vld [vmem:[#allocation11 + $0x3c8] sm:$0xff]
    %v1883 = vld [vmem:[#allocation11 + $0x3d0] sm:$0xff]
    %v1884 = vld [vmem:[#allocation11 + $0x3d8] sm:$0xff]
    %v1885 = vld [vmem:[#allocation11 + $0x3e0] sm:$0xff]
    %v1886 = vld [vmem:[#allocation11 + $0x3e8] sm:$0xff]
    %v1887 = vld [vmem:[#allocation11 + $0x3f0] sm:$0xff]
    %v1888 = vld [vmem:[#allocation11 + $0x3f8] sm:$0xff]
    %v1889 = vld [vmem:[#allocation11 + $0x400] sm:$0xff]
    %v1890 = vld [vmem:[#allocation11 + $0x408] sm:$0xff]
    %v1891 = vld [vmem:[#allocation11 + $0x410] sm:$0xff]
    %v1892 = vld [vmem:[#allocation11 + $0x418] sm:$0xff]
    %v1893 = vld [vmem:[#allocation11 + $0x420] sm:$0xff]
    %v1894 = vld [vmem:[#allocation11 + $0x428] sm:$0xff]
    %v1895 = vld [vmem:[#allocation11 + $0x430] sm:$0xff]
    %v1896 = vld [vmem:[#allocation11 + $0x438] sm:$0xff]
    %v1897 = vld [vmem:[#allocation11 + $0x440] sm:$0xff]
    %v1898 = vld [vmem:[#allocation11 + $0x448] sm:$0xff]
    %v1899 = vld [vmem:[#allocation11 + $0x450] sm:$0xff]
    %v1900 = vld [vmem:[#allocation11 + $0x458] sm:$0xff]
    %v1901 = vld [vmem:[#allocation11 + $0x460] sm:$0xff]
    %v1902 = vld [vmem:[#allocation11 + $0x468] sm:$0xff]
    %v1903 = vld [vmem:[#allocation11 + $0x470] sm:$0xff]
    %v1904 = vld [vmem:[#allocation11 + $0x478] sm:$0xff]
    %v1905 = vld [vmem:[#allocation11 + $0x480] sm:$0xff]
    %v1906 = vld [vmem:[#allocation11 + $0x488] sm:$0xff]
    %v1907 = vld [vmem:[#allocation11 + $0x490] sm:$0xff]
    %v1908 = vld [vmem:[#allocation11 + $0x498] sm:$0xff]
    %v1909 = vld [vmem:[#allocation11 + $0x4a0] sm:$0xff]
    %v1910 = vld [vmem:[#allocation11 + $0x4a8] sm:$0xff]
    %v1911 = vld [vmem:[#allocation11 + $0x4b0] sm:$0xff]
    %v1912 = vld [vmem:[#allocation11 + $0x4b8] sm:$0xff]
    %v1913 = vld [vmem:[#allocation11 + $0x4c0] sm:$0xff]
    %v1914 = vld [vmem:[#allocation11 + $0x4c8] sm:$0xff]
    %v1915 = vld [vmem:[#allocation11 + $0x4d0] sm:$0xff]
    %v1916 = vld [vmem:[#allocation11 + $0x4d8] sm:$0xff]
    %v1917 = vld [vmem:[#allocation11 + $0x4e0] sm:$0xff]
    %v1918 = vld [vmem:[#allocation11 + $0x4e8] sm:$0xff]
    %v1919 = vld [vmem:[#allocation11 + $0x4f0] sm:$0xff]
    %v1920 = vld [vmem:[#allocation11 + $0x4f8] sm:$0xff]
    %v1921 = vld [vmem:[#allocation11 + $0x500] sm:$0xff]
    %v1922 = vld [vmem:[#allocation11 + $0x508] sm:$0xff]
    %v1923 = vld [vmem:[#allocation11 + $0x510] sm:$0xff]
    %v1924 = vld [vmem:[#allocation11 + $0x518] sm:$0xff]
    %v1925 = vld [vmem:[#allocation11 + $0x520] sm:$0xff]
    %v1926 = vld [vmem:[#allocation11 + $0x528] sm:$0xff]
    %v1927 = vld [vmem:[#allocation11 + $0x530] sm:$0xff]
    %v1928 = vld [vmem:[#allocation11 + $0x538] sm:$0xff]
    %v1929 = vld [vmem:[#allocation11 + $0x540] sm:$0xff]
    %v1930 = vld [vmem:[#allocation11 + $0x548] sm:$0xff]
    %v1931 = vld [vmem:[#allocation11 + $0x550] sm:$0xff]
    %v1932 = vld [vmem:[#allocation11 + $0x558] sm:$0xff]
    %v1933 = vld [vmem:[#allocation11 + $0x560] sm:$0xff]
    %v1934 = vld [vmem:[#allocation11 + $0x568] sm:$0xff]
    %v1935 = vld [vmem:[#allocation11 + $0x570] sm:$0xff]
    %v1936 = vld [vmem:[#allocation11 + $0x578] sm:$0xff]
    %v1937 = vld [vmem:[#allocation11 + $0x580] sm:$0xff]
    %v1938 = vld [vmem:[#allocation11 + $0x588] sm:$0xff]
    %v1939 = vld [vmem:[#allocation11 + $0x590] sm:$0xff]
    %v1940 = vld [vmem:[#allocation11 + $0x598] sm:$0xff]
    %v1941 = vld [vmem:[#allocation11 + $0x5a0] sm:$0xff]
    %v1942 = vld [vmem:[#allocation11 + $0x5a8] sm:$0xff]
    %v1943 = vld [vmem:[#allocation11 + $0x5b0] sm:$0xff]
    %v1944 = vld [vmem:[#allocation11 + $0x5b8] sm:$0xff]
    %v1945 = vld [vmem:[#allocation11 + $0x5c0] sm:$0xff]
    %v1946 = vld [vmem:[#allocation11 + $0x5c8] sm:$0xff]
    %v1947 = vld [vmem:[#allocation11 + $0x5d0] sm:$0xff]
    %v1948 = vld [vmem:[#allocation11 + $0x5d8] sm:$0xff]
    %v1949 = vld [vmem:[#allocation11 + $0x5e0] sm:$0xff]
    %v1950 = vld [vmem:[#allocation11 + $0x5e8] sm:$0xff]
    %v1951 = vld [vmem:[#allocation11 + $0x5f0] sm:$0xff]
    %v1952 = vld [vmem:[#allocation11 + $0x5f8] sm:$0xff]
    %v1953 = vld [vmem:[#allocation11 + $0x600] sm:$0xff]
    %v1954 = vld [vmem:[#allocation11 + $0x608] sm:$0xff]
    %v1955 = vld [vmem:[#allocation11 + $0x610] sm:$0xff]
    %v1956 = vld [vmem:[#allocation11 + $0x618] sm:$0xff]
    %v1957 = vld [vmem:[#allocation11 + $0x620] sm:$0xff]
    %v1958 = vld [vmem:[#allocation11 + $0x628] sm:$0xff]
    %v1959 = vld [vmem:[#allocation11 + $0x630] sm:$0xff]
    %v1960 = vld [vmem:[#allocation11 + $0x638] sm:$0xff]
    %v1961 = vld [vmem:[#allocation11 + $0x640] sm:$0xff]
    %v1962 = vld [vmem:[#allocation11 + $0x648] sm:$0xff]
    %v1963 = vld [vmem:[#allocation11 + $0x650] sm:$0xff]
    %v1964 = vld [vmem:[#allocation11 + $0x658] sm:$0xff]
    %v1965 = vld [vmem:[#allocation11 + $0x660] sm:$0xff]
    %v1966 = vld [vmem:[#allocation11 + $0x668] sm:$0xff]
    %v1967 = vld [vmem:[#allocation11 + $0x670] sm:$0xff]
    %v1968 = vld [vmem:[#allocation11 + $0x678] sm:$0xff]
    %v1969 = vld [vmem:[#allocation11 + $0x680] sm:$0xff]
    %v1970 = vld [vmem:[#allocation11 + $0x688] sm:$0xff]
    %v1971 = vld [vmem:[#allocation11 + $0x690] sm:$0xff]
    %v1972 = vld [vmem:[#allocation11 + $0x698] sm:$0xff]
    %v1973 = vld [vmem:[#allocation11 + $0x6a0] sm:$0xff]
    %v1974 = vld [vmem:[#allocation11 + $0x6a8] sm:$0xff]
    %v1975 = vld [vmem:[#allocation11 + $0x6b0] sm:$0xff]
    %v1976 = vld [vmem:[#allocation11 + $0x6b8] sm:$0xff]
    %v1977 = vld [vmem:[#allocation11 + $0x6c0] sm:$0xff]
    %v1978 = vld [vmem:[#allocation11 + $0x6c8] sm:$0xff]
    %v1979 = vld [vmem:[#allocation11 + $0x6d0] sm:$0xff]
    %v1980 = vld [vmem:[#allocation11 + $0x6d8] sm:$0xff]
    %v1981 = vld [vmem:[#allocation11 + $0x6e0] sm:$0xff]
    %v1982 = vld [vmem:[#allocation11 + $0x6e8] sm:$0xff]
    %v1983 = vld [vmem:[#allocation11 + $0x6f0] sm:$0xff]
    %v1984 = vld [vmem:[#allocation11 + $0x6f8] sm:$0xff]
    %v1985 = vld [vmem:[#allocation11 + $0x700] sm:$0xff]
    %v1986 = vld [vmem:[#allocation11 + $0x708] sm:$0xff]
    %v1987 = vld [vmem:[#allocation11 + $0x710] sm:$0xff]
    %v1988 = vld [vmem:[#allocation11 + $0x718] sm:$0xff]
    %v1989 = vld [vmem:[#allocation11 + $0x720] sm:$0xff]
    %v1990 = vld [vmem:[#allocation11 + $0x728] sm:$0xff]
    %v1991 = vld [vmem:[#allocation11 + $0x730] sm:$0xff]
    %v1992 = vld [vmem:[#allocation11 + $0x738] sm:$0xff]
    %v1993 = vld [vmem:[#allocation11 + $0x740] sm:$0xff]
    %v1994 = vld [vmem:[#allocation11 + $0x748] sm:$0xff]
    %v1995 = vld [vmem:[#allocation11 + $0x750] sm:$0xff]
    %v1996 = vld [vmem:[#allocation11 + $0x758] sm:$0xff]
    %v1997 = vld [vmem:[#allocation11 + $0x760] sm:$0xff]
    %v1998 = vld [vmem:[#allocation11 + $0x768] sm:$0xff]
    %v1999 = vld [vmem:[#allocation11 + $0x770] sm:$0xff]
    %v2000 = vld [vmem:[#allocation11 + $0x778] sm:$0xff]
    %v2001 = vld [vmem:[#allocation11 + $0x780] sm:$0xff]
    %v2002 = vld [vmem:[#allocation11 + $0x788] sm:$0xff]
    %v2003 = vld [vmem:[#allocation11 + $0x790] sm:$0xff]
    %v2004 = vld [vmem:[#allocation11 + $0x798] sm:$0xff]
    %v2005 = vld [vmem:[#allocation11 + $0x7a0] sm:$0xff]
    %v2006 = vld [vmem:[#allocation11 + $0x7a8] sm:$0xff]
    %v2007 = vld [vmem:[#allocation11 + $0x7b0] sm:$0xff]
    %v2008 = vld [vmem:[#allocation11 + $0x7b8] sm:$0xff]
    %v2009 = vld [vmem:[#allocation11 + $0x7c0] sm:$0xff]
    %v2010 = vld [vmem:[#allocation11 + $0x7c8] sm:$0xff]
    %v2011 = vld [vmem:[#allocation11 + $0x7d0] sm:$0xff]
    %v2012 = vld [vmem:[#allocation11 + $0x7d8] sm:$0xff]
    %v2013 = vld [vmem:[#allocation11 + $0x7e0] sm:$0xff]
    %v2014 = vld [vmem:[#allocation11 + $0x7e8] sm:$0xff]
    %v2015 = vld [vmem:[#allocation11 + $0x7f0] sm:$0xff]
    %v2016 = vld [vmem:[#allocation11 + $0x7f8] sm:$0xff]
    %2017 = vmatprep.subr.mxu0 %v1762
    %2018 = vmatpush1.msra.mxu0 %v1761
    %2019 = vmatprep.subr.mxu0 %v1778
    %2020 = vmatpush1.msra.mxu0 %v1777
    %2021 = vmatprep.subr.mxu0 %v1794
    %2022 = vmatpush1.msra.mxu0 %v1793
    %2023 = vmatprep.subr.mxu0 %v1810
    %2024 = vmatpush1.msra.mxu0 %v1809
    %2025 = vmatprep.subr.mxu0 %v1826
    %2026 = vmatpush1.msra.mxu0 %v1825
    %2027 = vmatprep.subr.mxu0 %v1842
    %2028 = vmatpush1.msra.mxu0 %v1841
    %2029 = vmatprep.subr.mxu0 %v1858
    %2030 = vmatpush1.msra.mxu0 %v1857
    %2031 = vmatprep.subr.mxu0 %v1874
    %2032 = vmatpush1.msra.mxu0 %v1873
    %2033 = vmatprep.subr.mxu0 %v1890
    %2034 = vmatpush1.msra.mxu0 %v1889
    %2035 = vmatprep.subr.mxu0 %v1906
    %2036 = vmatpush1.msra.mxu0 %v1905
    %2037 = vmatprep.subr.mxu0 %v1922
    %2038 = vmatpush1.msra.mxu0 %v1921
    %2039 = vmatprep.subr.mxu0 %v1938
    %2040 = vmatpush1.msra.mxu0 %v1937
    %2041 = vmatprep.subr.mxu0 %v1954
    %2042 = vmatpush1.msra.mxu0 %v1953
    %2043 = vmatprep.subr.mxu0 %v1970
    %2044 = vmatpush1.msra.mxu0 %v1969
    %2045 = vmatprep.subr.mxu0 %v1986
    %2046 = vmatpush1.msra.mxu0 %v1985
    %2047 = vmatprep.subr.mxu0 %v2002
    %2048 = vmatpush1.msra.mxu0 %v2001
    %2049 = vmatprep.subr.mxu0 0.0
    %2050 = vmatpush1.msra.mxu0 0.0
    %2051 = vmatprep.subr.mxu0 0.0
    %2052 = vmatpush1.msra.mxu0 0.0
    %2053 = vmatprep.subr.mxu0 0.0
    %2054 = vmatpush1.msra.mxu0 0.0
    %2055 = vmatprep.subr.mxu0 0.0
    %2056 = vmatpush1.msra.mxu0 0.0
    %2057 = vmatprep.subr.mxu0 0.0
    %2058 = vmatpush1.msra.mxu0 0.0
    %2059 = vmatprep.subr.mxu0 0.0
    %2060 = vmatpush1.msra.mxu0 0.0
    %2061 = vmatprep.subr.mxu0 0.0
    %2062 = vmatpush1.msra.mxu0 0.0
    %2063 = vmatprep.subr.mxu0 0.0
    %2064 = vmatpush1.msra.mxu0 0.0
    %2065 = vmatprep.subr.mxu0 0.0
    %2066 = vmatpush1.msra.mxu0 0.0
    %2067 = vmatprep.subr.mxu0 0.0
    %2068 = vmatpush1.msra.mxu0 0.0
    %2069 = vmatprep.subr.mxu0 0.0
    %2070 = vmatpush1.msra.mxu0 0.0
    %2071 = vmatprep.subr.mxu0 0.0
    %2072 = vmatpush1.msra.mxu0 0.0
    %2073 = vmatprep.subr.mxu0 0.0
    %2074 = vmatpush1.msra.mxu0 0.0
    %2075 = vmatprep.subr.mxu0 0.0
    %2076 = vmatpush1.msra.mxu0 0.0
    %2077 = vmatprep.subr.mxu0 0.0
    %2078 = vmatpush1.msra.mxu0 0.0
    %2079 = vmatprep.subr.mxu0 0.0
    %2080 = vmatpush1.msra.mxu0 0.0
    %2081 = vmatprep.mubr.f32.mxu0 0.0
    %2082 = vmatmul.mubr.f32.gmra.mrb[0].mxu0 %v1759
    %v2083 = vpop.f32.mrb[0].mxu0
    %v2084 = vadd.f32 0.0, %v2083
    %v2085 = vpop.f32.mrb[0].mxu0
    %v2086 = vadd.f32 0.0, %v2085
    %2087 = vmatprep.mubr.f32.mxu0 0.0
    %2088 = vmatmul.mubr.f32.gmra.mrb[0].mxu0 %v1760
    %v2089 = vpop.f32.mrb[0].mxu0
    %v2090 = vadd.f32 0.0, %v2089
    %v2091 = vpop.f32.mrb[0].mxu0
    %v2092 = vadd.f32 0.0, %v2091
    %2093 = vdwg.mxu0
    %2094 = vmatprep.subr.mxu0 %v1764
    %2095 = vmatpush1.msra.mxu0 %v1763
    %2096 = vmatprep.subr.mxu0 %v1780
    %2097 = vmatpush1.msra.mxu0 %v1779
    %2098 = vmatprep.subr.mxu0 %v1796
    %2099 = vmatpush1.msra.mxu0 %v1795
    %2100 = vmatprep.subr.mxu0 %v1812
    %2101 = vmatpush1.msra.mxu0 %v1811
    %2102 = vmatprep.subr.mxu0 %v1828
    %2103 = vmatpush1.msra.mxu0 %v1827
    %2104 = vmatprep.subr.mxu0 %v1844
    %2105 = vmatpush1.msra.mxu0 %v1843
    %2106 = vmatprep.subr.mxu0 %v1860
    %2107 = vmatpush1.msra.mxu0 %v1859
    %2108 = vmatprep.subr.mxu0 %v1876
    %2109 = vmatpush1.msra.mxu0 %v1875
    %2110 = vmatprep.subr.mxu0 %v1892
    %2111 = vmatpush1.msra.mxu0 %v1891
    %2112 = vmatprep.subr.mxu0 %v1908
    %2113 = vmatpush1.msra.mxu0 %v1907
    %2114 = vmatprep.subr.mxu0 %v1924
    %2115 = vmatpush1.msra.mxu0 %v1923
    %2116 = vmatprep.subr.mxu0 %v1940
    %2117 = vmatpush1.msra.mxu0 %v1939
    %2118 = vmatprep.subr.mxu0 %v1956
    %2119 = vmatpush1.msra.mxu0 %v1955
    %2120 = vmatprep.subr.mxu0 %v1972
    %2121 = vmatpush1.msra.mxu0 %v1971
    %2122 = vmatprep.subr.mxu0 %v1988
    %2123 = vmatpush1.msra.mxu0 %v1987
    %2124 = vmatprep.subr.mxu0 %v2004
    %2125 = vmatpush1.msra.mxu0 %v2003
    %2126 = vmatprep.subr.mxu0 0.0
    %2127 = vmatpush1.msra.mxu0 0.0
    %2128 = vmatprep.subr.mxu0 0.0
    %2129 = vmatpush1.msra.mxu0 0.0
    %2130 = vmatprep.subr.mxu0 0.0
    %2131 = vmatpush1.msra.mxu0 0.0
    %2132 = vmatprep.subr.mxu0 0.0
    %2133 = vmatpush1.msra.mxu0 0.0
    %2134 = vmatprep.subr.mxu0 0.0
    %2135 = vmatpush1.msra.mxu0 0.0
    %2136 = vmatprep.subr.mxu0 0.0
    %2137 = vmatpush1.msra.mxu0 0.0
    %2138 = vmatprep.subr.mxu0 0.0
    %2139 = vmatpush1.msra.mxu0 0.0
    %2140 = vmatprep.subr.mxu0 0.0
    %2141 = vmatpush1.msra.mxu0 0.0
    %2142 = vmatprep.subr.mxu0 0.0
    %2143 = vmatpush1.msra.mxu0 0.0
    %2144 = vmatprep.subr.mxu0 0.0
    %2145 = vmatpush1.msra.mxu0 0.0
    %2146 = vmatprep.subr.mxu0 0.0
    %2147 = vmatpush1.msra.mxu0 0.0
    %2148 = vmatprep.subr.mxu0 0.0
    %2149 = vmatpush1.msra.mxu0 0.0
    %2150 = vmatprep.subr.mxu0 0.0
    %2151 = vmatpush1.msra.mxu0 0.0
    %2152 = vmatprep.subr.mxu0 0.0
    %2153 = vmatpush1.msra.mxu0 0.0
    %2154 = vmatprep.subr.mxu0 0.0
    %2155 = vmatpush1.msra.mxu0 0.0
    %2156 = vmatprep.subr.mxu0 0.0
    %2157 = vmatpush1.msra.mxu0 0.0
    %2158 = vmatprep.mubr.f32.mxu0 0.0
    %2159 = vmatmul.mubr.f32.gmra.mrb[0].mxu0 %v1759
    %v2160 = vpop.f32.mrb[0].mxu0
    %v2161 = vadd.f32 0.0, %v2160
    %v2162 = vpop.f32.mrb[0].mxu0
    %v2163 = vadd.f32 0.0, %v2162
    %2164 = vmatprep.mubr.f32.mxu0 0.0
    %2165 = vmatmul.mubr.f32.gmra.mrb[0].mxu0 %v1760
    %v2166 = vpop.f32.mrb[0].mxu0
    %v2167 = vadd.f32 0.0, %v2166
    %v2168 = vpop.f32.mrb[0].mxu0
    %v2169 = vadd.f32 0.0, %v2168
    %2170 = vdwg.mxu0
    %2171 = vmatprep.subr.mxu0 %v1766
    %2172 = vmatpush1.msra.mxu0 %v1765
    %2173 = vmatprep.subr.mxu0 %v1782
    %2174 = vmatpush1.msra.mxu0 %v1781
    %2175 = vmatprep.subr.mxu0 %v1798
    %2176 = vmatpush1.msra.mxu0 %v1797
    %2177 = vmatprep.subr.mxu0 %v1814
    %2178 = vmatpush1.msra.mxu0 %v1813
    %2179 = vmatprep.subr.mxu0 %v1830
    %2180 = vmatpush1.msra.mxu0 %v1829
    %2181 = vmatprep.subr.mxu0 %v1846
    %2182 = vmatpush1.msra.mxu0 %v1845
    %2183 = vmatprep.subr.mxu0 %v1862
    %2184 = vmatpush1.msra.mxu0 %v1861
    %2185 = vmatprep.subr.mxu0 %v1878
    %2186 = vmatpush1.msra.mxu0 %v1877
    %2187 = vmatprep.subr.mxu0 %v1894
    %2188 = vmatpush1.msra.mxu0 %v1893
    %2189 = vmatprep.subr.mxu0 %v1910
    %2190 = vmatpush1.msra.mxu0 %v1909
    %2191 = vmatprep.subr.mxu0 %v1926
    %2192 = vmatpush1.msra.mxu0 %v1925
    %2193 = vmatprep.subr.mxu0 %v1942
    %2194 = vmatpush1.msra.mxu0 %v1941
    %2195 = vmatprep.subr.mxu0 %v1958
    %2196 = vmatpush1.msra.mxu0 %v1957
    %2197 = vmatprep.subr.mxu0 %v1974
    %2198 = vmatpush1.msra.mxu0 %v1973
    %2199 = vmatprep.subr.mxu0 %v1990
    %2200 = vmatpush1.msra.mxu0 %v1989
    %2201 = vmatprep.subr.mxu0 %v2006
    %2202 = vmatpush1.msra.mxu0 %v2005
    %2203 = vmatprep.subr.mxu0 0.0
    %2204 = vmatpush1.msra.mxu0 0.0
    %2205 = vmatprep.subr.mxu0 0.0
    %2206 = vmatpush1.msra.mxu0 0.0
    %2207 = vmatprep.subr.mxu0 0.0
    %2208 = vmatpush1.msra.mxu0 0.0
    %2209 = vmatprep.subr.mxu0 0.0
    %2210 = vmatpush1.msra.mxu0 0.0
    %2211 = vmatprep.subr.mxu0 0.0
    %2212 = vmatpush1.msra.mxu0 0.0
    %2213 = vmatprep.subr.mxu0 0.0
    %2214 = vmatpush1.msra.mxu0 0.0
    %2215 = vmatprep.subr.mxu0 0.0
    %2216 = vmatpush1.msra.mxu0 0.0
    %2217 = vmatprep.subr.mxu0 0.0
    %2218 = vmatpush1.msra.mxu0 0.0
    %2219 = vmatprep.subr.mxu0 0.0
    %2220 = vmatpush1.msra.mxu0 0.0
    %2221 = vmatprep.subr.mxu0 0.0
    %2222 = vmatpush1.msra.mxu0 0.0
    %2223 = vmatprep.subr.mxu0 0.0
    %2224 = vmatpush1.msra.mxu0 0.0
    %2225 = vmatprep.subr.mxu0 0.0
    %2226 = vmatpush1.msra.mxu0 0.0
    %2227 = vmatprep.subr.mxu0 0.0
    %2228 = vmatpush1.msra.mxu0 0.0
    %2229 = vmatprep.subr.mxu0 0.0
    %2230 = vmatpush1.msra.mxu0 0.0
    %2231 = vmatprep.subr.mxu0 0.0
    %2232 = vmatpush1.msra.mxu0 0.0
    %2233 = vmatprep.subr.mxu0 0.0
    %2234 = vmatpush1.msra.mxu0 0.0
    %2235 = vmatprep.mubr.f32.mxu0 0.0
    %2236 = vmatmul.mubr.f32.gmra.mrb[0].mxu0 %v1759
    %v2237 = vpop.f32.mrb[0].mxu0
    %v2238 = vadd.f32 0.0, %v2237
    %v2239 = vpop.f32.mrb[0].mxu0
    %v2240 = vadd.f32 0.0, %v2239
    %2241 = vmatprep.mubr.f32.mxu0 0.0
    %2242 = vmatmul.mubr.f32.gmra.mrb[0].mxu0 %v1760
    %v2243 = vpop.f32.mrb[0].mxu0
    %v2244 = vadd.f32 0.0, %v2243
    %v2245 = vpop.f32.mrb[0].mxu0
    %v2246 = vadd.f32 0.0, %v2245
    %2247 = vdwg.mxu0
    %2248 = vmatprep.subr.mxu0 %v1768
    %2249 = vmatpush1.msra.mxu0 %v1767
    %2250 = vmatprep.subr.mxu0 %v1784
    %2251 = vmatpush1.msra.mxu0 %v1783
    %2252 = vmatprep.subr.mxu0 %v1800
    %2253 = vmatpush1.msra.mxu0 %v1799
    %2254 = vmatprep.subr.mxu0 %v1816
    %2255 = vmatpush1.msra.mxu0 %v1815
    %2256 = vmatprep.subr.mxu0 %v1832
    %2257 = vmatpush1.msra.mxu0 %v1831
    %2258 = vmatprep.subr.mxu0 %v1848
    %2259 = vmatpush1.msra.mxu0 %v1847
    %2260 = vmatprep.subr.mxu0 %v1864
    %2261 = vmatpush1.msra.mxu0 %v1863
    %2262 = vmatprep.subr.mxu0 %v1880
    %2263 = vmatpush1.msra.mxu0 %v1879
    %2264 = vmatprep.subr.mxu0 %v1896
    %2265 = vmatpush1.msra.mxu0 %v1895
    %2266 = vmatprep.subr.mxu0 %v1912
    %2267 = vmatpush1.msra.mxu0 %v1911
    %2268 = vmatprep.subr.mxu0 %v1928
    %2269 = vmatpush1.msra.mxu0 %v1927
    %2270 = vmatprep.subr.mxu0 %v1944
    %2271 = vmatpush1.msra.mxu0 %v1943
    %2272 = vmatprep.subr.mxu0 %v1960
    %2273 = vmatpush1.msra.mxu0 %v1959
    %2274 = vmatprep.subr.mxu0 %v1976
    %2275 = vmatpush1.msra.mxu0 %v1975
    %2276 = vmatprep.subr.mxu0 %v1992
    %2277 = vmatpush1.msra.mxu0 %v1991
    %2278 = vmatprep.subr.mxu0 %v2008
    %2279 = vmatpush1.msra.mxu0 %v2007
    %2280 = vmatprep.subr.mxu0 0.0
    %2281 = vmatpush1.msra.mxu0 0.0
    %2282 = vmatprep.subr.mxu0 0.0
    %2283 = vmatpush1.msra.mxu0 0.0
    %2284 = vmatprep.subr.mxu0 0.0
    %2285 = vmatpush1.msra.mxu0 0.0
    %2286 = vmatprep.subr.mxu0 0.0
    %2287 = vmatpush1.msra.mxu0 0.0
    %2288 = vmatprep.subr.mxu0 0.0
    %2289 = vmatpush1.msra.mxu0 0.0
    %2290 = vmatprep.subr.mxu0 0.0
    %2291 = vmatpush1.msra.mxu0 0.0
    %2292 = vmatprep.subr.mxu0 0.0
    %2293 = vmatpush1.msra.mxu0 0.0
    %2294 = vmatprep.subr.mxu0 0.0
    %2295 = vmatpush1.msra.mxu0 0.0
    %2296 = vmatprep.subr.mxu0 0.0
    %2297 = vmatpush1.msra.mxu0 0.0
    %2298 = vmatprep.subr.mxu0 0.0
    %2299 = vmatpush1.msra.mxu0 0.0
    %2300 = vmatprep.subr.mxu0 0.0
    %2301 = vmatpush1.msra.mxu0 0.0
    %2302 = vmatprep.subr.mxu0 0.0
    %2303 = vmatpush1.msra.mxu0 0.0
    %2304 = vmatprep.subr.mxu0 0.0
    %2305 = vmatpush1.msra.mxu0 0.0
    %2306 = vmatprep.subr.mxu0 0.0
    %2307 = vmatpush1.msra.mxu0 0.0
    %2308 = vmatprep.subr.mxu0 0.0
    %2309 = vmatpush1.msra.mxu0 0.0
    %2310 = vmatprep.subr.mxu0 0.0
    %2311 = vmatpush1.msra.mxu0 0.0
    %2312 = vmatprep.mubr.f32.mxu0 0.0
    %2313 = vmatmul.mubr.f32.gmra.mrb[0].mxu0 %v1759
    %v2314 = vpop.f32.mrb[0].mxu0
    %v2315 = vadd.f32 0.0, %v2314
    %v2316 = vpop.f32.mrb[0].mxu0
    %v2317 = vadd.f32 0.0, %v2316
    %2318 = vmatprep.mubr.f32.mxu0 0.0
    %2319 = vmatmul.mubr.f32.gmra.mrb[0].mxu0 %v1760
    %v2320 = vpop.f32.mrb[0].mxu0
    %v2321 = vadd.f32 0.0, %v2320
    %v2322 = vpop.f32.mrb[0].mxu0
    %v2323 = vadd.f32 0.0, %v2322
    %2324 = vdwg.mxu0
    %2325 = vmatprep.subr.mxu0 %v1770
    %2326 = vmatpush1.msra.mxu0 %v1769
    %2327 = vmatprep.subr.mxu0 %v1786
    %2328 = vmatpush1.msra.mxu0 %v1785
    %2329 = vmatprep.subr.mxu0 %v1802
    %2330 = vmatpush1.msra.mxu0 %v1801
    %2331 = vmatprep.subr.mxu0 %v1818
    %2332 = vmatpush1.msra.mxu0 %v1817
    %2333 = vmatprep.subr.mxu0 %v1834
    %2334 = vmatpush1.msra.mxu0 %v1833
    %2335 = vmatprep.subr.mxu0 %v1850
    %2336 = vmatpush1.msra.mxu0 %v1849
    %2337 = vmatprep.subr.mxu0 %v1866
    %2338 = vmatpush1.msra.mxu0 %v1865
    %2339 = vmatprep.subr.mxu0 %v1882
    %2340 = vmatpush1.msra.mxu0 %v1881
    %2341 = vmatprep.subr.mxu0 %v1898
    %2342 = vmatpush1.msra.mxu0 %v1897
    %2343 = vmatprep.subr.mxu0 %v1914
    %2344 = vmatpush1.msra.mxu0 %v1913
    %2345 = vmatprep.subr.mxu0 %v1930
    %2346 = vmatpush1.msra.mxu0 %v1929
    %2347 = vmatprep.subr.mxu0 %v1946
    %2348 = vmatpush1.msra.mxu0 %v1945
    %2349 = vmatprep.subr.mxu0 %v1962
    %2350 = vmatpush1.msra.mxu0 %v1961
    %2351 = vmatprep.subr.mxu0 %v1978
    %2352 = vmatpush1.msra.mxu0 %v1977
    %2353 = vmatprep.subr.mxu0 %v1994
    %2354 = vmatpush1.msra.mxu0 %v1993
    %2355 = vmatprep.subr.mxu0 %v2010
    %2356 = vmatpush1.msra.mxu0 %v2009
    %2357 = vmatprep.subr.mxu0 0.0
    %2358 = vmatpush1.msra.mxu0 0.0
    %2359 = vmatprep.subr.mxu0 0.0
    %2360 = vmatpush1.msra.mxu0 0.0
    %2361 = vmatprep.subr.mxu0 0.0
    %2362 = vmatpush1.msra.mxu0 0.0
    %2363 = vmatprep.subr.mxu0 0.0
    %2364 = vmatpush1.msra.mxu0 0.0
    %2365 = vmatprep.subr.mxu0 0.0
    %2366 = vmatpush1.msra.mxu0 0.0
    %2367 = vmatprep.subr.mxu0 0.0
    %2368 = vmatpush1.msra.mxu0 0.0
    %2369 = vmatprep.subr.mxu0 0.0
    %2370 = vmatpush1.msra.mxu0 0.0
    %2371 = vmatprep.subr.mxu0 0.0
    %2372 = vmatpush1.msra.mxu0 0.0
    %2373 = vmatprep.subr.mxu0 0.0
    %2374 = vmatpush1.msra.mxu0 0.0
    %2375 = vmatprep.subr.mxu0 0.0
    %2376 = vmatpush1.msra.mxu0 0.0
    %2377 = vmatprep.subr.mxu0 0.0
    %2378 = vmatpush1.msra.mxu0 0.0
    %2379 = vmatprep.subr.mxu0 0.0
    %2380 = vmatpush1.msra.mxu0 0.0
    %2381 = vmatprep.subr.mxu0 0.0
    %2382 = vmatpush1.msra.mxu0 0.0
    %2383 = vmatprep.subr.mxu0 0.0
    %2384 = vmatpush1.msra.mxu0 0.0
    %2385 = vmatprep.subr.mxu0 0.0
    %2386 = vmatpush1.msra.mxu0 0.0
    %2387 = vmatprep.subr.mxu0 0.0
    %2388 = vmatpush1.msra.mxu0 0.0
    %2389 = vmatprep.mubr.f32.mxu0 0.0
    %2390 = vmatmul.mubr.f32.gmra.mrb[0].mxu0 %v1759
    %v2391 = vpop.f32.mrb[0].mxu0
    %v2392 = vadd.f32 0.0, %v2391
    %v2393 = vpop.f32.mrb[0].mxu0
    %v2394 = vadd.f32 0.0, %v2393
    %2395 = vmatprep.mubr.f32.mxu0 0.0
    %2396 = vmatmul.mubr.f32.gmra.mrb[0].mxu0 %v1760
    %v2397 = vpop.f32.mrb[0].mxu0
    %v2398 = vadd.f32 0.0, %v2397
    %v2399 = vpop.f32.mrb[0].mxu0
    %v2400 = vadd.f32 0.0, %v2399
    %2401 = vdwg.mxu0
    %2402 = vmatprep.subr.mxu0 %v1772
    %2403 = vmatpush1.msra.mxu0 %v1771
    %2404 = vmatprep.subr.mxu0 %v1788
    %2405 = vmatpush1.msra.mxu0 %v1787
    %2406 = vmatprep.subr.mxu0 %v1804
    %2407 = vmatpush1.msra.mxu0 %v1803
    %2408 = vmatprep.subr.mxu0 %v1820
    %2409 = vmatpush1.msra.mxu0 %v1819
    %2410 = vmatprep.subr.mxu0 %v1836
    %2411 = vmatpush1.msra.mxu0 %v1835
    %2412 = vmatprep.subr.mxu0 %v1852
    %2413 = vmatpush1.msra.mxu0 %v1851
    %2414 = vmatprep.subr.mxu0 %v1868
    %2415 = vmatpush1.msra.mxu0 %v1867
    %2416 = vmatprep.subr.mxu0 %v1884
    %2417 = vmatpush1.msra.mxu0 %v1883
    %2418 = vmatprep.subr.mxu0 %v1900
    %2419 = vmatpush1.msra.mxu0 %v1899
    %2420 = vmatprep.subr.mxu0 %v1916
    %2421 = vmatpush1.msra.mxu0 %v1915
    %2422 = vmatprep.subr.mxu0 %v1932
    %2423 = vmatpush1.msra.mxu0 %v1931
    %2424 = vmatprep.subr.mxu0 %v1948
    %2425 = vmatpush1.msra.mxu0 %v1947
    %2426 = vmatprep.subr.mxu0 %v1964
    %2427 = vmatpush1.msra.mxu0 %v1963
    %2428 = vmatprep.subr.mxu0 %v1980
    %2429 = vmatpush1.msra.mxu0 %v1979
    %2430 = vmatprep.subr.mxu0 %v1996
    %2431 = vmatpush1.msra.mxu0 %v1995
    %2432 = vmatprep.subr.mxu0 %v2012
    %2433 = vmatpush1.msra.mxu0 %v2011
    %2434 = vmatprep.subr.mxu0 0.0
    %2435 = vmatpush1.msra.mxu0 0.0
    %2436 = vmatprep.subr.mxu0 0.0
    %2437 = vmatpush1.msra.mxu0 0.0
    %2438 = vmatprep.subr.mxu0 0.0
    %2439 = vmatpush1.msra.mxu0 0.0
    %2440 = vmatprep.subr.mxu0 0.0
    %2441 = vmatpush1.msra.mxu0 0.0
    %2442 = vmatprep.subr.mxu0 0.0
    %2443 = vmatpush1.msra.mxu0 0.0
    %2444 = vmatprep.subr.mxu0 0.0
    %2445 = vmatpush1.msra.mxu0 0.0
    %2446 = vmatprep.subr.mxu0 0.0
    %2447 = vmatpush1.msra.mxu0 0.0
    %2448 = vmatprep.subr.mxu0 0.0
    %2449 = vmatpush1.msra.mxu0 0.0
    %2450 = vmatprep.subr.mxu0 0.0
    %2451 = vmatpush1.msra.mxu0 0.0
    %2452 = vmatprep.subr.mxu0 0.0
    %2453 = vmatpush1.msra.mxu0 0.0
    %2454 = vmatprep.subr.mxu0 0.0
    %2455 = vmatpush1.msra.mxu0 0.0
    %2456 = vmatprep.subr.mxu0 0.0
    %2457 = vmatpush1.msra.mxu0 0.0
    %2458 = vmatprep.subr.mxu0 0.0
    %2459 = vmatpush1.msra.mxu0 0.0
    %2460 = vmatprep.subr.mxu0 0.0
    %2461 = vmatpush1.msra.mxu0 0.0
    %2462 = vmatprep.subr.mxu0 0.0
    %2463 = vmatpush1.msra.mxu0 0.0
    %2464 = vmatprep.subr.mxu0 0.0
    %2465 = vmatpush1.msra.mxu0 0.0
    %2466 = vmatprep.mubr.f32.mxu0 0.0
    %2467 = vmatmul.mubr.f32.gmra.mrb[0].mxu0 %v1759
    %v2468 = vpop.f32.mrb[0].mxu0
    %v2469 = vadd.f32 0.0, %v2468
    %v2470 = vpop.f32.mrb[0].mxu0
    %v2471 = vadd.f32 0.0, %v2470
    %2472 = vmatprep.mubr.f32.mxu0 0.0
    %2473 = vmatmul.mubr.f32.gmra.mrb[0].mxu0 %v1760
    %v2474 = vpop.f32.mrb[0].mxu0
    %v2475 = vadd.f32 0.0, %v2474
    %v2476 = vpop.f32.mrb[0].mxu0
    %v2477 = vadd.f32 0.0, %v2476
    %2478 = vdwg.mxu0
    %2479 = vmatprep.subr.mxu0 %v1774
    %2480 = vmatpush1.msra.mxu0 %v1773
    %2481 = vmatprep.subr.mxu0 %v1790
    %2482 = vmatpush1.msra.mxu0 %v1789
    %2483 = vmatprep.subr.mxu0 %v1806
    %2484 = vmatpush1.msra.mxu0 %v1805
    %2485 = vmatprep.subr.mxu0 %v1822
    %2486 = vmatpush1.msra.mxu0 %v1821
    %2487 = vmatprep.subr.mxu0 %v1838
    %2488 = vmatpush1.msra.mxu0 %v1837
    %2489 = vmatprep.subr.mxu0 %v1854
    %2490 = vmatpush1.msra.mxu0 %v1853
    %2491 = vmatprep.subr.mxu0 %v1870
    %2492 = vmatpush1.msra.mxu0 %v1869
    %2493 = vmatprep.subr.mxu0 %v1886
    %2494 = vmatpush1.msra.mxu0 %v1885
    %2495 = vmatprep.subr.mxu0 %v1902
    %2496 = vmatpush1.msra.mxu0 %v1901
    %2497 = vmatprep.subr.mxu0 %v1918
    %2498 = vmatpush1.msra.mxu0 %v1917
    %2499 = vmatprep.subr.mxu0 %v1934
    %2500 = vmatpush1.msra.mxu0 %v1933
    %2501 = vmatprep.subr.mxu0 %v1950
    %2502 = vmatpush1.msra.mxu0 %v1949
    %2503 = vmatprep.subr.mxu0 %v1966
    %2504 = vmatpush1.msra.mxu0 %v1965
    %2505 = vmatprep.subr.mxu0 %v1982
    %2506 = vmatpush1.msra.mxu0 %v1981
    %2507 = vmatprep.subr.mxu0 %v1998
    %2508 = vmatpush1.msra.mxu0 %v1997
    %2509 = vmatprep.subr.mxu0 %v2014
    %2510 = vmatpush1.msra.mxu0 %v2013
    %2511 = vmatprep.subr.mxu0 0.0
    %2512 = vmatpush1.msra.mxu0 0.0
    %2513 = vmatprep.subr.mxu0 0.0
    %2514 = vmatpush1.msra.mxu0 0.0
    %2515 = vmatprep.subr.mxu0 0.0
    %2516 = vmatpush1.msra.mxu0 0.0
    %2517 = vmatprep.subr.mxu0 0.0
    %2518 = vmatpush1.msra.mxu0 0.0
    %2519 = vmatprep.subr.mxu0 0.0
    %2520 = vmatpush1.msra.mxu0 0.0
    %2521 = vmatprep.subr.mxu0 0.0
    %2522 = vmatpush1.msra.mxu0 0.0
    %2523 = vmatprep.subr.mxu0 0.0
    %2524 = vmatpush1.msra.mxu0 0.0
    %2525 = vmatprep.subr.mxu0 0.0
    %2526 = vmatpush1.msra.mxu0 0.0
    %2527 = vmatprep.subr.mxu0 0.0
    %2528 = vmatpush1.msra.mxu0 0.0
    %2529 = vmatprep.subr.mxu0 0.0
    %2530 = vmatpush1.msra.mxu0 0.0
    %2531 = vmatprep.subr.mxu0 0.0
    %2532 = vmatpush1.msra.mxu0 0.0
    %2533 = vmatprep.subr.mxu0 0.0
    %2534 = vmatpush1.msra.mxu0 0.0
    %2535 = vmatprep.subr.mxu0 0.0
    %2536 = vmatpush1.msra.mxu0 0.0
    %2537 = vmatprep.subr.mxu0 0.0
    %2538 = vmatpush1.msra.mxu0 0.0
    %2539 = vmatprep.subr.mxu0 0.0
    %2540 = vmatpush1.msra.mxu0 0.0
    %2541 = vmatprep.subr.mxu0 0.0
    %2542 = vmatpush1.msra.mxu0 0.0
    %2543 = vmatprep.mubr.f32.mxu0 0.0
    %2544 = vmatmul.mubr.f32.gmra.mrb[0].mxu0 %v1759
    %v2545 = vpop.f32.mrb[0].mxu0
    %v2546 = vadd.f32 0.0, %v2545
    %v2547 = vpop.f32.mrb[0].mxu0
    %v2548 = vadd.f32 0.0, %v2547
    %2549 = vmatprep.mubr.f32.mxu0 0.0
    %2550 = vmatmul.mubr.f32.gmra.mrb[0].mxu0 %v1760
    %v2551 = vpop.f32.mrb[0].mxu0
    %v2552 = vadd.f32 0.0, %v2551
    %v2553 = vpop.f32.mrb[0].mxu0
    %v2554 = vadd.f32 0.0, %v2553
    %2555 = vdwg.mxu0
    %2556 = vmatprep.subr.mxu0 %v1776
    %2557 = vmatpush1.msra.mxu0 %v1775
    %2558 = vmatprep.subr.mxu0 %v1792
    %2559 = vmatpush1.msra.mxu0 %v1791
    %2560 = vmatprep.subr.mxu0 %v1808
    %2561 = vmatpush1.msra.mxu0 %v1807
    %2562 = vmatprep.subr.mxu0 %v1824
    %2563 = vmatpush1.msra.mxu0 %v1823
    %2564 = vmatprep.subr.mxu0 %v1840
    %2565 = vmatpush1.msra.mxu0 %v1839
    %2566 = vmatprep.subr.mxu0 %v1856
    %2567 = vmatpush1.msra.mxu0 %v1855
    %2568 = vmatprep.subr.mxu0 %v1872
    %2569 = vmatpush1.msra.mxu0 %v1871
    %2570 = vmatprep.subr.mxu0 %v1888
    %2571 = vmatpush1.msra.mxu0 %v1887
    %2572 = vmatprep.subr.mxu0 %v1904
    %2573 = vmatpush1.msra.mxu0 %v1903
    %2574 = vmatprep.subr.mxu0 %v1920
    %2575 = vmatpush1.msra.mxu0 %v1919
    %2576 = vmatprep.subr.mxu0 %v1936
    %2577 = vmatpush1.msra.mxu0 %v1935
    %2578 = vmatprep.subr.mxu0 %v1952
    %2579 = vmatpush1.msra.mxu0 %v1951
    %2580 = vmatprep.subr.mxu0 %v1968
    %2581 = vmatpush1.msra.mxu0 %v1967
    %2582 = vmatprep.subr.mxu0 %v1984
    %2583 = vmatpush1.msra.mxu0 %v1983
    %2584 = vmatprep.subr.mxu0 %v2000
    %2585 = vmatpush1.msra.mxu0 %v1999
    %2586 = vmatprep.subr.mxu0 %v2016
    %2587 = vmatpush1.msra.mxu0 %v2015
    %2588 = vmatprep.subr.mxu0 0.0
    %2589 = vmatpush1.msra.mxu0 0.0
    %2590 = vmatprep.subr.mxu0 0.0
    %2591 = vmatpush1.msra.mxu0 0.0
    %2592 = vmatprep.subr.mxu0 0.0
    %2593 = vmatpush1.msra.mxu0 0.0
    %2594 = vmatprep.subr.mxu0 0.0
    %2595 = vmatpush1.msra.mxu0 0.0
    %2596 = vmatprep.subr.mxu0 0.0
    %2597 = vmatpush1.msra.mxu0 0.0
    %2598 = vmatprep.subr.mxu0 0.0
    %2599 = vmatpush1.msra.mxu0 0.0
    %2600 = vmatprep.subr.mxu0 0.0
    %2601 = vmatpush1.msra.mxu0 0.0
    %2602 = vmatprep.subr.mxu0 0.0
    %2603 = vmatpush1.msra.mxu0 0.0
    %2604 = vmatprep.subr.mxu0 0.0
    %2605 = vmatpush1.msra.mxu0 0.0
    %2606 = vmatprep.subr.mxu0 0.0
    %2607 = vmatpush1.msra.mxu0 0.0
    %2608 = vmatprep.subr.mxu0 0.0
    %2609 = vmatpush1.msra.mxu0 0.0
    %2610 = vmatprep.subr.mxu0 0.0
    %2611 = vmatpush1.msra.mxu0 0.0
    %2612 = vmatprep.subr.mxu0 0.0
    %2613 = vmatpush1.msra.mxu0 0.0
    %2614 = vmatprep.subr.mxu0 0.0
    %2615 = vmatpush1.msra.mxu0 0.0
    %2616 = vmatprep.subr.mxu0 0.0
    %2617 = vmatpush1.msra.mxu0 0.0
    %2618 = vmatprep.subr.mxu0 0.0
    %2619 = vmatpush1.msra.mxu0 0.0
    %2620 = vmatprep.mubr.f32.mxu0 0.0
    %2621 = vmatmul.mubr.f32.gmra.mrb[0].mxu0 %v1759
    %v2622 = vpop.f32.mrb[0].mxu0
    %v2623 = vadd.f32 0.0, %v2622
    %v2624 = vpop.f32.mrb[0].mxu0
    %v2625 = vadd.f32 0.0, %v2624
    %2626 = vmatprep.mubr.f32.mxu0 0.0
    %2627 = vmatmul.mubr.f32.gmra.mrb[0].mxu0 %v1760
    %v2628 = vpop.f32.mrb[0].mxu0
    %v2629 = vadd.f32 0.0, %v2628
    %v2630 = vpop.f32.mrb[0].mxu0
    %v2631 = vadd.f32 0.0, %v2630
    %2632 = vdwg.mxu0
    %2633 = vst [vmem:[#allocation13] sm:$0xff] %v2084
    %2634 = vst [vmem:[#allocation13 + $0x8] sm:$0xff] %v2086
    %2635 = vst [vmem:[#allocation13 + $0x10] sm:$0xff] %v2161
    %2636 = vst [vmem:[#allocation13 + $0x18] sm:$0xff] %v2163
    %2637 = vst [vmem:[#allocation13 + $0x20] sm:$0xff] %v2238
    %2638 = vst [vmem:[#allocation13 + $0x28] sm:$0xff] %v2240
    %2639 = vst [vmem:[#allocation13 + $0x30] sm:$0xff] %v2315
    %2640 = vst [vmem:[#allocation13 + $0x38] sm:$0xff] %v2317
    %2641 = vst [vmem:[#allocation13 + $0x40] sm:$0xff] %v2392
    %2642 = vst [vmem:[#allocation13 + $0x48] sm:$0xff] %v2394
    %2643 = vst [vmem:[#allocation13 + $0x50] sm:$0xff] %v2469
    %2644 = vst [vmem:[#allocation13 + $0x58] sm:$0xff] %v2471
    %2645 = vst [vmem:[#allocation13 + $0x60] sm:$0xff] %v2546
    %2646 = vst [vmem:[#allocation13 + $0x68] sm:$0xff] %v2548
    %2647 = vst [vmem:[#allocation13 + $0x70] sm:$0xff] %v2623
    %2648 = vst [vmem:[#allocation13 + $0x78] sm:$0xff] %v2625
    %2649 = vst [vmem:[#allocation13 + $0x80] sm:$0xff] %v2090
    %2650 = vst [vmem:[#allocation13 + $0x88] sm:$0xff] %v2092
    %2651 = vst [vmem:[#allocation13 + $0x90] sm:$0xff] %v2167
    %2652 = vst [vmem:[#allocation13 + $0x98] sm:$0xff] %v2169
    %2653 = vst [vmem:[#allocation13 + $0xa0] sm:$0xff] %v2244
    %2654 = vst [vmem:[#allocation13 + $0xa8] sm:$0xff] %v2246
    %2655 = vst [vmem:[#allocation13 + $0xb0] sm:$0xff] %v2321
    %2656 = vst [vmem:[#allocation13 + $0xb8] sm:$0xff] %v2323
    %2657 = vst [vmem:[#allocation13 + $0xc0] sm:$0xff] %v2398
    %2658 = vst [vmem:[#allocation13 + $0xc8] sm:$0xff] %v2400
    %2659 = vst [vmem:[#allocation13 + $0xd0] sm:$0xff] %v2475
    %2660 = vst [vmem:[#allocation13 + $0xd8] sm:$0xff] %v2477
    %2661 = vst [vmem:[#allocation13 + $0xe0] sm:$0xff] %v2552
    %2662 = vst [vmem:[#allocation13 + $0xe8] sm:$0xff] %v2554
    %2663 = vst [vmem:[#allocation13 + $0xf0] sm:$0xff] %v2629
    %2664 = vst [vmem:[#allocation13 + $0xf8] sm:$0xff] %v2631
    // Predicated region
    $region50: #{tpu_custom_call.1} parent=1 // pred_check
      _
    $region51: #{tpu_custom_call.1} parent=1 // pred_check_branch
      %2666 = sbr.rel (0) target = $region53
    $region52: #{tpu_custom_call.1} parent=1 // pred_region
      %s2668 = ssub.s32 4096, 4096
      %2669 = vsyncadd [#allocation4], %s2668
      %s2670 = sshll.u32 [#allocation13], 4
      %s2671 = int_to_ptr.vmem [resolvable:$true] %s2670
      %2676 = dma.vmem_to_hbm [thread:$0]  %s2671, 4096, %s6, [#allocation4], 2048, 2048, 128
    $region53: #{tpu_custom_call.1} parent=1 // pred_fallthru
      _
    // Predicated region
    $region54: #{tpu_custom_call.1} parent=1 // pred_check
      _
    $region55: #{tpu_custom_call.1} parent=1 // pred_check_branch
      %2678 = sbr.rel (0) target = $region57
    $region56: #{tpu_custom_call.1} parent=1 // pred_region
      %2679 = dma.done [#allocation4], 4096
    $region57: #{tpu_custom_call.1} parent=1 // pred_fallthru
      _
    %2680 = vsyncpa [#allocation3], 1
    %2681 = vsyncpa [#allocation6], 1
    %2682 = vsyncpa [#allocation9], 1
    %2683 = vsyncpa [#allocation12], 1
    %2684 = vsyncpa [#allocation4], 1

</llo_original>
